<compile_context>
chip_gen: v7x
topology: tpu7x:2x2x1
jax: 0.10.0
libtpu: 0.0.40
codegen_flags: <defaults>
</compile_context>

<pallas_src>
import numpy as np
import jax
import jax.numpy as jnp
from jax import lax
from jax.experimental import pallas as pl
from jax.experimental.pallas import tpu as pltpu


def _make_kernel(num_layers, hidden_size, compute_dtype):
    L = num_layers
    H = hidden_size
    cdt = compute_dtype

    def kernel(*refs):
        n_in = 4 + 2 * (L - 1) + 2
        x_ref = refs[0]                                  # (seq, F)
        wih0_ref, whh0_ref, b0_ref = refs[1], refs[2], refs[3]
        deep_refs = refs[4:4 + 2 * (L - 1)]              # (W_l, b_l) for l >= 1
        fcw_ref, fcb_ref = refs[n_in - 2], refs[n_in - 1]
        out_ref, hn_ref, cn_ref = refs[n_in], refs[n_in + 1], refs[n_in + 2]
        xg0_scr, hseq_scr = refs[n_in + 3], refs[n_in + 4]

        seq_len = x_ref.shape[0]
        num_waves = seq_len + L - 1

        # Layer-0 input contribution for all timesteps: one lane-dense
        # (seq, F) @ (F, 4H) MXU matmul, bias folded in, stored in VMEM scratch.
        xg0_scr[...] = (
            jnp.dot(x_ref[...], wih0_ref[...], preferred_element_type=jnp.float32)
            + b0_ref[...])

        # Hoist all weight slab loads out of the recurrence (loaded once).
        whh0 = whh0_ref[...]                             # (H, 4H)
        deep_W = [deep_refs[2 * i][...] for i in range(L - 1)]       # (2H, 4H)
        deep_b = [deep_refs[2 * i + 1][...] for i in range(L - 1)]   # (1, 4H)

        def cell(gates, c_prev):
            # Gate column order matches PyTorch: [i | f | g | o].
            i_g = jax.nn.sigmoid(gates[:, 0:H])
            f_g = jax.nn.sigmoid(gates[:, H:2 * H])
            g_g = jnp.tanh(gates[:, 2 * H:3 * H])
            o_g = jax.nn.sigmoid(gates[:, 3 * H:4 * H])
            c_new = f_g * c_prev + i_g * g_g
            h_new = o_g * jnp.tanh(c_new)
            return h_new, c_new

        # Wavefront over (layer, time): at wave w, layer l processes t = w - l and
        # reads layer l-1's h(t) straight from the previous wave's carry.
        def wave(w, carry):
            hs, cs = carry                               # tuples of (1, H) f32
            new_hs, new_cs = [], []
            for l in range(L):
                t = w - l
                active = jnp.logical_and(t >= 0, t < seq_len)
                t_c = jnp.clip(t, 0, seq_len - 1)
                if l == 0:
                    gates = xg0_scr[pl.ds(t_c, 1), :] + jnp.dot(
                        hs[0].astype(cdt), whh0,
                        preferred_element_type=jnp.float32)
                else:
                    # Single fused (1, 2H) @ (2H, 4H) matmul: [h_{l-1}(t), h_l(t-1)].
                    inp = jnp.concatenate([hs[l - 1], hs[l]], axis=1).astype(cdt)
                    gates = jnp.dot(inp, deep_W[l - 1],
                                    preferred_element_type=jnp.float32) + deep_b[l - 1]
                h_new, c_new = cell(gates, cs[l])
                if l == L - 1:
                    # Only the last layer's per-step h is stored (FC head input).
                    # Unconditional store to the clamped row is safe: the only
                    # inactive waves for the last layer are the first L-1 (t < 0,
                    # clamped to row 0), and the real t=0 write at wave L-1
                    # overwrites them before anything reads hseq_scr.
                    hseq_scr[pl.ds(t_c, 1), :] = h_new
                new_hs.append(jnp.where(active, h_new, hs[l]))
                new_cs.append(jnp.where(active, c_new, cs[l]))
            return tuple(new_hs), tuple(new_cs)

        zeros = tuple(jnp.zeros((1, H), jnp.float32) for _ in range(L))
        hs_f, cs_f = lax.fori_loop(0, num_waves, wave, (zeros, zeros), unroll=True)

        # FC head over the whole sequence, lane-dense (padded) output.
        out_ref[...] = (
            jnp.dot(hseq_scr[...].astype(cdt), fcw_ref[...],
                    preferred_element_type=jnp.float32)
            + fcb_ref[...]).astype(out_ref.dtype)
        hn_ref[...] = jnp.concatenate(list(hs_f), axis=0)   # (L, H)
        cn_ref[...] = jnp.concatenate(list(cs_f), axis=0)   # (L, H)

    return kernel


def pack_params(raw_layers, fc_w, fc_b, output_size, compute_dtype=jnp.float32):
    """raw_layers[l] = (w_ih (4H,F), w_hh (4H,H), b_ih (4H,), b_hh (4H,)) in PyTorch layout."""
    H = raw_layers[0][1].shape[1]
    L = len(raw_layers)
    o_pad = pl.cdiv(output_size, 128) * 128              # lane-dense output width

    w_ih0, w_hh0, b_ih0, b_hh0 = raw_layers[0]
    wih0 = jnp.asarray(w_ih0.T, compute_dtype)            # (F, 4H), cols [i|f|g|o]
    whh0 = jnp.asarray(w_hh0.T, compute_dtype)            # (H, 4H)
    b0 = (b_ih0 + b_hh0).reshape(1, 4 * H).astype(jnp.float32)

    deep = []
    for (w_ih, w_hh, b_ih, b_hh) in raw_layers[1:]:
        W = jnp.concatenate([w_ih.T, w_hh.T], axis=0).astype(compute_dtype)  # (2H, 4H)
        b = (b_ih + b_hh).reshape(1, 4 * H).astype(jnp.float32)
        deep.append((W, b))

    fcw = jnp.zeros((H, o_pad), jnp.float32).at[:, :output_size].set(fc_w.T)
    fcw = fcw.astype(compute_dtype)
    fcb = jnp.zeros((1, o_pad), jnp.float32).at[:, :output_size].set(fc_b)

    return dict(wih0=wih0, whh0=whh0, b0=b0, deep=deep, fcw=fcw, fcb=fcb,
                H=H, L=L, out_size=output_size, o_pad=o_pad)


def hindcast_lstm_block_forward(x, packed):
    """x: (seq, F) or (B, seq, F) float32.  Returns (out, hn, cn) like the PyTorch module."""
    unbatched = (x.ndim == 2)
    if unbatched:
        x = x[None]
    B, seq, F = x.shape
    H, L = packed["H"], packed["L"]
    o_pad, out_size = packed["o_pad"], packed["out_size"]
    cdt = packed["wih0"].dtype

    flat = [x.astype(cdt), packed["wih0"], packed["whh0"], packed["b0"]]
    for (W, b) in packed["deep"]:
        flat += [W, b]
    flat += [packed["fcw"], packed["fcb"]]

    def full_spec(a):
        nd = a.ndim
        return pl.BlockSpec(a.shape, lambda b, _nd=nd: (0,) * _nd)

    in_specs = [pl.BlockSpec((None, seq, F), lambda b: (b, 0, 0))]
    in_specs += [full_spec(a) for a in flat[1:]]

    out_shape = (
        jax.ShapeDtypeStruct((B, seq, o_pad), jnp.float32),
        jax.ShapeDtypeStruct((B, L, H), jnp.float32),
        jax.ShapeDtypeStruct((B, L, H), jnp.float32),
    )
    out_specs = (
        pl.BlockSpec((None, seq, o_pad), lambda b: (b, 0, 0)),
        pl.BlockSpec((None, L, H), lambda b: (b, 0, 0)),
        pl.BlockSpec((None, L, H), lambda b: (b, 0, 0)),
    )

    out, hn, cn = pl.pallas_call(
        _make_kernel(L, H, cdt),
        grid=(B,),
        in_specs=in_specs,
        out_specs=out_specs,
        out_shape=out_shape,
        scratch_shapes=[pltpu.VMEM((seq, 4 * H), jnp.float32),   # layer-0 gate precompute
                        pltpu.VMEM((seq, H), jnp.float32)],      # last layer h per step
        compiler_params=pltpu.CompilerParams(
            dimension_semantics=("parallel",)),                   # shard batch over TCs (v7x)
    )(*flat)

    out = out[..., :out_size]                 # drop lane padding
    hn = jnp.transpose(hn, (1, 0, 2))         # (L, B, H) like PyTorch
    cn = jnp.transpose(cn, (1, 0, 2))
    if unbatched:
        out, hn, cn = out[0], hn[:, 0], cn[:, 0]
    return out, hn, cn


def init_params(key, input_size, hidden_size, num_layers, output_size):
    """Deterministic init mimicking PyTorch's U(-1/sqrt(H), 1/sqrt(H))."""
    k = 1.0 / np.sqrt(hidden_size)
    keys = jax.random.split(key, num_layers * 4 + 2)
    idx = 0
    raw_layers = []
    for l in range(num_layers):
        F = input_size if l == 0 else hidden_size
        w_ih = jax.random.uniform(keys[idx], (4 * hidden_size, F), jnp.float32, -k, k); idx += 1
        w_hh = jax.random.uniform(keys[idx], (4 * hidden_size, hidden_size), jnp.float32, -k, k); idx += 1
        b_ih = jax.random.uniform(keys[idx], (4 * hidden_size,), jnp.float32, -k, k); idx += 1
        b_hh = jax.random.uniform(keys[idx], (4 * hidden_size,), jnp.float32, -k, k); idx += 1
        raw_layers.append((w_ih, w_hh, b_ih, b_hh))
    fc_w = jax.random.uniform(keys[idx], (output_size, hidden_size), jnp.float32, -k, k); idx += 1
    fc_b = jax.random.uniform(keys[idx], (output_size,), jnp.float32, -k, k); idx += 1
    return raw_layers, (fc_w, fc_b)


def reference_forward(x, raw_layers, fc_w, fc_b):
    """Pure-JAX reference identical to the PyTorch forward (unbatched 2-D x)."""
    H = raw_layers[0][1].shape[1]
    inp = x
    hn, cn = [], []
    for (w_ih, w_hh, b_ih, b_hh) in raw_layers:
        h = jnp.zeros((H,), jnp.float32)
        c = jnp.zeros((H,), jnp.float32)
        outs = []
        for t in range(inp.shape[0]):
            g = w_ih @ inp[t] + b_ih + w_hh @ h + b_hh
            i = jax.nn.sigmoid(g[0:H])
            f = jax.nn.sigmoid(g[H:2 * H])
            gg = jnp.tanh(g[2 * H:3 * H])
            o = jax.nn.sigmoid(g[3 * H:4 * H])
            c = f * c + i * gg
            h = o * jnp.tanh(c)
            outs.append(h)
        inp = jnp.stack(outs)
        hn.append(h)
        cn.append(c)
    out = inp @ fc_w.T + fc_b                  # fc applied to every timestep
    return out, jnp.stack(hn), jnp.stack(cn)


if __name__ == "__main__":
    SEQ = 8
    INPUT_SIZE = 16
    HIDDEN = 32
    NUM_LAYERS = 2
    OUTPUT_SIZE = 4
    BATCH = 2

    key = jax.random.PRNGKey(0)
    kx, kp = jax.random.split(key)
    x = jax.random.normal(kx, (BATCH, SEQ, INPUT_SIZE), jnp.float32)

    raw_layers, (fc_w, fc_b) = init_params(kp, INPUT_SIZE, HIDDEN, NUM_LAYERS, OUTPUT_SIZE)

    # --- f32 path: exact match to the reference ---
    packed = pack_params(raw_layers, fc_w, fc_b, OUTPUT_SIZE, jnp.float32)
    out, hn, cn = hindcast_lstm_block_forward(x, packed)
    jax.block_until_ready(out)

    ref_outs, ref_hns, ref_cns = [], [], []
    for b in range(BATCH):
        o, h, c = reference_forward(x[b], raw_layers, fc_w, fc_b)
        ref_outs.append(o); ref_hns.append(h); ref_cns.append(c)
    ref_out = jnp.stack(ref_outs)               # (B, seq, O)
    ref_hn = jnp.stack(ref_hns, axis=1)         # (L, B, H)
    ref_cn = jnp.stack(ref_cns, axis=1)

    np.testing.assert_allclose(np.asarray(out), np.asarray(ref_out), rtol=1e-4, atol=1e-5)
    np.testing.assert_allclose(np.asarray(hn), np.asarray(ref_hn), rtol=1e-4, atol=1e-5)
    np.testing.assert_allclose(np.asarray(cn), np.asarray(ref_cn), rtol=1e-4, atol=1e-5)

    # --- unbatched (2-D) path, also supported by the PyTorch module ---
    out2, hn2, cn2 = hindcast_lstm_block_forward(x[0], packed)
    jax.block_until_ready(out2)
    np.testing.assert_allclose(np.asarray(out2), np.asarray(ref_outs[0]), rtol=1e-4, atol=1e-5)
    np.testing.assert_allclose(np.asarray(hn2), np.asarray(ref_hns[0]), rtol=1e-4, atol=1e-5)
    np.testing.assert_allclose(np.asarray(cn2), np.asarray(ref_cns[0]), rtol=1e-4, atol=1e-5)

    # --- bf16-weight fast path (v6e/v7x MXU rate), f32 accumulation/carries ---
    packed_bf16 = pack_params(raw_layers, fc_w, fc_b, OUTPUT_SIZE, jnp.bfloat16)
    out_bf, hn_bf, cn_bf = hindcast_lstm_block_forward(x, packed_bf16)
    jax.block_until_ready(out_bf)
    np.testing.assert_allclose(np.asarray(out_bf), np.asarray(ref_out), rtol=1e-1, atol=1e-1)

    print("KERNEL_OK")
</pallas_src>

<mosaic_0001>
module attributes {stable_mosaic.version = 11 : i64} {
  func.func @kernel(%arg0: i32, %arg1: memref<1x8x16xf32, #tpu.memory_space<vmem>>, %arg2: memref<16x128xf32, #tpu.memory_space<vmem>>, %arg3: memref<32x128xf32, #tpu.memory_space<vmem>>, %arg4: memref<1x128xf32, #tpu.memory_space<vmem>>, %arg5: memref<64x128xf32, #tpu.memory_space<vmem>>, %arg6: memref<1x128xf32, #tpu.memory_space<vmem>>, %arg7: memref<32x128xf32, #tpu.memory_space<vmem>>, %arg8: memref<1x128xf32, #tpu.memory_space<vmem>>, %arg9: memref<1x8x128xf32, #tpu.memory_space<vmem>>, %arg10: memref<1x2x32xf32, #tpu.memory_space<vmem>>, %arg11: memref<1x2x32xf32, #tpu.memory_space<vmem>>, %arg12: memref<8x128xf32, #tpu.memory_space<vmem>>, %arg13: memref<8x32xf32, #tpu.memory_space<vmem>>) attributes {dimension_semantics = [#tpu.dimension_semantics<parallel>], iteration_bounds = array<i64: 2>, scalar_prefetch = 0 : i64, scratch_operands = 2 : i64, tpu.core_type = #tpu.core_type<tc>, window_params = [{transform_indices = @transform_0, window_bounds = array<i64: 1, 8, 16>}, {pipeline_mode = #tpu.pipeline_mode<synchronous>, transform_indices = @transform_1, window_bounds = array<i64: 16, 128>}, {pipeline_mode = #tpu.pipeline_mode<synchronous>, transform_indices = @transform_2, window_bounds = array<i64: 32, 128>}, {pipeline_mode = #tpu.pipeline_mode<synchronous>, transform_indices = @transform_3, window_bounds = array<i64: 1, 128>}, {pipeline_mode = #tpu.pipeline_mode<synchronous>, transform_indices = @transform_4, window_bounds = array<i64: 64, 128>}, {pipeline_mode = #tpu.pipeline_mode<synchronous>, transform_indices = @transform_5, window_bounds = array<i64: 1, 128>}, {pipeline_mode = #tpu.pipeline_mode<synchronous>, transform_indices = @transform_6, window_bounds = array<i64: 32, 128>}, {pipeline_mode = #tpu.pipeline_mode<synchronous>, transform_indices = @transform_7, window_bounds = array<i64: 1, 128>}, {transform_indices = @transform_8, window_bounds = array<i64: 1, 8, 128>}, {transform_indices = @transform_9, window_bounds = array<i64: 1, 2, 32>}, {transform_indices = @transform_10, window_bounds = array<i64: 1, 2, 32>}]} {
    %c0 = arith.constant 0 : index
    %c0_0 = arith.constant 0 : index
    %c0_1 = arith.constant 0 : index
    %0 = vector.load %arg1[%c0, %c0_0, %c0_1] : memref<1x8x16xf32, #tpu.memory_space<vmem>>, vector<1x8x16xf32>
    %1 = vector.shape_cast %0 : vector<1x8x16xf32> to vector<8x16xf32>
    %c0_2 = arith.constant 0 : index
    %c0_3 = arith.constant 0 : index
    %2 = vector.load %arg2[%c0_2, %c0_3] : memref<16x128xf32, #tpu.memory_space<vmem>>, vector<16x128xf32>
    %cst = arith.constant dense<0.000000e+00> : vector<8x128xf32>
    %3 = tpu.matmul %1, %2, %cst {dimension_numbers = #tpu.dot_dimension_numbers<[1], [0], [0], [1], [0, 0, 1, 1], [], []>} : vector<8x16xf32>, vector<16x128xf32>, vector<8x128xf32> -> vector<8x128xf32>
    %c0_4 = arith.constant 0 : index
    %c0_5 = arith.constant 0 : index
    %4 = vector.load %arg4[%c0_4, %c0_5] : memref<1x128xf32, #tpu.memory_space<vmem>>, vector<1x128xf32>
    %5 = vector.broadcast %4 : vector<1x128xf32> to vector<8x128xf32>
    %6 = arith.addf %3, %5 : vector<8x128xf32>
    %c0_6 = arith.constant 0 : index
    %c0_7 = arith.constant 0 : index
    %7 = vector.load %arg12[%c0_6, %c0_7] : memref<8x128xf32, #tpu.memory_space<vmem>>, vector<8x128xf32>
    tpu.vector_store %arg12[%c0_6, %c0_7], %6 {strides = array<i32>} : memref<8x128xf32, #tpu.memory_space<vmem>>, vector<8x128xf32>,
    %c0_8 = arith.constant 0 : index
    %c0_9 = arith.constant 0 : index
    %8 = vector.load %arg3[%c0_8, %c0_9] : memref<32x128xf32, #tpu.memory_space<vmem>>, vector<32x128xf32>
    %c0_10 = arith.constant 0 : index
    %c0_11 = arith.constant 0 : index
    %9 = vector.load %arg5[%c0_10, %c0_11] : memref<64x128xf32, #tpu.memory_space<vmem>>, vector<64x128xf32>
    %c0_12 = arith.constant 0 : index
    %c0_13 = arith.constant 0 : index
    %10 = vector.load %arg6[%c0_12, %c0_13] : memref<1x128xf32, #tpu.memory_space<vmem>>, vector<1x128xf32>
    %cst_14 = arith.constant 0.000000e+00 : f32
    %11 = vector.broadcast %cst_14 : f32 to vector<1x32xf32>
    %cst_15 = arith.constant 0.000000e+00 : f32
    %12 = vector.broadcast %cst_15 : f32 to vector<1x32xf32>
    %c0_i32 = arith.constant 0 : i32
    %c0_i32_16 = arith.constant 0 : i32
    %13 = arith.subi %c0_i32, %c0_i32_16 : i32
    %c0_i32_17 = arith.constant 0 : i32
    %14 = arith.cmpi sge, %13, %c0_i32_17 : i32
    %c8_i32 = arith.constant 8 : i32
    %15 = arith.cmpi slt, %13, %c8_i32 : i32
    %16 = arith.andi %14, %15 : i1
    %c0_i32_18 = arith.constant 0 : i32
    %c7_i32 = arith.constant 7 : i32
    %17 = arith.maxsi %c0_i32_18, %13 : i32
    %18 = arith.minsi %c7_i32, %17 : i32
    %19 = arith.index_cast %18 : i32 to index
    %c0_19 = arith.constant 0 : index
    %20 = vector.load %arg12[%19, %c0_19] : memref<8x128xf32, #tpu.memory_space<vmem>>, vector<1x128xf32>
    %cst_20 = arith.constant dense<0.000000e+00> : vector<1x128xf32>
    %21 = tpu.matmul %11, %8, %cst_20 {dimension_numbers = #tpu.dot_dimension_numbers<[1], [0], [0], [1], [0, 0, 1, 1], [], []>} : vector<1x32xf32>, vector<32x128xf32>, vector<1x128xf32> -> vector<1x128xf32>
    %22 = arith.addf %20, %21 : vector<1x128xf32>
    %23 = vector.extract_strided_slice %22 {offsets = [0, 0], sizes = [1, 32], strides = [1, 1]} : vector<1x128xf32> to vector<1x32xf32>
    %24 = arith.negf %23 : vector<1x32xf32>
    %25 = math.exp %24 : vector<1x32xf32>
    %cst_21 = arith.constant 1.000000e+00 : f32
    %26 = vector.broadcast %cst_21 : f32 to vector<1x32xf32>
    %27 = arith.addf %26, %25 : vector<1x32xf32>
    %28 = arith.divf %26, %27 : vector<1x32xf32>
    %29 = vector.extract_strided_slice %22 {offsets = [0, 32], sizes = [1, 32], strides = [1, 1]} : vector<1x128xf32> to vector<1x32xf32>
    %30 = arith.negf %29 : vector<1x32xf32>
    %31 = math.exp %30 : vector<1x32xf32>
    %cst_22 = arith.constant 1.000000e+00 : f32
    %32 = vector.broadcast %cst_22 : f32 to vector<1x32xf32>
    %33 = arith.addf %32, %31 : vector<1x32xf32>
    %34 = arith.divf %32, %33 : vector<1x32xf32>
    %35 = vector.extract_strided_slice %22 {offsets = [0, 64], sizes = [1, 32], strides = [1, 1]} : vector<1x128xf32> to vector<1x32xf32>
    %36 = math.tanh %35 : vector<1x32xf32>
    %37 = vector.extract_strided_slice %22 {offsets = [0, 96], sizes = [1, 32], strides = [1, 1]} : vector<1x128xf32> to vector<1x32xf32>
    %38 = arith.negf %37 : vector<1x32xf32>
    %39 = math.exp %38 : vector<1x32xf32>
    %cst_23 = arith.constant 1.000000e+00 : f32
    %40 = vector.broadcast %cst_23 : f32 to vector<1x32xf32>
    %41 = arith.addf %40, %39 : vector<1x32xf32>
    %42 = arith.divf %40, %41 : vector<1x32xf32>
    %43 = arith.mulf %34, %11 : vector<1x32xf32>
    %44 = arith.mulf %28, %36 : vector<1x32xf32>
    %45 = arith.addf %43, %44 : vector<1x32xf32>
    %46 = math.tanh %45 : vector<1x32xf32>
    %47 = arith.mulf %42, %46 : vector<1x32xf32>
    %48 = arith.select %16, %47, %11 : vector<1x32xf32>
    %49 = arith.select %16, %45, %11 : vector<1x32xf32>
    %c1_i32 = arith.constant 1 : i32
    %50 = arith.subi %c0_i32, %c1_i32 : i32
    %c0_i32_24 = arith.constant 0 : i32
    %51 = arith.cmpi sge, %50, %c0_i32_24 : i32
    %c8_i32_25 = arith.constant 8 : i32
    %52 = arith.cmpi slt, %50, %c8_i32_25 : i32
    %53 = arith.andi %51, %52 : i1
    %c0_i32_26 = arith.constant 0 : i32
    %c7_i32_27 = arith.constant 7 : i32
    %54 = arith.maxsi %c0_i32_26, %50 : i32
    %55 = arith.minsi %c7_i32_27, %54 : i32
    %56 = tpu.concatenate %11, %12 in 1 : vector<1x32xf32>, vector<1x32xf32> -> vector<1x64xf32>
    %cst_28 = arith.constant dense<0.000000e+00> : vector<1x128xf32>
    %57 = tpu.matmul %56, %9, %cst_28 {dimension_numbers = #tpu.dot_dimension_numbers<[1], [0], [0], [1], [0, 0, 1, 1], [], []>} : vector<1x64xf32>, vector<64x128xf32>, vector<1x128xf32> -> vector<1x128xf32>
    %58 = arith.addf %57, %10 : vector<1x128xf32>
    %59 = vector.extract_strided_slice %58 {offsets = [0, 0], sizes = [1, 32], strides = [1, 1]} : vector<1x128xf32> to vector<1x32xf32>
    %60 = arith.negf %59 : vector<1x32xf32>
    %61 = math.exp %60 : vector<1x32xf32>
    %cst_29 = arith.constant 1.000000e+00 : f32
    %62 = vector.broadcast %cst_29 : f32 to vector<1x32xf32>
    %63 = arith.addf %62, %61 : vector<1x32xf32>
    %64 = arith.divf %62, %63 : vector<1x32xf32>
    %65 = vector.extract_strided_slice %58 {offsets = [0, 32], sizes = [1, 32], strides = [1, 1]} : vector<1x128xf32> to vector<1x32xf32>
    %66 = arith.negf %65 : vector<1x32xf32>
    %67 = math.exp %66 : vector<1x32xf32>
    %cst_30 = arith.constant 1.000000e+00 : f32
    %68 = vector.broadcast %cst_30 : f32 to vector<1x32xf32>
    %69 = arith.addf %68, %67 : vector<1x32xf32>
    %70 = arith.divf %68, %69 : vector<1x32xf32>
    %71 = vector.extract_strided_slice %58 {offsets = [0, 64], sizes = [1, 32], strides = [1, 1]} : vector<1x128xf32> to vector<1x32xf32>
    %72 = math.tanh %71 : vector<1x32xf32>
    %73 = vector.extract_strided_slice %58 {offsets = [0, 96], sizes = [1, 32], strides = [1, 1]} : vector<1x128xf32> to vector<1x32xf32>
    %74 = arith.negf %73 : vector<1x32xf32>
    %75 = math.exp %74 : vector<1x32xf32>
    %cst_31 = arith.constant 1.000000e+00 : f32
    %76 = vector.broadcast %cst_31 : f32 to vector<1x32xf32>
    %77 = arith.addf %76, %75 : vector<1x32xf32>
    %78 = arith.divf %76, %77 : vector<1x32xf32>
    %79 = arith.mulf %70, %12 : vector<1x32xf32>
    %80 = arith.mulf %64, %72 : vector<1x32xf32>
    %81 = arith.addf %79, %80 : vector<1x32xf32>
    %82 = math.tanh %81 : vector<1x32xf32>
    %83 = arith.mulf %78, %82 : vector<1x32xf32>
    %84 = arith.index_cast %55 : i32 to index
    %c0_32 = arith.constant 0 : index
    %85 = vector.load %arg13[%84, %c0_32] : memref<8x32xf32, #tpu.memory_space<vmem>>, vector<1x32xf32>
    tpu.vector_store %arg13[%84, %c0_32], %83 {strides = array<i32>} : memref<8x32xf32, #tpu.memory_space<vmem>>, vector<1x32xf32>,
    %86 = arith.select %53, %83, %12 : vector<1x32xf32>
    %87 = arith.select %53, %81, %12 : vector<1x32xf32>
    %c1_i32_33 = arith.constant 1 : i32
    %c0_i32_34 = arith.constant 0 : i32
    %88 = arith.subi %c1_i32_33, %c0_i32_34 : i32
    %c0_i32_35 = arith.constant 0 : i32
    %89 = arith.cmpi sge, %88, %c0_i32_35 : i32
    %c8_i32_36 = arith.constant 8 : i32
    %90 = arith.cmpi slt, %88, %c8_i32_36 : i32
    %91 = arith.andi %89, %90 : i1
    %c0_i32_37 = arith.constant 0 : i32
    %c7_i32_38 = arith.constant 7 : i32
    %92 = arith.maxsi %c0_i32_37, %88 : i32
    %93 = arith.minsi %c7_i32_38, %92 : i32
    %94 = arith.index_cast %93 : i32 to index
    %c0_39 = arith.constant 0 : index
    %95 = vector.load %arg12[%94, %c0_39] : memref<8x128xf32, #tpu.memory_space<vmem>>, vector<1x128xf32>
    %cst_40 = arith.constant dense<0.000000e+00> : vector<1x128xf32>
    %96 = tpu.matmul %48, %8, %cst_40 {dimension_numbers = #tpu.dot_dimension_numbers<[1], [0], [0], [1], [0, 0, 1, 1], [], []>} : vector<1x32xf32>, vector<32x128xf32>, vector<1x128xf32> -> vector<1x128xf32>
    %97 = arith.addf %95, %96 : vector<1x128xf32>
    %98 = vector.extract_strided_slice %97 {offsets = [0, 0], sizes = [1, 32], strides = [1, 1]} : vector<1x128xf32> to vector<1x32xf32>
    %99 = arith.negf %98 : vector<1x32xf32>
    %100 = math.exp %99 : vector<1x32xf32>
    %cst_41 = arith.constant 1.000000e+00 : f32
    %101 = vector.broadcast %cst_41 : f32 to vector<1x32xf32>
    %102 = arith.addf %101, %100 : vector<1x32xf32>
    %103 = arith.divf %101, %102 : vector<1x32xf32>
    %104 = vector.extract_strided_slice %97 {offsets = [0, 32], sizes = [1, 32], strides = [1, 1]} : vector<1x128xf32> to vector<1x32xf32>
    %105 = arith.negf %104 : vector<1x32xf32>
    %106 = math.exp %105 : vector<1x32xf32>
    %cst_42 = arith.constant 1.000000e+00 : f32
    %107 = vector.broadcast %cst_42 : f32 to vector<1x32xf32>
    %108 = arith.addf %107, %106 : vector<1x32xf32>
    %109 = arith.divf %107, %108 : vector<1x32xf32>
    %110 = vector.extract_strided_slice %97 {offsets = [0, 64], sizes = [1, 32], strides = [1, 1]} : vector<1x128xf32> to vector<1x32xf32>
    %111 = math.tanh %110 : vector<1x32xf32>
    %112 = vector.extract_strided_slice %97 {offsets = [0, 96], sizes = [1, 32], strides = [1, 1]} : vector<1x128xf32> to vector<1x32xf32>
    %113 = arith.negf %112 : vector<1x32xf32>
    %114 = math.exp %113 : vector<1x32xf32>
    %cst_43 = arith.constant 1.000000e+00 : f32
    %115 = vector.broadcast %cst_43 : f32 to vector<1x32xf32>
    %116 = arith.addf %115, %114 : vector<1x32xf32>
    %117 = arith.divf %115, %116 : vector<1x32xf32>
    %118 = arith.mulf %109, %49 : vector<1x32xf32>
    %119 = arith.mulf %103, %111 : vector<1x32xf32>
    %120 = arith.addf %118, %119 : vector<1x32xf32>
    %121 = math.tanh %120 : vector<1x32xf32>
    %122 = arith.mulf %117, %121 : vector<1x32xf32>
    %123 = arith.select %91, %122, %48 : vector<1x32xf32>
    %124 = arith.select %91, %120, %49 : vector<1x32xf32>
    %c1_i32_44 = arith.constant 1 : i32
    %125 = arith.subi %c1_i32_33, %c1_i32_44 : i32
    %c0_i32_45 = arith.constant 0 : i32
    %126 = arith.cmpi sge, %125, %c0_i32_45 : i32
    %c8_i32_46 = arith.constant 8 : i32
    %127 = arith.cmpi slt, %125, %c8_i32_46 : i32
    %128 = arith.andi %126, %127 : i1
    %c0_i32_47 = arith.constant 0 : i32
    %c7_i32_48 = arith.constant 7 : i32
    %129 = arith.maxsi %c0_i32_47, %125 : i32
    %130 = arith.minsi %c7_i32_48, %129 : i32
    %131 = tpu.concatenate %48, %86 in 1 : vector<1x32xf32>, vector<1x32xf32> -> vector<1x64xf32>
    %cst_49 = arith.constant dense<0.000000e+00> : vector<1x128xf32>
    %132 = tpu.matmul %131, %9, %cst_49 {dimension_numbers = #tpu.dot_dimension_numbers<[1], [0], [0], [1], [0, 0, 1, 1], [], []>} : vector<1x64xf32>, vector<64x128xf32>, vector<1x128xf32> -> vector<1x128xf32>
    %133 = arith.addf %132, %10 : vector<1x128xf32>
    %134 = vector.extract_strided_slice %133 {offsets = [0, 0], sizes = [1, 32], strides = [1, 1]} : vector<1x128xf32> to vector<1x32xf32>
    %135 = arith.negf %134 : vector<1x32xf32>
    %136 = math.exp %135 : vector<1x32xf32>
    %cst_50 = arith.constant 1.000000e+00 : f32
    %137 = vector.broadcast %cst_50 : f32 to vector<1x32xf32>
    %138 = arith.addf %137, %136 : vector<1x32xf32>
    %139 = arith.divf %137, %138 : vector<1x32xf32>
    %140 = vector.extract_strided_slice %133 {offsets = [0, 32], sizes = [1, 32], strides = [1, 1]} : vector<1x128xf32> to vector<1x32xf32>
    %141 = arith.negf %140 : vector<1x32xf32>
    %142 = math.exp %141 : vector<1x32xf32>
    %cst_51 = arith.constant 1.000000e+00 : f32
    %143 = vector.broadcast %cst_51 : f32 to vector<1x32xf32>
    %144 = arith.addf %143, %142 : vector<1x32xf32>
    %145 = arith.divf %143, %144 : vector<1x32xf32>
    %146 = vector.extract_strided_slice %133 {offsets = [0, 64], sizes = [1, 32], strides = [1, 1]} : vector<1x128xf32> to vector<1x32xf32>
    %147 = math.tanh %146 : vector<1x32xf32>
    %148 = vector.extract_strided_slice %133 {offsets = [0, 96], sizes = [1, 32], strides = [1, 1]} : vector<1x128xf32> to vector<1x32xf32>
    %149 = arith.negf %148 : vector<1x32xf32>
    %150 = math.exp %149 : vector<1x32xf32>
    %cst_52 = arith.constant 1.000000e+00 : f32
    %151 = vector.broadcast %cst_52 : f32 to vector<1x32xf32>
    %152 = arith.addf %151, %150 : vector<1x32xf32>
    %153 = arith.divf %151, %152 : vector<1x32xf32>
    %154 = arith.mulf %145, %87 : vector<1x32xf32>
    %155 = arith.mulf %139, %147 : vector<1x32xf32>
    %156 = arith.addf %154, %155 : vector<1x32xf32>
    %157 = math.tanh %156 : vector<1x32xf32>
    %158 = arith.mulf %153, %157 : vector<1x32xf32>
    %159 = arith.index_cast %130 : i32 to index
    %c0_53 = arith.constant 0 : index
    %160 = vector.load %arg13[%159, %c0_53] : memref<8x32xf32, #tpu.memory_space<vmem>>, vector<1x32xf32>
    tpu.vector_store %arg13[%159, %c0_53], %158 {strides = array<i32>} : memref<8x32xf32, #tpu.memory_space<vmem>>, vector<1x32xf32>,
    %161 = arith.select %128, %158, %86 : vector<1x32xf32>
    %162 = arith.select %128, %156, %87 : vector<1x32xf32>
    %c2_i32 = arith.constant 2 : i32
    %c0_i32_54 = arith.constant 0 : i32
    %163 = arith.subi %c2_i32, %c0_i32_54 : i32
    %c0_i32_55 = arith.constant 0 : i32
    %164 = arith.cmpi sge, %163, %c0_i32_55 : i32
    %c8_i32_56 = arith.constant 8 : i32
    %165 = arith.cmpi slt, %163, %c8_i32_56 : i32
    %166 = arith.andi %164, %165 : i1
    %c0_i32_57 = arith.constant 0 : i32
    %c7_i32_58 = arith.constant 7 : i32
    %167 = arith.maxsi %c0_i32_57, %163 : i32
    %168 = arith.minsi %c7_i32_58, %167 : i32
    %169 = arith.index_cast %168 : i32 to index
    %c0_59 = arith.constant 0 : index
    %170 = vector.load %arg12[%169, %c0_59] : memref<8x128xf32, #tpu.memory_space<vmem>>, vector<1x128xf32>
    %cst_60 = arith.constant dense<0.000000e+00> : vector<1x128xf32>
    %171 = tpu.matmul %123, %8, %cst_60 {dimension_numbers = #tpu.dot_dimension_numbers<[1], [0], [0], [1], [0, 0, 1, 1], [], []>} : vector<1x32xf32>, vector<32x128xf32>, vector<1x128xf32> -> vector<1x128xf32>
    %172 = arith.addf %170, %171 : vector<1x128xf32>
    %173 = vector.extract_strided_slice %172 {offsets = [0, 0], sizes = [1, 32], strides = [1, 1]} : vector<1x128xf32> to vector<1x32xf32>
    %174 = arith.negf %173 : vector<1x32xf32>
    %175 = math.exp %174 : vector<1x32xf32>
    %cst_61 = arith.constant 1.000000e+00 : f32
    %176 = vector.broadcast %cst_61 : f32 to vector<1x32xf32>
    %177 = arith.addf %176, %175 : vector<1x32xf32>
    %178 = arith.divf %176, %177 : vector<1x32xf32>
    %179 = vector.extract_strided_slice %172 {offsets = [0, 32], sizes = [1, 32], strides = [1, 1]} : vector<1x128xf32> to vector<1x32xf32>
    %180 = arith.negf %179 : vector<1x32xf32>
    %181 = math.exp %180 : vector<1x32xf32>
    %cst_62 = arith.constant 1.000000e+00 : f32
    %182 = vector.broadcast %cst_62 : f32 to vector<1x32xf32>
    %183 = arith.addf %182, %181 : vector<1x32xf32>
    %184 = arith.divf %182, %183 : vector<1x32xf32>
    %185 = vector.extract_strided_slice %172 {offsets = [0, 64], sizes = [1, 32], strides = [1, 1]} : vector<1x128xf32> to vector<1x32xf32>
    %186 = math.tanh %185 : vector<1x32xf32>
    %187 = vector.extract_strided_slice %172 {offsets = [0, 96], sizes = [1, 32], strides = [1, 1]} : vector<1x128xf32> to vector<1x32xf32>
    %188 = arith.negf %187 : vector<1x32xf32>
    %189 = math.exp %188 : vector<1x32xf32>
    %cst_63 = arith.constant 1.000000e+00 : f32
    %190 = vector.broadcast %cst_63 : f32 to vector<1x32xf32>
    %191 = arith.addf %190, %189 : vector<1x32xf32>
    %192 = arith.divf %190, %191 : vector<1x32xf32>
    %193 = arith.mulf %184, %124 : vector<1x32xf32>
    %194 = arith.mulf %178, %186 : vector<1x32xf32>
    %195 = arith.addf %193, %194 : vector<1x32xf32>
    %196 = math.tanh %195 : vector<1x32xf32>
    %197 = arith.mulf %192, %196 : vector<1x32xf32>
    %198 = arith.select %166, %197, %123 : vector<1x32xf32>
    %199 = arith.select %166, %195, %124 : vector<1x32xf32>
    %c1_i32_64 = arith.constant 1 : i32
    %200 = arith.subi %c2_i32, %c1_i32_64 : i32
    %c0_i32_65 = arith.constant 0 : i32
    %201 = arith.cmpi sge, %200, %c0_i32_65 : i32
    %c8_i32_66 = arith.constant 8 : i32
    %202 = arith.cmpi slt, %200, %c8_i32_66 : i32
    %203 = arith.andi %201, %202 : i1
    %c0_i32_67 = arith.constant 0 : i32
    %c7_i32_68 = arith.constant 7 : i32
    %204 = arith.maxsi %c0_i32_67, %200 : i32
    %205 = arith.minsi %c7_i32_68, %204 : i32
    %206 = tpu.concatenate %123, %161 in 1 : vector<1x32xf32>, vector<1x32xf32> -> vector<1x64xf32>
    %cst_69 = arith.constant dense<0.000000e+00> : vector<1x128xf32>
    %207 = tpu.matmul %206, %9, %cst_69 {dimension_numbers = #tpu.dot_dimension_numbers<[1], [0], [0], [1], [0, 0, 1, 1], [], []>} : vector<1x64xf32>, vector<64x128xf32>, vector<1x128xf32> -> vector<1x128xf32>
    %208 = arith.addf %207, %10 : vector<1x128xf32>
    %209 = vector.extract_strided_slice %208 {offsets = [0, 0], sizes = [1, 32], strides = [1, 1]} : vector<1x128xf32> to vector<1x32xf32>
    %210 = arith.negf %209 : vector<1x32xf32>
    %211 = math.exp %210 : vector<1x32xf32>
    %cst_70 = arith.constant 1.000000e+00 : f32
    %212 = vector.broadcast %cst_70 : f32 to vector<1x32xf32>
    %213 = arith.addf %212, %211 : vector<1x32xf32>
    %214 = arith.divf %212, %213 : vector<1x32xf32>
    %215 = vector.extract_strided_slice %208 {offsets = [0, 32], sizes = [1, 32], strides = [1, 1]} : vector<1x128xf32> to vector<1x32xf32>
    %216 = arith.negf %215 : vector<1x32xf32>
    %217 = math.exp %216 : vector<1x32xf32>
    %cst_71 = arith.constant 1.000000e+00 : f32
    %218 = vector.broadcast %cst_71 : f32 to vector<1x32xf32>
    %219 = arith.addf %218, %217 : vector<1x32xf32>
    %220 = arith.divf %218, %219 : vector<1x32xf32>
    %221 = vector.extract_strided_slice %208 {offsets = [0, 64], sizes = [1, 32], strides = [1, 1]} : vector<1x128xf32> to vector<1x32xf32>
    %222 = math.tanh %221 : vector<1x32xf32>
    %223 = vector.extract_strided_slice %208 {offsets = [0, 96], sizes = [1, 32], strides = [1, 1]} : vector<1x128xf32> to vector<1x32xf32>
    %224 = arith.negf %223 : vector<1x32xf32>
    %225 = math.exp %224 : vector<1x32xf32>
    %cst_72 = arith.constant 1.000000e+00 : f32
    %226 = vector.broadcast %cst_72 : f32 to vector<1x32xf32>
    %227 = arith.addf %226, %225 : vector<1x32xf32>
    %228 = arith.divf %226, %227 : vector<1x32xf32>
    %229 = arith.mulf %220, %162 : vector<1x32xf32>
    %230 = arith.mulf %214, %222 : vector<1x32xf32>
    %231 = arith.addf %229, %230 : vector<1x32xf32>
    %232 = math.tanh %231 : vector<1x32xf32>
    %233 = arith.mulf %228, %232 : vector<1x32xf32>
    %234 = arith.index_cast %205 : i32 to index
    %c0_73 = arith.constant 0 : index
    %235 = vector.load %arg13[%234, %c0_73] : memref<8x32xf32, #tpu.memory_space<vmem>>, vector<1x32xf32>
    tpu.vector_store %arg13[%234, %c0_73], %233 {strides = array<i32>} : memref<8x32xf32, #tpu.memory_space<vmem>>, vector<1x32xf32>,
    %236 = arith.select %203, %233, %161 : vector<1x32xf32>
    %237 = arith.select %203, %231, %162 : vector<1x32xf32>
    %c3_i32 = arith.constant 3 : i32
    %c0_i32_74 = arith.constant 0 : i32
    %238 = arith.subi %c3_i32, %c0_i32_74 : i32
    %c0_i32_75 = arith.constant 0 : i32
    %239 = arith.cmpi sge, %238, %c0_i32_75 : i32
    %c8_i32_76 = arith.constant 8 : i32
    %240 = arith.cmpi slt, %238, %c8_i32_76 : i32
    %241 = arith.andi %239, %240 : i1
    %c0_i32_77 = arith.constant 0 : i32
    %c7_i32_78 = arith.constant 7 : i32
    %242 = arith.maxsi %c0_i32_77, %238 : i32
    %243 = arith.minsi %c7_i32_78, %242 : i32
    %244 = arith.index_cast %243 : i32 to index
    %c0_79 = arith.constant 0 : index
    %245 = vector.load %arg12[%244, %c0_79] : memref<8x128xf32, #tpu.memory_space<vmem>>, vector<1x128xf32>
    %cst_80 = arith.constant dense<0.000000e+00> : vector<1x128xf32>
    %246 = tpu.matmul %198, %8, %cst_80 {dimension_numbers = #tpu.dot_dimension_numbers<[1], [0], [0], [1], [0, 0, 1, 1], [], []>} : vector<1x32xf32>, vector<32x128xf32>, vector<1x128xf32> -> vector<1x128xf32>
    %247 = arith.addf %245, %246 : vector<1x128xf32>
    %248 = vector.extract_strided_slice %247 {offsets = [0, 0], sizes = [1, 32], strides = [1, 1]} : vector<1x128xf32> to vector<1x32xf32>
    %249 = arith.negf %248 : vector<1x32xf32>
    %250 = math.exp %249 : vector<1x32xf32>
    %cst_81 = arith.constant 1.000000e+00 : f32
    %251 = vector.broadcast %cst_81 : f32 to vector<1x32xf32>
    %252 = arith.addf %251, %250 : vector<1x32xf32>
    %253 = arith.divf %251, %252 : vector<1x32xf32>
    %254 = vector.extract_strided_slice %247 {offsets = [0, 32], sizes = [1, 32], strides = [1, 1]} : vector<1x128xf32> to vector<1x32xf32>
    %255 = arith.negf %254 : vector<1x32xf32>
    %256 = math.exp %255 : vector<1x32xf32>
    %cst_82 = arith.constant 1.000000e+00 : f32
    %257 = vector.broadcast %cst_82 : f32 to vector<1x32xf32>
    %258 = arith.addf %257, %256 : vector<1x32xf32>
    %259 = arith.divf %257, %258 : vector<1x32xf32>
    %260 = vector.extract_strided_slice %247 {offsets = [0, 64], sizes = [1, 32], strides = [1, 1]} : vector<1x128xf32> to vector<1x32xf32>
    %261 = math.tanh %260 : vector<1x32xf32>
    %262 = vector.extract_strided_slice %247 {offsets = [0, 96], sizes = [1, 32], strides = [1, 1]} : vector<1x128xf32> to vector<1x32xf32>
    %263 = arith.negf %262 : vector<1x32xf32>
    %264 = math.exp %263 : vector<1x32xf32>
    %cst_83 = arith.constant 1.000000e+00 : f32
    %265 = vector.broadcast %cst_83 : f32 to vector<1x32xf32>
    %266 = arith.addf %265, %264 : vector<1x32xf32>
    %267 = arith.divf %265, %266 : vector<1x32xf32>
    %268 = arith.mulf %259, %199 : vector<1x32xf32>
    %269 = arith.mulf %253, %261 : vector<1x32xf32>
    %270 = arith.addf %268, %269 : vector<1x32xf32>
    %271 = math.tanh %270 : vector<1x32xf32>
    %272 = arith.mulf %267, %271 : vector<1x32xf32>
    %273 = arith.select %241, %272, %198 : vector<1x32xf32>
    %274 = arith.select %241, %270, %199 : vector<1x32xf32>
    %c1_i32_84 = arith.constant 1 : i32
    %275 = arith.subi %c3_i32, %c1_i32_84 : i32
    %c0_i32_85 = arith.constant 0 : i32
    %276 = arith.cmpi sge, %275, %c0_i32_85 : i32
    %c8_i32_86 = arith.constant 8 : i32
    %277 = arith.cmpi slt, %275, %c8_i32_86 : i32
    %278 = arith.andi %276, %277 : i1
    %c0_i32_87 = arith.constant 0 : i32
    %c7_i32_88 = arith.constant 7 : i32
    %279 = arith.maxsi %c0_i32_87, %275 : i32
    %280 = arith.minsi %c7_i32_88, %279 : i32
    %281 = tpu.concatenate %198, %236 in 1 : vector<1x32xf32>, vector<1x32xf32> -> vector<1x64xf32>
    %cst_89 = arith.constant dense<0.000000e+00> : vector<1x128xf32>
    %282 = tpu.matmul %281, %9, %cst_89 {dimension_numbers = #tpu.dot_dimension_numbers<[1], [0], [0], [1], [0, 0, 1, 1], [], []>} : vector<1x64xf32>, vector<64x128xf32>, vector<1x128xf32> -> vector<1x128xf32>
    %283 = arith.addf %282, %10 : vector<1x128xf32>
    %284 = vector.extract_strided_slice %283 {offsets = [0, 0], sizes = [1, 32], strides = [1, 1]} : vector<1x128xf32> to vector<1x32xf32>
    %285 = arith.negf %284 : vector<1x32xf32>
    %286 = math.exp %285 : vector<1x32xf32>
    %cst_90 = arith.constant 1.000000e+00 : f32
    %287 = vector.broadcast %cst_90 : f32 to vector<1x32xf32>
    %288 = arith.addf %287, %286 : vector<1x32xf32>
    %289 = arith.divf %287, %288 : vector<1x32xf32>
    %290 = vector.extract_strided_slice %283 {offsets = [0, 32], sizes = [1, 32], strides = [1, 1]} : vector<1x128xf32> to vector<1x32xf32>
    %291 = arith.negf %290 : vector<1x32xf32>
    %292 = math.exp %291 : vector<1x32xf32>
    %cst_91 = arith.constant 1.000000e+00 : f32
    %293 = vector.broadcast %cst_91 : f32 to vector<1x32xf32>
    %294 = arith.addf %293, %292 : vector<1x32xf32>
    %295 = arith.divf %293, %294 : vector<1x32xf32>
    %296 = vector.extract_strided_slice %283 {offsets = [0, 64], sizes = [1, 32], strides = [1, 1]} : vector<1x128xf32> to vector<1x32xf32>
    %297 = math.tanh %296 : vector<1x32xf32>
    %298 = vector.extract_strided_slice %283 {offsets = [0, 96], sizes = [1, 32], strides = [1, 1]} : vector<1x128xf32> to vector<1x32xf32>
    %299 = arith.negf %298 : vector<1x32xf32>
    %300 = math.exp %299 : vector<1x32xf32>
    %cst_92 = arith.constant 1.000000e+00 : f32
    %301 = vector.broadcast %cst_92 : f32 to vector<1x32xf32>
    %302 = arith.addf %301, %300 : vector<1x32xf32>
    %303 = arith.divf %301, %302 : vector<1x32xf32>
    %304 = arith.mulf %295, %237 : vector<1x32xf32>
    %305 = arith.mulf %289, %297 : vector<1x32xf32>
    %306 = arith.addf %304, %305 : vector<1x32xf32>
    %307 = math.tanh %306 : vector<1x32xf32>
    %308 = arith.mulf %303, %307 : vector<1x32xf32>
    %309 = arith.index_cast %280 : i32 to index
    %c0_93 = arith.constant 0 : index
    %310 = vector.load %arg13[%309, %c0_93] : memref<8x32xf32, #tpu.memory_space<vmem>>, vector<1x32xf32>
    tpu.vector_store %arg13[%309, %c0_93], %308 {strides = array<i32>} : memref<8x32xf32, #tpu.memory_space<vmem>>, vector<1x32xf32>,
    %311 = arith.select %278, %308, %236 : vector<1x32xf32>
    %312 = arith.select %278, %306, %237 : vector<1x32xf32>
    %c4_i32 = arith.constant 4 : i32
    %c0_i32_94 = arith.constant 0 : i32
    %313 = arith.subi %c4_i32, %c0_i32_94 : i32
    %c0_i32_95 = arith.constant 0 : i32
    %314 = arith.cmpi sge, %313, %c0_i32_95 : i32
    %c8_i32_96 = arith.constant 8 : i32
    %315 = arith.cmpi slt, %313, %c8_i32_96 : i32
    %316 = arith.andi %314, %315 : i1
    %c0_i32_97 = arith.constant 0 : i32
    %c7_i32_98 = arith.constant 7 : i32
    %317 = arith.maxsi %c0_i32_97, %313 : i32
    %318 = arith.minsi %c7_i32_98, %317 : i32
    %319 = arith.index_cast %318 : i32 to index
    %c0_99 = arith.constant 0 : index
    %320 = vector.load %arg12[%319, %c0_99] : memref<8x128xf32, #tpu.memory_space<vmem>>, vector<1x128xf32>
    %cst_100 = arith.constant dense<0.000000e+00> : vector<1x128xf32>
    %321 = tpu.matmul %273, %8, %cst_100 {dimension_numbers = #tpu.dot_dimension_numbers<[1], [0], [0], [1], [0, 0, 1, 1], [], []>} : vector<1x32xf32>, vector<32x128xf32>, vector<1x128xf32> -> vector<1x128xf32>
    %322 = arith.addf %320, %321 : vector<1x128xf32>
    %323 = vector.extract_strided_slice %322 {offsets = [0, 0], sizes = [1, 32], strides = [1, 1]} : vector<1x128xf32> to vector<1x32xf32>
    %324 = arith.negf %323 : vector<1x32xf32>
    %325 = math.exp %324 : vector<1x32xf32>
    %cst_101 = arith.constant 1.000000e+00 : f32
    %326 = vector.broadcast %cst_101 : f32 to vector<1x32xf32>
    %327 = arith.addf %326, %325 : vector<1x32xf32>
    %328 = arith.divf %326, %327 : vector<1x32xf32>
    %329 = vector.extract_strided_slice %322 {offsets = [0, 32], sizes = [1, 32], strides = [1, 1]} : vector<1x128xf32> to vector<1x32xf32>
    %330 = arith.negf %329 : vector<1x32xf32>
    %331 = math.exp %330 : vector<1x32xf32>
    %cst_102 = arith.constant 1.000000e+00 : f32
    %332 = vector.broadcast %cst_102 : f32 to vector<1x32xf32>
    %333 = arith.addf %332, %331 : vector<1x32xf32>
    %334 = arith.divf %332, %333 : vector<1x32xf32>
    %335 = vector.extract_strided_slice %322 {offsets = [0, 64], sizes = [1, 32], strides = [1, 1]} : vector<1x128xf32> to vector<1x32xf32>
    %336 = math.tanh %335 : vector<1x32xf32>
    %337 = vector.extract_strided_slice %322 {offsets = [0, 96], sizes = [1, 32], strides = [1, 1]} : vector<1x128xf32> to vector<1x32xf32>
    %338 = arith.negf %337 : vector<1x32xf32>
    %339 = math.exp %338 : vector<1x32xf32>
    %cst_103 = arith.constant 1.000000e+00 : f32
    %340 = vector.broadcast %cst_103 : f32 to vector<1x32xf32>
    %341 = arith.addf %340, %339 : vector<1x32xf32>
    %342 = arith.divf %340, %341 : vector<1x32xf32>
    %343 = arith.mulf %334, %274 : vector<1x32xf32>
    %344 = arith.mulf %328, %336 : vector<1x32xf32>
    %345 = arith.addf %343, %344 : vector<1x32xf32>
    %346 = math.tanh %345 : vector<1x32xf32>
    %347 = arith.mulf %342, %346 : vector<1x32xf32>
    %348 = arith.select %316, %347, %273 : vector<1x32xf32>
    %349 = arith.select %316, %345, %274 : vector<1x32xf32>
    %c1_i32_104 = arith.constant 1 : i32
    %350 = arith.subi %c4_i32, %c1_i32_104 : i32
    %c0_i32_105 = arith.constant 0 : i32
    %351 = arith.cmpi sge, %350, %c0_i32_105 : i32
    %c8_i32_106 = arith.constant 8 : i32
    %352 = arith.cmpi slt, %350, %c8_i32_106 : i32
    %353 = arith.andi %351, %352 : i1
    %c0_i32_107 = arith.constant 0 : i32
    %c7_i32_108 = arith.constant 7 : i32
    %354 = arith.maxsi %c0_i32_107, %350 : i32
    %355 = arith.minsi %c7_i32_108, %354 : i32
    %356 = tpu.concatenate %273, %311 in 1 : vector<1x32xf32>, vector<1x32xf32> -> vector<1x64xf32>
    %cst_109 = arith.constant dense<0.000000e+00> : vector<1x128xf32>
    %357 = tpu.matmul %356, %9, %cst_109 {dimension_numbers = #tpu.dot_dimension_numbers<[1], [0], [0], [1], [0, 0, 1, 1], [], []>} : vector<1x64xf32>, vector<64x128xf32>, vector<1x128xf32> -> vector<1x128xf32>
    %358 = arith.addf %357, %10 : vector<1x128xf32>
    %359 = vector.extract_strided_slice %358 {offsets = [0, 0], sizes = [1, 32], strides = [1, 1]} : vector<1x128xf32> to vector<1x32xf32>
    %360 = arith.negf %359 : vector<1x32xf32>
    %361 = math.exp %360 : vector<1x32xf32>
    %cst_110 = arith.constant 1.000000e+00 : f32
    %362 = vector.broadcast %cst_110 : f32 to vector<1x32xf32>
    %363 = arith.addf %362, %361 : vector<1x32xf32>
    %364 = arith.divf %362, %363 : vector<1x32xf32>
    %365 = vector.extract_strided_slice %358 {offsets = [0, 32], sizes = [1, 32], strides = [1, 1]} : vector<1x128xf32> to vector<1x32xf32>
    %366 = arith.negf %365 : vector<1x32xf32>
    %367 = math.exp %366 : vector<1x32xf32>
    %cst_111 = arith.constant 1.000000e+00 : f32
    %368 = vector.broadcast %cst_111 : f32 to vector<1x32xf32>
    %369 = arith.addf %368, %367 : vector<1x32xf32>
    %370 = arith.divf %368, %369 : vector<1x32xf32>
    %371 = vector.extract_strided_slice %358 {offsets = [0, 64], sizes = [1, 32], strides = [1, 1]} : vector<1x128xf32> to vector<1x32xf32>
    %372 = math.tanh %371 : vector<1x32xf32>
    %373 = vector.extract_strided_slice %358 {offsets = [0, 96], sizes = [1, 32], strides = [1, 1]} : vector<1x128xf32> to vector<1x32xf32>
    %374 = arith.negf %373 : vector<1x32xf32>
    %375 = math.exp %374 : vector<1x32xf32>
    %cst_112 = arith.constant 1.000000e+00 : f32
    %376 = vector.broadcast %cst_112 : f32 to vector<1x32xf32>
    %377 = arith.addf %376, %375 : vector<1x32xf32>
    %378 = arith.divf %376, %377 : vector<1x32xf32>
    %379 = arith.mulf %370, %312 : vector<1x32xf32>
    %380 = arith.mulf %364, %372 : vector<1x32xf32>
    %381 = arith.addf %379, %380 : vector<1x32xf32>
    %382 = math.tanh %381 : vector<1x32xf32>
    %383 = arith.mulf %378, %382 : vector<1x32xf32>
    %384 = arith.index_cast %355 : i32 to index
    %c0_113 = arith.constant 0 : index
    %385 = vector.load %arg13[%384, %c0_113] : memref<8x32xf32, #tpu.memory_space<vmem>>, vector<1x32xf32>
    tpu.vector_store %arg13[%384, %c0_113], %383 {strides = array<i32>} : memref<8x32xf32, #tpu.memory_space<vmem>>, vector<1x32xf32>,
    %386 = arith.select %353, %383, %311 : vector<1x32xf32>
    %387 = arith.select %353, %381, %312 : vector<1x32xf32>
    %c5_i32 = arith.constant 5 : i32
    %c0_i32_114 = arith.constant 0 : i32
    %388 = arith.subi %c5_i32, %c0_i32_114 : i32
    %c0_i32_115 = arith.constant 0 : i32
    %389 = arith.cmpi sge, %388, %c0_i32_115 : i32
    %c8_i32_116 = arith.constant 8 : i32
    %390 = arith.cmpi slt, %388, %c8_i32_116 : i32
    %391 = arith.andi %389, %390 : i1
    %c0_i32_117 = arith.constant 0 : i32
    %c7_i32_118 = arith.constant 7 : i32
    %392 = arith.maxsi %c0_i32_117, %388 : i32
    %393 = arith.minsi %c7_i32_118, %392 : i32
    %394 = arith.index_cast %393 : i32 to index
    %c0_119 = arith.constant 0 : index
    %395 = vector.load %arg12[%394, %c0_119] : memref<8x128xf32, #tpu.memory_space<vmem>>, vector<1x128xf32>
    %cst_120 = arith.constant dense<0.000000e+00> : vector<1x128xf32>
    %396 = tpu.matmul %348, %8, %cst_120 {dimension_numbers = #tpu.dot_dimension_numbers<[1], [0], [0], [1], [0, 0, 1, 1], [], []>} : vector<1x32xf32>, vector<32x128xf32>, vector<1x128xf32> -> vector<1x128xf32>
    %397 = arith.addf %395, %396 : vector<1x128xf32>
    %398 = vector.extract_strided_slice %397 {offsets = [0, 0], sizes = [1, 32], strides = [1, 1]} : vector<1x128xf32> to vector<1x32xf32>
    %399 = arith.negf %398 : vector<1x32xf32>
    %400 = math.exp %399 : vector<1x32xf32>
    %cst_121 = arith.constant 1.000000e+00 : f32
    %401 = vector.broadcast %cst_121 : f32 to vector<1x32xf32>
    %402 = arith.addf %401, %400 : vector<1x32xf32>
    %403 = arith.divf %401, %402 : vector<1x32xf32>
    %404 = vector.extract_strided_slice %397 {offsets = [0, 32], sizes = [1, 32], strides = [1, 1]} : vector<1x128xf32> to vector<1x32xf32>
    %405 = arith.negf %404 : vector<1x32xf32>
    %406 = math.exp %405 : vector<1x32xf32>
    %cst_122 = arith.constant 1.000000e+00 : f32
    %407 = vector.broadcast %cst_122 : f32 to vector<1x32xf32>
    %408 = arith.addf %407, %406 : vector<1x32xf32>
    %409 = arith.divf %407, %408 : vector<1x32xf32>
    %410 = vector.extract_strided_slice %397 {offsets = [0, 64], sizes = [1, 32], strides = [1, 1]} : vector<1x128xf32> to vector<1x32xf32>
    %411 = math.tanh %410 : vector<1x32xf32>
    %412 = vector.extract_strided_slice %397 {offsets = [0, 96], sizes = [1, 32], strides = [1, 1]} : vector<1x128xf32> to vector<1x32xf32>
    %413 = arith.negf %412 : vector<1x32xf32>
    %414 = math.exp %413 : vector<1x32xf32>
    %cst_123 = arith.constant 1.000000e+00 : f32
    %415 = vector.broadcast %cst_123 : f32 to vector<1x32xf32>
    %416 = arith.addf %415, %414 : vector<1x32xf32>
    %417 = arith.divf %415, %416 : vector<1x32xf32>
    %418 = arith.mulf %409, %349 : vector<1x32xf32>
    %419 = arith.mulf %403, %411 : vector<1x32xf32>
    %420 = arith.addf %418, %419 : vector<1x32xf32>
    %421 = math.tanh %420 : vector<1x32xf32>
    %422 = arith.mulf %417, %421 : vector<1x32xf32>
    %423 = arith.select %391, %422, %348 : vector<1x32xf32>
    %424 = arith.select %391, %420, %349 : vector<1x32xf32>
    %c1_i32_124 = arith.constant 1 : i32
    %425 = arith.subi %c5_i32, %c1_i32_124 : i32
    %c0_i32_125 = arith.constant 0 : i32
    %426 = arith.cmpi sge, %425, %c0_i32_125 : i32
    %c8_i32_126 = arith.constant 8 : i32
    %427 = arith.cmpi slt, %425, %c8_i32_126 : i32
    %428 = arith.andi %426, %427 : i1
    %c0_i32_127 = arith.constant 0 : i32
    %c7_i32_128 = arith.constant 7 : i32
    %429 = arith.maxsi %c0_i32_127, %425 : i32
    %430 = arith.minsi %c7_i32_128, %429 : i32
    %431 = tpu.concatenate %348, %386 in 1 : vector<1x32xf32>, vector<1x32xf32> -> vector<1x64xf32>
    %cst_129 = arith.constant dense<0.000000e+00> : vector<1x128xf32>
    %432 = tpu.matmul %431, %9, %cst_129 {dimension_numbers = #tpu.dot_dimension_numbers<[1], [0], [0], [1], [0, 0, 1, 1], [], []>} : vector<1x64xf32>, vector<64x128xf32>, vector<1x128xf32> -> vector<1x128xf32>
    %433 = arith.addf %432, %10 : vector<1x128xf32>
    %434 = vector.extract_strided_slice %433 {offsets = [0, 0], sizes = [1, 32], strides = [1, 1]} : vector<1x128xf32> to vector<1x32xf32>
    %435 = arith.negf %434 : vector<1x32xf32>
    %436 = math.exp %435 : vector<1x32xf32>
    %cst_130 = arith.constant 1.000000e+00 : f32
    %437 = vector.broadcast %cst_130 : f32 to vector<1x32xf32>
    %438 = arith.addf %437, %436 : vector<1x32xf32>
    %439 = arith.divf %437, %438 : vector<1x32xf32>
    %440 = vector.extract_strided_slice %433 {offsets = [0, 32], sizes = [1, 32], strides = [1, 1]} : vector<1x128xf32> to vector<1x32xf32>
    %441 = arith.negf %440 : vector<1x32xf32>
    %442 = math.exp %441 : vector<1x32xf32>
    %cst_131 = arith.constant 1.000000e+00 : f32
    %443 = vector.broadcast %cst_131 : f32 to vector<1x32xf32>
    %444 = arith.addf %443, %442 : vector<1x32xf32>
    %445 = arith.divf %443, %444 : vector<1x32xf32>
    %446 = vector.extract_strided_slice %433 {offsets = [0, 64], sizes = [1, 32], strides = [1, 1]} : vector<1x128xf32> to vector<1x32xf32>
    %447 = math.tanh %446 : vector<1x32xf32>
    %448 = vector.extract_strided_slice %433 {offsets = [0, 96], sizes = [1, 32], strides = [1, 1]} : vector<1x128xf32> to vector<1x32xf32>
    %449 = arith.negf %448 : vector<1x32xf32>
    %450 = math.exp %449 : vector<1x32xf32>
    %cst_132 = arith.constant 1.000000e+00 : f32
    %451 = vector.broadcast %cst_132 : f32 to vector<1x32xf32>
    %452 = arith.addf %451, %450 : vector<1x32xf32>
    %453 = arith.divf %451, %452 : vector<1x32xf32>
    %454 = arith.mulf %445, %387 : vector<1x32xf32>
    %455 = arith.mulf %439, %447 : vector<1x32xf32>
    %456 = arith.addf %454, %455 : vector<1x32xf32>
    %457 = math.tanh %456 : vector<1x32xf32>
    %458 = arith.mulf %453, %457 : vector<1x32xf32>
    %459 = arith.index_cast %430 : i32 to index
    %c0_133 = arith.constant 0 : index
    %460 = vector.load %arg13[%459, %c0_133] : memref<8x32xf32, #tpu.memory_space<vmem>>, vector<1x32xf32>
    tpu.vector_store %arg13[%459, %c0_133], %458 {strides = array<i32>} : memref<8x32xf32, #tpu.memory_space<vmem>>, vector<1x32xf32>,
    %461 = arith.select %428, %458, %386 : vector<1x32xf32>
    %462 = arith.select %428, %456, %387 : vector<1x32xf32>
    %c6_i32 = arith.constant 6 : i32
    %c0_i32_134 = arith.constant 0 : i32
    %463 = arith.subi %c6_i32, %c0_i32_134 : i32
    %c0_i32_135 = arith.constant 0 : i32
    %464 = arith.cmpi sge, %463, %c0_i32_135 : i32
    %c8_i32_136 = arith.constant 8 : i32
    %465 = arith.cmpi slt, %463, %c8_i32_136 : i32
    %466 = arith.andi %464, %465 : i1
    %c0_i32_137 = arith.constant 0 : i32
    %c7_i32_138 = arith.constant 7 : i32
    %467 = arith.maxsi %c0_i32_137, %463 : i32
    %468 = arith.minsi %c7_i32_138, %467 : i32
    %469 = arith.index_cast %468 : i32 to index
    %c0_139 = arith.constant 0 : index
    %470 = vector.load %arg12[%469, %c0_139] : memref<8x128xf32, #tpu.memory_space<vmem>>, vector<1x128xf32>
    %cst_140 = arith.constant dense<0.000000e+00> : vector<1x128xf32>
    %471 = tpu.matmul %423, %8, %cst_140 {dimension_numbers = #tpu.dot_dimension_numbers<[1], [0], [0], [1], [0, 0, 1, 1], [], []>} : vector<1x32xf32>, vector<32x128xf32>, vector<1x128xf32> -> vector<1x128xf32>
    %472 = arith.addf %470, %471 : vector<1x128xf32>
    %473 = vector.extract_strided_slice %472 {offsets = [0, 0], sizes = [1, 32], strides = [1, 1]} : vector<1x128xf32> to vector<1x32xf32>
    %474 = arith.negf %473 : vector<1x32xf32>
    %475 = math.exp %474 : vector<1x32xf32>
    %cst_141 = arith.constant 1.000000e+00 : f32
    %476 = vector.broadcast %cst_141 : f32 to vector<1x32xf32>
    %477 = arith.addf %476, %475 : vector<1x32xf32>
    %478 = arith.divf %476, %477 : vector<1x32xf32>
    %479 = vector.extract_strided_slice %472 {offsets = [0, 32], sizes = [1, 32], strides = [1, 1]} : vector<1x128xf32> to vector<1x32xf32>
    %480 = arith.negf %479 : vector<1x32xf32>
    %481 = math.exp %480 : vector<1x32xf32>
    %cst_142 = arith.constant 1.000000e+00 : f32
    %482 = vector.broadcast %cst_142 : f32 to vector<1x32xf32>
    %483 = arith.addf %482, %481 : vector<1x32xf32>
    %484 = arith.divf %482, %483 : vector<1x32xf32>
    %485 = vector.extract_strided_slice %472 {offsets = [0, 64], sizes = [1, 32], strides = [1, 1]} : vector<1x128xf32> to vector<1x32xf32>
    %486 = math.tanh %485 : vector<1x32xf32>
    %487 = vector.extract_strided_slice %472 {offsets = [0, 96], sizes = [1, 32], strides = [1, 1]} : vector<1x128xf32> to vector<1x32xf32>
    %488 = arith.negf %487 : vector<1x32xf32>
    %489 = math.exp %488 : vector<1x32xf32>
    %cst_143 = arith.constant 1.000000e+00 : f32
    %490 = vector.broadcast %cst_143 : f32 to vector<1x32xf32>
    %491 = arith.addf %490, %489 : vector<1x32xf32>
    %492 = arith.divf %490, %491 : vector<1x32xf32>
    %493 = arith.mulf %484, %424 : vector<1x32xf32>
    %494 = arith.mulf %478, %486 : vector<1x32xf32>
    %495 = arith.addf %493, %494 : vector<1x32xf32>
    %496 = math.tanh %495 : vector<1x32xf32>
    %497 = arith.mulf %492, %496 : vector<1x32xf32>
    %498 = arith.select %466, %497, %423 : vector<1x32xf32>
    %499 = arith.select %466, %495, %424 : vector<1x32xf32>
    %c1_i32_144 = arith.constant 1 : i32
    %500 = arith.subi %c6_i32, %c1_i32_144 : i32
    %c0_i32_145 = arith.constant 0 : i32
    %501 = arith.cmpi sge, %500, %c0_i32_145 : i32
    %c8_i32_146 = arith.constant 8 : i32
    %502 = arith.cmpi slt, %500, %c8_i32_146 : i32
    %503 = arith.andi %501, %502 : i1
    %c0_i32_147 = arith.constant 0 : i32
    %c7_i32_148 = arith.constant 7 : i32
    %504 = arith.maxsi %c0_i32_147, %500 : i32
    %505 = arith.minsi %c7_i32_148, %504 : i32
    %506 = tpu.concatenate %423, %461 in 1 : vector<1x32xf32>, vector<1x32xf32> -> vector<1x64xf32>
    %cst_149 = arith.constant dense<0.000000e+00> : vector<1x128xf32>
    %507 = tpu.matmul %506, %9, %cst_149 {dimension_numbers = #tpu.dot_dimension_numbers<[1], [0], [0], [1], [0, 0, 1, 1], [], []>} : vector<1x64xf32>, vector<64x128xf32>, vector<1x128xf32> -> vector<1x128xf32>
    %508 = arith.addf %507, %10 : vector<1x128xf32>
    %509 = vector.extract_strided_slice %508 {offsets = [0, 0], sizes = [1, 32], strides = [1, 1]} : vector<1x128xf32> to vector<1x32xf32>
    %510 = arith.negf %509 : vector<1x32xf32>
    %511 = math.exp %510 : vector<1x32xf32>
    %cst_150 = arith.constant 1.000000e+00 : f32
    %512 = vector.broadcast %cst_150 : f32 to vector<1x32xf32>
    %513 = arith.addf %512, %511 : vector<1x32xf32>
    %514 = arith.divf %512, %513 : vector<1x32xf32>
    %515 = vector.extract_strided_slice %508 {offsets = [0, 32], sizes = [1, 32], strides = [1, 1]} : vector<1x128xf32> to vector<1x32xf32>
    %516 = arith.negf %515 : vector<1x32xf32>
    %517 = math.exp %516 : vector<1x32xf32>
    %cst_151 = arith.constant 1.000000e+00 : f32
    %518 = vector.broadcast %cst_151 : f32 to vector<1x32xf32>
    %519 = arith.addf %518, %517 : vector<1x32xf32>
    %520 = arith.divf %518, %519 : vector<1x32xf32>
    %521 = vector.extract_strided_slice %508 {offsets = [0, 64], sizes = [1, 32], strides = [1, 1]} : vector<1x128xf32> to vector<1x32xf32>
    %522 = math.tanh %521 : vector<1x32xf32>
    %523 = vector.extract_strided_slice %508 {offsets = [0, 96], sizes = [1, 32], strides = [1, 1]} : vector<1x128xf32> to vector<1x32xf32>
    %524 = arith.negf %523 : vector<1x32xf32>
    %525 = math.exp %524 : vector<1x32xf32>
    %cst_152 = arith.constant 1.000000e+00 : f32
    %526 = vector.broadcast %cst_152 : f32 to vector<1x32xf32>
    %527 = arith.addf %526, %525 : vector<1x32xf32>
    %528 = arith.divf %526, %527 : vector<1x32xf32>
    %529 = arith.mulf %520, %462 : vector<1x32xf32>
    %530 = arith.mulf %514, %522 : vector<1x32xf32>
    %531 = arith.addf %529, %530 : vector<1x32xf32>
    %532 = math.tanh %531 : vector<1x32xf32>
    %533 = arith.mulf %528, %532 : vector<1x32xf32>
    %534 = arith.index_cast %505 : i32 to index
    %c0_153 = arith.constant 0 : index
    %535 = vector.load %arg13[%534, %c0_153] : memref<8x32xf32, #tpu.memory_space<vmem>>, vector<1x32xf32>
    tpu.vector_store %arg13[%534, %c0_153], %533 {strides = array<i32>} : memref<8x32xf32, #tpu.memory_space<vmem>>, vector<1x32xf32>,
    %536 = arith.select %503, %533, %461 : vector<1x32xf32>
    %537 = arith.select %503, %531, %462 : vector<1x32xf32>
    %c7_i32_154 = arith.constant 7 : i32
    %c0_i32_155 = arith.constant 0 : i32
    %538 = arith.subi %c7_i32_154, %c0_i32_155 : i32
    %c0_i32_156 = arith.constant 0 : i32
    %539 = arith.cmpi sge, %538, %c0_i32_156 : i32
    %c8_i32_157 = arith.constant 8 : i32
    %540 = arith.cmpi slt, %538, %c8_i32_157 : i32
    %541 = arith.andi %539, %540 : i1
    %c0_i32_158 = arith.constant 0 : i32
    %c7_i32_159 = arith.constant 7 : i32
    %542 = arith.maxsi %c0_i32_158, %538 : i32
    %543 = arith.minsi %c7_i32_159, %542 : i32
    %544 = arith.index_cast %543 : i32 to index
    %c0_160 = arith.constant 0 : index
    %545 = vector.load %arg12[%544, %c0_160] : memref<8x128xf32, #tpu.memory_space<vmem>>, vector<1x128xf32>
    %cst_161 = arith.constant dense<0.000000e+00> : vector<1x128xf32>
    %546 = tpu.matmul %498, %8, %cst_161 {dimension_numbers = #tpu.dot_dimension_numbers<[1], [0], [0], [1], [0, 0, 1, 1], [], []>} : vector<1x32xf32>, vector<32x128xf32>, vector<1x128xf32> -> vector<1x128xf32>
    %547 = arith.addf %545, %546 : vector<1x128xf32>
    %548 = vector.extract_strided_slice %547 {offsets = [0, 0], sizes = [1, 32], strides = [1, 1]} : vector<1x128xf32> to vector<1x32xf32>
    %549 = arith.negf %548 : vector<1x32xf32>
    %550 = math.exp %549 : vector<1x32xf32>
    %cst_162 = arith.constant 1.000000e+00 : f32
    %551 = vector.broadcast %cst_162 : f32 to vector<1x32xf32>
    %552 = arith.addf %551, %550 : vector<1x32xf32>
    %553 = arith.divf %551, %552 : vector<1x32xf32>
    %554 = vector.extract_strided_slice %547 {offsets = [0, 32], sizes = [1, 32], strides = [1, 1]} : vector<1x128xf32> to vector<1x32xf32>
    %555 = arith.negf %554 : vector<1x32xf32>
    %556 = math.exp %555 : vector<1x32xf32>
    %cst_163 = arith.constant 1.000000e+00 : f32
    %557 = vector.broadcast %cst_163 : f32 to vector<1x32xf32>
    %558 = arith.addf %557, %556 : vector<1x32xf32>
    %559 = arith.divf %557, %558 : vector<1x32xf32>
    %560 = vector.extract_strided_slice %547 {offsets = [0, 64], sizes = [1, 32], strides = [1, 1]} : vector<1x128xf32> to vector<1x32xf32>
    %561 = math.tanh %560 : vector<1x32xf32>
    %562 = vector.extract_strided_slice %547 {offsets = [0, 96], sizes = [1, 32], strides = [1, 1]} : vector<1x128xf32> to vector<1x32xf32>
    %563 = arith.negf %562 : vector<1x32xf32>
    %564 = math.exp %563 : vector<1x32xf32>
    %cst_164 = arith.constant 1.000000e+00 : f32
    %565 = vector.broadcast %cst_164 : f32 to vector<1x32xf32>
    %566 = arith.addf %565, %564 : vector<1x32xf32>
    %567 = arith.divf %565, %566 : vector<1x32xf32>
    %568 = arith.mulf %559, %499 : vector<1x32xf32>
    %569 = arith.mulf %553, %561 : vector<1x32xf32>
    %570 = arith.addf %568, %569 : vector<1x32xf32>
    %571 = math.tanh %570 : vector<1x32xf32>
    %572 = arith.mulf %567, %571 : vector<1x32xf32>
    %573 = arith.select %541, %572, %498 : vector<1x32xf32>
    %574 = arith.select %541, %570, %499 : vector<1x32xf32>
    %c1_i32_165 = arith.constant 1 : i32
    %575 = arith.subi %c7_i32_154, %c1_i32_165 : i32
    %c0_i32_166 = arith.constant 0 : i32
    %576 = arith.cmpi sge, %575, %c0_i32_166 : i32
    %c8_i32_167 = arith.constant 8 : i32
    %577 = arith.cmpi slt, %575, %c8_i32_167 : i32
    %578 = arith.andi %576, %577 : i1
    %c0_i32_168 = arith.constant 0 : i32
    %c7_i32_169 = arith.constant 7 : i32
    %579 = arith.maxsi %c0_i32_168, %575 : i32
    %580 = arith.minsi %c7_i32_169, %579 : i32
    %581 = tpu.concatenate %498, %536 in 1 : vector<1x32xf32>, vector<1x32xf32> -> vector<1x64xf32>
    %cst_170 = arith.constant dense<0.000000e+00> : vector<1x128xf32>
    %582 = tpu.matmul %581, %9, %cst_170 {dimension_numbers = #tpu.dot_dimension_numbers<[1], [0], [0], [1], [0, 0, 1, 1], [], []>} : vector<1x64xf32>, vector<64x128xf32>, vector<1x128xf32> -> vector<1x128xf32>
    %583 = arith.addf %582, %10 : vector<1x128xf32>
    %584 = vector.extract_strided_slice %583 {offsets = [0, 0], sizes = [1, 32], strides = [1, 1]} : vector<1x128xf32> to vector<1x32xf32>
    %585 = arith.negf %584 : vector<1x32xf32>
    %586 = math.exp %585 : vector<1x32xf32>
    %cst_171 = arith.constant 1.000000e+00 : f32
    %587 = vector.broadcast %cst_171 : f32 to vector<1x32xf32>
    %588 = arith.addf %587, %586 : vector<1x32xf32>
    %589 = arith.divf %587, %588 : vector<1x32xf32>
    %590 = vector.extract_strided_slice %583 {offsets = [0, 32], sizes = [1, 32], strides = [1, 1]} : vector<1x128xf32> to vector<1x32xf32>
    %591 = arith.negf %590 : vector<1x32xf32>
    %592 = math.exp %591 : vector<1x32xf32>
    %cst_172 = arith.constant 1.000000e+00 : f32
    %593 = vector.broadcast %cst_172 : f32 to vector<1x32xf32>
    %594 = arith.addf %593, %592 : vector<1x32xf32>
    %595 = arith.divf %593, %594 : vector<1x32xf32>
    %596 = vector.extract_strided_slice %583 {offsets = [0, 64], sizes = [1, 32], strides = [1, 1]} : vector<1x128xf32> to vector<1x32xf32>
    %597 = math.tanh %596 : vector<1x32xf32>
    %598 = vector.extract_strided_slice %583 {offsets = [0, 96], sizes = [1, 32], strides = [1, 1]} : vector<1x128xf32> to vector<1x32xf32>
    %599 = arith.negf %598 : vector<1x32xf32>
    %600 = math.exp %599 : vector<1x32xf32>
    %cst_173 = arith.constant 1.000000e+00 : f32
    %601 = vector.broadcast %cst_173 : f32 to vector<1x32xf32>
    %602 = arith.addf %601, %600 : vector<1x32xf32>
    %603 = arith.divf %601, %602 : vector<1x32xf32>
    %604 = arith.mulf %595, %537 : vector<1x32xf32>
    %605 = arith.mulf %589, %597 : vector<1x32xf32>
    %606 = arith.addf %604, %605 : vector<1x32xf32>
    %607 = math.tanh %606 : vector<1x32xf32>
    %608 = arith.mulf %603, %607 : vector<1x32xf32>
    %609 = arith.index_cast %580 : i32 to index
    %c0_174 = arith.constant 0 : index
    %610 = vector.load %arg13[%609, %c0_174] : memref<8x32xf32, #tpu.memory_space<vmem>>, vector<1x32xf32>
    tpu.vector_store %arg13[%609, %c0_174], %608 {strides = array<i32>} : memref<8x32xf32, #tpu.memory_space<vmem>>, vector<1x32xf32>,
    %611 = arith.select %578, %608, %536 : vector<1x32xf32>
    %612 = arith.select %578, %606, %537 : vector<1x32xf32>
    %c8_i32_175 = arith.constant 8 : i32
    %c0_i32_176 = arith.constant 0 : i32
    %613 = arith.subi %c8_i32_175, %c0_i32_176 : i32
    %c0_i32_177 = arith.constant 0 : i32
    %614 = arith.cmpi sge, %613, %c0_i32_177 : i32
    %c8_i32_178 = arith.constant 8 : i32
    %615 = arith.cmpi slt, %613, %c8_i32_178 : i32
    %616 = arith.andi %614, %615 : i1
    %c0_i32_179 = arith.constant 0 : i32
    %c7_i32_180 = arith.constant 7 : i32
    %617 = arith.maxsi %c0_i32_179, %613 : i32
    %618 = arith.minsi %c7_i32_180, %617 : i32
    %619 = arith.index_cast %618 : i32 to index
    %c0_181 = arith.constant 0 : index
    %620 = vector.load %arg12[%619, %c0_181] : memref<8x128xf32, #tpu.memory_space<vmem>>, vector<1x128xf32>
    %cst_182 = arith.constant dense<0.000000e+00> : vector<1x128xf32>
    %621 = tpu.matmul %573, %8, %cst_182 {dimension_numbers = #tpu.dot_dimension_numbers<[1], [0], [0], [1], [0, 0, 1, 1], [], []>} : vector<1x32xf32>, vector<32x128xf32>, vector<1x128xf32> -> vector<1x128xf32>
    %622 = arith.addf %620, %621 : vector<1x128xf32>
    %623 = vector.extract_strided_slice %622 {offsets = [0, 0], sizes = [1, 32], strides = [1, 1]} : vector<1x128xf32> to vector<1x32xf32>
    %624 = arith.negf %623 : vector<1x32xf32>
    %625 = math.exp %624 : vector<1x32xf32>
    %cst_183 = arith.constant 1.000000e+00 : f32
    %626 = vector.broadcast %cst_183 : f32 to vector<1x32xf32>
    %627 = arith.addf %626, %625 : vector<1x32xf32>
    %628 = arith.divf %626, %627 : vector<1x32xf32>
    %629 = vector.extract_strided_slice %622 {offsets = [0, 32], sizes = [1, 32], strides = [1, 1]} : vector<1x128xf32> to vector<1x32xf32>
    %630 = arith.negf %629 : vector<1x32xf32>
    %631 = math.exp %630 : vector<1x32xf32>
    %cst_184 = arith.constant 1.000000e+00 : f32
    %632 = vector.broadcast %cst_184 : f32 to vector<1x32xf32>
    %633 = arith.addf %632, %631 : vector<1x32xf32>
    %634 = arith.divf %632, %633 : vector<1x32xf32>
    %635 = vector.extract_strided_slice %622 {offsets = [0, 64], sizes = [1, 32], strides = [1, 1]} : vector<1x128xf32> to vector<1x32xf32>
    %636 = math.tanh %635 : vector<1x32xf32>
    %637 = vector.extract_strided_slice %622 {offsets = [0, 96], sizes = [1, 32], strides = [1, 1]} : vector<1x128xf32> to vector<1x32xf32>
    %638 = arith.negf %637 : vector<1x32xf32>
    %639 = math.exp %638 : vector<1x32xf32>
    %cst_185 = arith.constant 1.000000e+00 : f32
    %640 = vector.broadcast %cst_185 : f32 to vector<1x32xf32>
    %641 = arith.addf %640, %639 : vector<1x32xf32>
    %642 = arith.divf %640, %641 : vector<1x32xf32>
    %643 = arith.mulf %634, %574 : vector<1x32xf32>
    %644 = arith.mulf %628, %636 : vector<1x32xf32>
    %645 = arith.addf %643, %644 : vector<1x32xf32>
    %646 = math.tanh %645 : vector<1x32xf32>
    %647 = arith.mulf %642, %646 : vector<1x32xf32>
    %648 = arith.select %616, %647, %573 : vector<1x32xf32>
    %649 = arith.select %616, %645, %574 : vector<1x32xf32>
    %c1_i32_186 = arith.constant 1 : i32
    %650 = arith.subi %c8_i32_175, %c1_i32_186 : i32
    %c0_i32_187 = arith.constant 0 : i32
    %651 = arith.cmpi sge, %650, %c0_i32_187 : i32
    %c8_i32_188 = arith.constant 8 : i32
    %652 = arith.cmpi slt, %650, %c8_i32_188 : i32
    %653 = arith.andi %651, %652 : i1
    %c0_i32_189 = arith.constant 0 : i32
    %c7_i32_190 = arith.constant 7 : i32
    %654 = arith.maxsi %c0_i32_189, %650 : i32
    %655 = arith.minsi %c7_i32_190, %654 : i32
    %656 = tpu.concatenate %573, %611 in 1 : vector<1x32xf32>, vector<1x32xf32> -> vector<1x64xf32>
    %cst_191 = arith.constant dense<0.000000e+00> : vector<1x128xf32>
    %657 = tpu.matmul %656, %9, %cst_191 {dimension_numbers = #tpu.dot_dimension_numbers<[1], [0], [0], [1], [0, 0, 1, 1], [], []>} : vector<1x64xf32>, vector<64x128xf32>, vector<1x128xf32> -> vector<1x128xf32>
    %658 = arith.addf %657, %10 : vector<1x128xf32>
    %659 = vector.extract_strided_slice %658 {offsets = [0, 0], sizes = [1, 32], strides = [1, 1]} : vector<1x128xf32> to vector<1x32xf32>
    %660 = arith.negf %659 : vector<1x32xf32>
    %661 = math.exp %660 : vector<1x32xf32>
    %cst_192 = arith.constant 1.000000e+00 : f32
    %662 = vector.broadcast %cst_192 : f32 to vector<1x32xf32>
    %663 = arith.addf %662, %661 : vector<1x32xf32>
    %664 = arith.divf %662, %663 : vector<1x32xf32>
    %665 = vector.extract_strided_slice %658 {offsets = [0, 32], sizes = [1, 32], strides = [1, 1]} : vector<1x128xf32> to vector<1x32xf32>
    %666 = arith.negf %665 : vector<1x32xf32>
    %667 = math.exp %666 : vector<1x32xf32>
    %cst_193 = arith.constant 1.000000e+00 : f32
    %668 = vector.broadcast %cst_193 : f32 to vector<1x32xf32>
    %669 = arith.addf %668, %667 : vector<1x32xf32>
    %670 = arith.divf %668, %669 : vector<1x32xf32>
    %671 = vector.extract_strided_slice %658 {offsets = [0, 64], sizes = [1, 32], strides = [1, 1]} : vector<1x128xf32> to vector<1x32xf32>
    %672 = math.tanh %671 : vector<1x32xf32>
    %673 = vector.extract_strided_slice %658 {offsets = [0, 96], sizes = [1, 32], strides = [1, 1]} : vector<1x128xf32> to vector<1x32xf32>
    %674 = arith.negf %673 : vector<1x32xf32>
    %675 = math.exp %674 : vector<1x32xf32>
    %cst_194 = arith.constant 1.000000e+00 : f32
    %676 = vector.broadcast %cst_194 : f32 to vector<1x32xf32>
    %677 = arith.addf %676, %675 : vector<1x32xf32>
    %678 = arith.divf %676, %677 : vector<1x32xf32>
    %679 = arith.mulf %670, %612 : vector<1x32xf32>
    %680 = arith.mulf %664, %672 : vector<1x32xf32>
    %681 = arith.addf %679, %680 : vector<1x32xf32>
    %682 = math.tanh %681 : vector<1x32xf32>
    %683 = arith.mulf %678, %682 : vector<1x32xf32>
    %684 = arith.index_cast %655 : i32 to index
    %c0_195 = arith.constant 0 : index
    %685 = vector.load %arg13[%684, %c0_195] : memref<8x32xf32, #tpu.memory_space<vmem>>, vector<1x32xf32>
    tpu.vector_store %arg13[%684, %c0_195], %683 {strides = array<i32>} : memref<8x32xf32, #tpu.memory_space<vmem>>, vector<1x32xf32>,
    %686 = arith.select %653, %683, %611 : vector<1x32xf32>
    %687 = arith.select %653, %681, %612 : vector<1x32xf32>
    %c9_i32 = arith.constant 9 : i32
    %c0_196 = arith.constant 0 : index
    %c0_197 = arith.constant 0 : index
    %688 = vector.load %arg13[%c0_196, %c0_197] : memref<8x32xf32, #tpu.memory_space<vmem>>, vector<8x32xf32>
    %c0_198 = arith.constant 0 : index
    %c0_199 = arith.constant 0 : index
    %689 = vector.load %arg7[%c0_198, %c0_199] : memref<32x128xf32, #tpu.memory_space<vmem>>, vector<32x128xf32>
    %cst_200 = arith.constant dense<0.000000e+00> : vector<8x128xf32>
    %690 = tpu.matmul %688, %689, %cst_200 {dimension_numbers = #tpu.dot_dimension_numbers<[1], [0], [0], [1], [0, 0, 1, 1], [], []>} : vector<8x32xf32>, vector<32x128xf32>, vector<8x128xf32> -> vector<8x128xf32>
    %c0_201 = arith.constant 0 : index
    %c0_202 = arith.constant 0 : index
    %691 = vector.load %arg8[%c0_201, %c0_202] : memref<1x128xf32, #tpu.memory_space<vmem>>, vector<1x128xf32>
    %692 = vector.broadcast %691 : vector<1x128xf32> to vector<8x128xf32>
    %693 = arith.addf %690, %692 : vector<8x128xf32>
    %c0_203 = arith.constant 0 : index
    %c0_204 = arith.constant 0 : index
    %c0_205 = arith.constant 0 : index
    %694 = vector.load %arg9[%c0_203, %c0_204, %c0_205] : memref<1x8x128xf32, #tpu.memory_space<vmem>>, vector<1x8x128xf32>
    %695 = vector.shape_cast %694 : vector<1x8x128xf32> to vector<8x128xf32>
    %696 = vector.shape_cast %693 : vector<8x128xf32> to vector<1x8x128xf32>
    tpu.vector_store %arg9[%c0_203, %c0_204, %c0_205], %696 {strides = array<i32>} : memref<1x8x128xf32, #tpu.memory_space<vmem>>, vector<1x8x128xf32>,
    %697 = tpu.concatenate %648, %686 in 0 : vector<1x32xf32>, vector<1x32xf32> -> vector<2x32xf32>
    %c0_206 = arith.constant 0 : index
    %c0_207 = arith.constant 0 : index
    %c0_208 = arith.constant 0 : index
    %698 = vector.load %arg10[%c0_206, %c0_207, %c0_208] : memref<1x2x32xf32, #tpu.memory_space<vmem>>, vector<1x2x32xf32>
    %699 = vector.shape_cast %698 : vector<1x2x32xf32> to vector<2x32xf32>
    %700 = vector.shape_cast %697 : vector<2x32xf32> to vector<1x2x32xf32>
    tpu.vector_store %arg10[%c0_206, %c0_207, %c0_208], %700 {strides = array<i32>} : memref<1x2x32xf32, #tpu.memory_space<vmem>>, vector<1x2x32xf32>,
    %701 = tpu.concatenate %649, %687 in 0 : vector<1x32xf32>, vector<1x32xf32> -> vector<2x32xf32>
    %c0_209 = arith.constant 0 : index
    %c0_210 = arith.constant 0 : index
    %c0_211 = arith.constant 0 : index
    %702 = vector.load %arg11[%c0_209, %c0_210, %c0_211] : memref<1x2x32xf32, #tpu.memory_space<vmem>>, vector<1x2x32xf32>
    %703 = vector.shape_cast %702 : vector<1x2x32xf32> to vector<2x32xf32>
    %704 = vector.shape_cast %701 : vector<2x32xf32> to vector<1x2x32xf32>
    tpu.vector_store %arg11[%c0_209, %c0_210, %c0_211], %704 {strides = array<i32>} : memref<1x2x32xf32, #tpu.memory_space<vmem>>, vector<1x2x32xf32>,
    return
  }
  func.func @transform_0(%arg0: i32) -> (i32, i32, i32) {
    %c0_i32 = arith.constant 0 : i32
    %c0_i32_0 = arith.constant 0 : i32
    %c0_i32_1 = arith.constant 0 : i32
    return %arg0, %c0_i32, %c0_i32_0 : i32, i32, i32
  }
  func.func @transform_1(%arg0: i32) -> (i32, i32) {
    %c0_i32 = arith.constant 0 : i32
    %c0_i32_0 = arith.constant 0 : i32
    %c0_i32_1 = arith.constant 0 : i32
    return %c0_i32, %c0_i32_0 : i32, i32
  }
  func.func @transform_2(%arg0: i32) -> (i32, i32) {
    %c0_i32 = arith.constant 0 : i32
    %c0_i32_0 = arith.constant 0 : i32
    %c0_i32_1 = arith.constant 0 : i32
    return %c0_i32, %c0_i32_0 : i32, i32
  }
  func.func @transform_3(%arg0: i32) -> (i32, i32) {
    %c0_i32 = arith.constant 0 : i32
    %c0_i32_0 = arith.constant 0 : i32
    %c0_i32_1 = arith.constant 0 : i32
    return %c0_i32, %c0_i32_0 : i32, i32
  }
  func.func @transform_4(%arg0: i32) -> (i32, i32) {
    %c0_i32 = arith.constant 0 : i32
    %c0_i32_0 = arith.constant 0 : i32
    %c0_i32_1 = arith.constant 0 : i32
    return %c0_i32, %c0_i32_0 : i32, i32
  }
  func.func @transform_5(%arg0: i32) -> (i32, i32) {
    %c0_i32 = arith.constant 0 : i32
    %c0_i32_0 = arith.constant 0 : i32
    %c0_i32_1 = arith.constant 0 : i32
    return %c0_i32, %c0_i32_0 : i32, i32
  }
  func.func @transform_6(%arg0: i32) -> (i32, i32) {
    %c0_i32 = arith.constant 0 : i32
    %c0_i32_0 = arith.constant 0 : i32
    %c0_i32_1 = arith.constant 0 : i32
    return %c0_i32, %c0_i32_0 : i32, i32
  }
  func.func @transform_7(%arg0: i32) -> (i32, i32) {
    %c0_i32 = arith.constant 0 : i32
    %c0_i32_0 = arith.constant 0 : i32
    %c0_i32_1 = arith.constant 0 : i32
    return %c0_i32, %c0_i32_0 : i32, i32
  }
  func.func @transform_8(%arg0: i32) -> (i32, i32, i32) {
    %c0_i32 = arith.constant 0 : i32
    %c0_i32_0 = arith.constant 0 : i32
    %c0_i32_1 = arith.constant 0 : i32
    return %arg0, %c0_i32, %c0_i32_0 : i32, i32, i32
  }
  func.func @transform_9(%arg0: i32) -> (i32, i32, i32) {
    %c0_i32 = arith.constant 0 : i32
    %c0_i32_0 = arith.constant 0 : i32
    %c0_i32_1 = arith.constant 0 : i32
    return %arg0, %c0_i32, %c0_i32_0 : i32, i32, i32
  }
  func.func @transform_10(%arg0: i32) -> (i32, i32, i32) {
    %c0_i32 = arith.constant 0 : i32
    %c0_i32_0 = arith.constant 0 : i32
    %c0_i32_1 = arith.constant 0 : i32
    return %arg0, %c0_i32, %c0_i32_0 : i32, i32, i32
  }
}

</mosaic_0001>

<llo_original>
// kernel: tpu_custom_call.1
$region0: #{tpu_custom_call.1}
  #allocation0 [shape = 'u32[]', space=smem, size = 0x4, offset = 0x4, fixed_abs, tag = 'smem constant byte address 0x4 - core index']
  #allocation1 [shape = 'u32[144,128]{1,0:T(1,128)}', space=vmem, size = 0x12000, scoped, tag = 'internal scratch']
  #allocation2 [shape = 'f32[8,128]{1,0:T(8,128)}', space=vmem, size = 0x1000, scoped, tag = 'scratch operand']
  #allocation3 [shape = 'f32[8,32]{1,0:T(8,128)}', space=vmem, size = 0x1000, scoped, tag = 'scratch operand']
  %s0 = inlined_call_operand.hbm [shape: f32[2,8,16], index: 0, kind: input, shape index: {}]
  %s1 = inlined_call_operand.hbm [shape: f32[16,128], index: 1, kind: input, shape index: {}]
  %s2 = inlined_call_operand.hbm [shape: f32[32,128], index: 2, kind: input, shape index: {}]
  %s3 = inlined_call_operand.vmem [shape: f32[1,128], index: 3, kind: input, shape index: {}]
  %s4 = inlined_call_operand.hbm [shape: f32[64,128], index: 4, kind: input, shape index: {}]
  %s5 = inlined_call_operand.vmem [shape: f32[1,128], index: 5, kind: input, shape index: {}]
  %s6 = inlined_call_operand.hbm [shape: f32[32,128], index: 6, kind: input, shape index: {}]
  %s7 = inlined_call_operand.vmem [shape: f32[1,128], index: 7, kind: input, shape index: {}]
  %s8 = inlined_call_operand.hbm [shape: f32[2,8,128], index: 8, kind: output, shape index: {0}]
  %s9 = inlined_call_operand.hbm [shape: f32[2,2,32], index: 9, kind: output, shape index: {1}]
  %s10 = inlined_call_operand.hbm [shape: f32[2,2,32], index: 10, kind: output, shape index: {2}]
  %11 = xla_tuple %s8, %s9, %s10
  %s12 = sld [smem:[#allocation0]]
  $region101: #{tpu_custom_call.1} parent=0
    _
  %s14 = ssub.s32 1, %s12
  %s15 = scalar_select 0, %s14, %s12
  $region1: #{tpu_custom_call.1} parent=0
    #allocation4 [shape = 'u8[8192]{0}', space=vmem, size = 0x2000, scoped, tag = 'input window, operand 0']
    #allocation5 [shape = 's32[2]{0}', space=sflag, size = 0x8, scoped, tag = 'scoped memory for tpu_custom_call.1']
    #allocation6 [shape = 's32[2]{0}', space=sflag, size = 0x8, scoped, tag = 'scoped memory for tpu_custom_call.1']
    #allocation7 [shape = 'u8[8192]{0}', space=vmem, size = 0x2000, scoped, tag = 'input window, operand 1, single buffered']
    #allocation8 [shape = 's32[1]{0}', space=sflag, size = 0x4, scoped, tag = 'scoped memory for tpu_custom_call.1']
    #allocation9 [shape = 'u8[16384]{0}', space=vmem, size = 0x4000, scoped, tag = 'input window, operand 2, single buffered']
    #allocation10 [shape = 'u8[32768]{0}', space=vmem, size = 0x8000, scoped, tag = 'input window, operand 4, single buffered']
    #allocation11 [shape = 's32[1]{0}', space=sflag, size = 0x4, scoped, tag = 'scoped memory for tpu_custom_call.1']
    #allocation12 [shape = 'u8[16384]{0}', space=vmem, size = 0x4000, scoped, tag = 'input window, operand 6, single buffered']
    #allocation13 [shape = 'u8[8192]{0}', space=vmem, size = 0x2000, scoped, tag = 'output window, operand 0']
    #allocation14 [shape = 'u8[2048]{0}', space=vmem, size = 0x800, scoped, tag = 'output window, operand 1']
    #allocation15 [shape = 's32[2]{0}', space=sflag, size = 0x8, scoped, tag = 'scoped memory for tpu_custom_call.1']
    #allocation16 [shape = 'u8[2048]{0}', space=vmem, size = 0x800, scoped, tag = 'output window, operand 2']
    %16 = vsyncpa [#allocation5], 0
    %s17 = scalar_lea.sflag [#allocation5], 1
    %18 = vsyncpa %s17, 0
    %19 = vsyncpa [#allocation8], 0
    %20 = vsyncpa [#allocation11], 0
    %21 = vsyncpa [#allocation6], 0
    %s22 = scalar_lea.sflag [#allocation6], 1
    %23 = vsyncpa %s22, 0
    %24 = vsyncpa [#allocation15], 0
    %s25 = scalar_lea.sflag [#allocation15], 1
    %26 = vsyncpa %s25, 0
    loop: start=0, step=1, limit=4
    $region2: #{tpu_custom_call.1} parent=1 // loop_pre_header
      _
    $region3: #{tpu_custom_call.1} parent=1 // loop_header
      %s28 = sphi 0, %s32
      %p29 = scmp.ge.s32.totalorder %s28, 4
      %s38 = sphi 0, %s40
      %s41 = sphi 0, %s38
      %s42 = sphi 0, %s41
      %s58 = sphi 0, %s42
      %s62 = sphi 0, %s62
      %s64 = sphi 0, %s62
      %s65 = sphi 0, %s64
      %s79 = sphi 0, %s65
      %s83 = sphi 0, %s83
      %s85 = sphi 0, %s83
      %s86 = sphi 0, %s85
      %s100 = sphi 0, %s86
      %s104 = sphi 0, %s104
      %s106 = sphi 0, %s104
      %s107 = sphi 0, %s106
      %s121 = sphi 0, %s107
      %s125 = sphi 0, %s125
      %s127 = sphi 0, %s125
      %s128 = sphi 0, %s127
      %s142 = sphi 0, %s128
      %s146 = sphi 0, %s146
      %s148 = sphi 0, %s146
      %s149 = sphi 0, %s148
      %s163 = sphi 0, %s149
      %s167 = sphi 0, %s167
      %s169 = sphi 0, %s167
      %s170 = sphi 0, %s169
      %s184 = sphi 0, %s170
      %s188 = sphi 0, %s188
      %s190 = sphi 0, %s188
      %s191 = sphi 0, %s190
      %s205 = sphi 0, %s191
      %s211 = sphi 0, %s213
      %s214 = sphi 0, %s211
      %s215 = sphi 0, %s214
      %s231 = sphi 0, %s215
      %s237 = sphi 0, %s239
      %s240 = sphi 0, %s237
      %s241 = sphi 0, %s240
      %s257 = sphi 0, %s241
      %s263 = sphi 0, %s265
      %s266 = sphi 0, %s263
      %s267 = sphi 0, %s266
      %s283 = sphi 0, %s267
    $region4: #{tpu_custom_call.1} parent=1 // loop_header_branch
      %31 = sbr.rel (%p29) target = $region8
    $region5: #{tpu_custom_call.1} parent=1 // loop_body
      %s33 = ssub.s32 %s28, 1
      %s34 = ssub.s32 %s28, 2
      %s35 = sadd.s32 %s28, 1
      %s36 = ssub.s32 %s28, %s35
      %p37 = scmp.eq.s32.totalorder %s36, 0
      %s39 = sadd.s32 %s38, 1
      %s40 = scalar_select %p37, %s38, %s39
      %p43 = pneg %p37
      %p44 = scmp.eq.s32.totalorder %s28, 1
      %p45 = por %p43, %p44
      %p46 = scmp.ne.s32.totalorder %s38, %s41
      %p47 = scmp.eq.s32.totalorder %s28, 0
      %p48 = por %p46, %p47
      %p49 = scmp.ne.s32.totalorder %s38, %s41
      %p50 = scmp.eq.s32.totalorder %s33, 1
      %p51 = por %p49, %p50
      %p52 = scmp.ne.s32.totalorder %s41, %s42
      %p53 = scmp.eq.s32.totalorder %s33, 0
      %p54 = por %p52, %p53
      %p55 = scmp.ne.s32.totalorder %s41, %s42
      %p56 = scmp.eq.s32.totalorder %s34, 1
      %p57 = por %p55, %p56
      %p59 = scmp.ne.s32.totalorder %s42, %s58
      %p60 = scmp.eq.s32.totalorder %s34, 0
      %p61 = por %p59, %p60
      %s63 = sadd.s32 %s62, 1
      %p66 = scmp.eq.s32.totalorder %s28, 1
      %p67 = scmp.ne.s32.totalorder %s62, %s64
      %p68 = scmp.eq.s32.totalorder %s28, 0
      %p69 = por %p67, %p68
      %p70 = scmp.ne.s32.totalorder %s62, %s64
      %p71 = scmp.eq.s32.totalorder %s33, 1
      %p72 = por %p70, %p71
      %p73 = scmp.ne.s32.totalorder %s64, %s65
      %p74 = scmp.eq.s32.totalorder %s33, 0
      %p75 = por %p73, %p74
      %p76 = scmp.ne.s32.totalorder %s64, %s65
      %p77 = scmp.eq.s32.totalorder %s34, 1
      %p78 = por %p76, %p77
      %p80 = scmp.ne.s32.totalorder %s65, %s79
      %p81 = scmp.eq.s32.totalorder %s34, 0
      %p82 = por %p80, %p81
      %s84 = sadd.s32 %s83, 1
      %p87 = scmp.eq.s32.totalorder %s28, 1
      %p88 = scmp.ne.s32.totalorder %s83, %s85
      %p89 = scmp.eq.s32.totalorder %s28, 0
      %p90 = por %p88, %p89
      %p91 = scmp.ne.s32.totalorder %s83, %s85
      %p92 = scmp.eq.s32.totalorder %s33, 1
      %p93 = por %p91, %p92
      %p94 = scmp.ne.s32.totalorder %s85, %s86
      %p95 = scmp.eq.s32.totalorder %s33, 0
      %p96 = por %p94, %p95
      %p97 = scmp.ne.s32.totalorder %s85, %s86
      %p98 = scmp.eq.s32.totalorder %s34, 1
      %p99 = por %p97, %p98
      %p101 = scmp.ne.s32.totalorder %s86, %s100
      %p102 = scmp.eq.s32.totalorder %s34, 0
      %p103 = por %p101, %p102
      %s105 = sadd.s32 %s104, 1
      %p108 = scmp.eq.s32.totalorder %s28, 1
      %p109 = scmp.ne.s32.totalorder %s104, %s106
      %p110 = scmp.eq.s32.totalorder %s28, 0
      %p111 = por %p109, %p110
      %p112 = scmp.ne.s32.totalorder %s104, %s106
      %p113 = scmp.eq.s32.totalorder %s33, 1
      %p114 = por %p112, %p113
      %p115 = scmp.ne.s32.totalorder %s106, %s107
      %p116 = scmp.eq.s32.totalorder %s33, 0
      %p117 = por %p115, %p116
      %p118 = scmp.ne.s32.totalorder %s106, %s107
      %p119 = scmp.eq.s32.totalorder %s34, 1
      %p120 = por %p118, %p119
      %p122 = scmp.ne.s32.totalorder %s107, %s121
      %p123 = scmp.eq.s32.totalorder %s34, 0
      %p124 = por %p122, %p123
      %s126 = sadd.s32 %s125, 1
      %p129 = scmp.eq.s32.totalorder %s28, 1
      %p130 = scmp.ne.s32.totalorder %s125, %s127
      %p131 = scmp.eq.s32.totalorder %s28, 0
      %p132 = por %p130, %p131
      %p133 = scmp.ne.s32.totalorder %s125, %s127
      %p134 = scmp.eq.s32.totalorder %s33, 1
      %p135 = por %p133, %p134
      %p136 = scmp.ne.s32.totalorder %s127, %s128
      %p137 = scmp.eq.s32.totalorder %s33, 0
      %p138 = por %p136, %p137
      %p139 = scmp.ne.s32.totalorder %s127, %s128
      %p140 = scmp.eq.s32.totalorder %s34, 1
      %p141 = por %p139, %p140
      %p143 = scmp.ne.s32.totalorder %s128, %s142
      %p144 = scmp.eq.s32.totalorder %s34, 0
      %p145 = por %p143, %p144
      %s147 = sadd.s32 %s146, 1
      %p150 = scmp.eq.s32.totalorder %s28, 1
      %p151 = scmp.ne.s32.totalorder %s146, %s148
      %p152 = scmp.eq.s32.totalorder %s28, 0
      %p153 = por %p151, %p152
      %p154 = scmp.ne.s32.totalorder %s146, %s148
      %p155 = scmp.eq.s32.totalorder %s33, 1
      %p156 = por %p154, %p155
      %p157 = scmp.ne.s32.totalorder %s148, %s149
      %p158 = scmp.eq.s32.totalorder %s33, 0
      %p159 = por %p157, %p158
      %p160 = scmp.ne.s32.totalorder %s148, %s149
      %p161 = scmp.eq.s32.totalorder %s34, 1
      %p162 = por %p160, %p161
      %p164 = scmp.ne.s32.totalorder %s149, %s163
      %p165 = scmp.eq.s32.totalorder %s34, 0
      %p166 = por %p164, %p165
      %s168 = sadd.s32 %s167, 1
      %p171 = scmp.eq.s32.totalorder %s28, 1
      %p172 = scmp.ne.s32.totalorder %s167, %s169
      %p173 = scmp.eq.s32.totalorder %s28, 0
      %p174 = por %p172, %p173
      %p175 = scmp.ne.s32.totalorder %s167, %s169
      %p176 = scmp.eq.s32.totalorder %s33, 1
      %p177 = por %p175, %p176
      %p178 = scmp.ne.s32.totalorder %s169, %s170
      %p179 = scmp.eq.s32.totalorder %s33, 0
      %p180 = por %p178, %p179
      %p181 = scmp.ne.s32.totalorder %s169, %s170
      %p182 = scmp.eq.s32.totalorder %s34, 1
      %p183 = por %p181, %p182
      %p185 = scmp.ne.s32.totalorder %s170, %s184
      %p186 = scmp.eq.s32.totalorder %s34, 0
      %p187 = por %p185, %p186
      %s189 = sadd.s32 %s188, 1
      %p192 = scmp.eq.s32.totalorder %s28, 1
      %p193 = scmp.ne.s32.totalorder %s188, %s190
      %p194 = scmp.eq.s32.totalorder %s28, 0
      %p195 = por %p193, %p194
      %p196 = scmp.ne.s32.totalorder %s188, %s190
      %p197 = scmp.eq.s32.totalorder %s33, 1
      %p198 = por %p196, %p197
      %p199 = scmp.ne.s32.totalorder %s190, %s191
      %p200 = scmp.eq.s32.totalorder %s33, 0
      %p201 = por %p199, %p200
      %p202 = scmp.ne.s32.totalorder %s190, %s191
      %p203 = scmp.eq.s32.totalorder %s34, 1
      %p204 = por %p202, %p203
      %p206 = scmp.ne.s32.totalorder %s191, %s205
      %p207 = scmp.eq.s32.totalorder %s34, 0
      %p208 = por %p206, %p207
      %s209 = ssub.s32 %s28, %s35
      %p210 = scmp.eq.s32.totalorder %s209, 0
      %s212 = sadd.s32 %s211, 1
      %s213 = scalar_select %p210, %s211, %s212
      %p216 = pneg %p210
      %p217 = scmp.eq.s32.totalorder %s28, 1
      %p218 = por %p216, %p217
      %p219 = scmp.ne.s32.totalorder %s211, %s214
      %p220 = scmp.eq.s32.totalorder %s28, 0
      %p221 = por %p219, %p220
      %p222 = scmp.ne.s32.totalorder %s211, %s214
      %p223 = scmp.eq.s32.totalorder %s33, 1
      %p224 = por %p222, %p223
      %p225 = scmp.ne.s32.totalorder %s214, %s215
      %p226 = scmp.eq.s32.totalorder %s33, 0
      %p227 = por %p225, %p226
      %p228 = scmp.ne.s32.totalorder %s214, %s215
      %p229 = scmp.eq.s32.totalorder %s34, 1
      %p230 = por %p228, %p229
      %p232 = scmp.ne.s32.totalorder %s215, %s231
      %p233 = scmp.eq.s32.totalorder %s34, 0
      %p234 = por %p232, %p233
      %s235 = ssub.s32 %s28, %s35
      %p236 = scmp.eq.s32.totalorder %s235, 0
      %s238 = sadd.s32 %s237, 1
      %s239 = scalar_select %p236, %s237, %s238
      %p242 = pneg %p236
      %p243 = scmp.eq.s32.totalorder %s28, 1
      %p244 = por %p242, %p243
      %p245 = scmp.ne.s32.totalorder %s237, %s240
      %p246 = scmp.eq.s32.totalorder %s28, 0
      %p247 = por %p245, %p246
      %p248 = scmp.ne.s32.totalorder %s237, %s240
      %p249 = scmp.eq.s32.totalorder %s33, 1
      %p250 = por %p248, %p249
      %p251 = scmp.ne.s32.totalorder %s240, %s241
      %p252 = scmp.eq.s32.totalorder %s33, 0
      %p253 = por %p251, %p252
      %p254 = scmp.ne.s32.totalorder %s240, %s241
      %p255 = scmp.eq.s32.totalorder %s34, 1
      %p256 = por %p254, %p255
      %p258 = scmp.ne.s32.totalorder %s241, %s257
      %p259 = scmp.eq.s32.totalorder %s34, 0
      %p260 = por %p258, %p259
      %s261 = ssub.s32 %s28, %s35
      %p262 = scmp.eq.s32.totalorder %s261, 0
      %s264 = sadd.s32 %s263, 1
      %s265 = scalar_select %p262, %s263, %s264
      %p268 = pneg %p262
      %p269 = scmp.eq.s32.totalorder %s28, 1
      %p270 = por %p268, %p269
      %p271 = scmp.ne.s32.totalorder %s263, %s266
      %p272 = scmp.eq.s32.totalorder %s28, 0
      %p273 = por %p271, %p272
      %p274 = scmp.ne.s32.totalorder %s263, %s266
      %p275 = scmp.eq.s32.totalorder %s33, 1
      %p276 = por %p274, %p275
      %p277 = scmp.ne.s32.totalorder %s266, %s267
      %p278 = scmp.eq.s32.totalorder %s33, 0
      %p279 = por %p277, %p278
      %p280 = scmp.ne.s32.totalorder %s266, %s267
      %p281 = scmp.eq.s32.totalorder %s34, 1
      %p282 = por %p280, %p281
      %p284 = scmp.ne.s32.totalorder %s267, %s283
      %p285 = scmp.eq.s32.totalorder %s34, 0
      %p286 = por %p284, %p285
      %p287 = scmp.le.s32.totalorder 1, %s28
      %p288 = scmp.lt.s32.totalorder %s28, 3
      %p289 = pnand %p287, %p288
      %p290 = pneg %p289
      // Predicated region
      $region9: #{tpu_custom_call.1} parent=5 // pred_check
        _
      $region10: #{tpu_custom_call.1} parent=5 // pred_check_branch
        %292 = sbr.rel (%p289) target = $region12
      $region11: #{tpu_custom_call.1} parent=5 // pred_region
        %s293 = ssub.s32 %s28, 1
        // Predicated region
        $region13: #{tpu_custom_call.1} parent=11 // pred_check
          %p294 = pneg %p75
        $region14: #{tpu_custom_call.1} parent=11 // pred_check_branch
          %296 = sbr.rel (%p294) target = $region16
        $region15: #{tpu_custom_call.1} parent=11 // pred_region
          %s298 = ssub.s32 256, 256
          %299 = vsyncadd [#allocation8], %s298
          %s300 = sshll.u32 [#allocation7], 4
          %s301 = int_to_ptr.vmem [resolvable:$true] %s300
          %306 = dma.hbm_to_vmem [thread:$0]  %s1, 256, %s301, [#allocation8], 128, 128, 8
        $region16: #{tpu_custom_call.1} parent=11 // pred_fallthru
          _
        // Predicated region
        $region17: #{tpu_custom_call.1} parent=11 // pred_check
          %p307 = pneg %p96
        $region18: #{tpu_custom_call.1} parent=11 // pred_check_branch
          %309 = sbr.rel (%p307) target = $region20
        $region19: #{tpu_custom_call.1} parent=11 // pred_region
          %s311 = ssub.s32 512, 512
          %312 = vsyncadd [#allocation8], %s311
          %s313 = sshll.u32 [#allocation9], 4
          %s314 = int_to_ptr.vmem [resolvable:$true] %s313
          %319 = dma.hbm_to_vmem [thread:$0]  %s2, 512, %s314, [#allocation8], 128, 128, 8
        $region20: #{tpu_custom_call.1} parent=11 // pred_fallthru
          _
        // Predicated region
        $region21: #{tpu_custom_call.1} parent=11 // pred_check
          %p320 = pneg %p117
        $region22: #{tpu_custom_call.1} parent=11 // pred_check_branch
          %322 = sbr.rel (%p320) target = $region24
        $region23: #{tpu_custom_call.1} parent=11 // pred_region
          _
        $region24: #{tpu_custom_call.1} parent=11 // pred_fallthru
          _
        // Predicated region
        $region25: #{tpu_custom_call.1} parent=11 // pred_check
          %p323 = pneg %p138
        $region26: #{tpu_custom_call.1} parent=11 // pred_check_branch
          %325 = sbr.rel (%p323) target = $region28
        $region27: #{tpu_custom_call.1} parent=11 // pred_region
          %s327 = ssub.s32 1024, 1024
          %328 = vsyncadd [#allocation11], %s327
          %s329 = sshll.u32 [#allocation10], 4
          %s330 = int_to_ptr.vmem [resolvable:$true] %s329
          %335 = dma.hbm_to_vmem [thread:$0]  %s4, 1024, %s330, [#allocation11], 128, 128, 8
        $region28: #{tpu_custom_call.1} parent=11 // pred_fallthru
          _
        // Predicated region
        $region29: #{tpu_custom_call.1} parent=11 // pred_check
          %p336 = pneg %p159
        $region30: #{tpu_custom_call.1} parent=11 // pred_check_branch
          %338 = sbr.rel (%p336) target = $region32
        $region31: #{tpu_custom_call.1} parent=11 // pred_region
          _
        $region32: #{tpu_custom_call.1} parent=11 // pred_fallthru
          _
        // Predicated region
        $region33: #{tpu_custom_call.1} parent=11 // pred_check
          %p339 = pneg %p180
        $region34: #{tpu_custom_call.1} parent=11 // pred_check_branch
          %341 = sbr.rel (%p339) target = $region36
        $region35: #{tpu_custom_call.1} parent=11 // pred_region
          %s343 = ssub.s32 512, 512
          %344 = vsyncadd [#allocation11], %s343
          %s345 = sshll.u32 [#allocation12], 4
          %s346 = int_to_ptr.vmem [resolvable:$true] %s345
          %351 = dma.hbm_to_vmem [thread:$0]  %s6, 512, %s346, [#allocation11], 128, 128, 8
        $region36: #{tpu_custom_call.1} parent=11 // pred_fallthru
          _
        // Predicated region
        $region37: #{tpu_custom_call.1} parent=11 // pred_check
          %p352 = pneg %p201
        $region38: #{tpu_custom_call.1} parent=11 // pred_check_branch
          %354 = sbr.rel (%p352) target = $region40
        $region39: #{tpu_custom_call.1} parent=11 // pred_region
          _
        $region40: #{tpu_custom_call.1} parent=11 // pred_fallthru
          _
      $region12: #{tpu_custom_call.1} parent=5 // pred_fallthru
        _
      %p355 = scmp.lt.s32.totalorder %s28, 2
      // Predicated region
      $region41: #{tpu_custom_call.1} parent=5 // pred_check
        %p356 = pneg %p355
      $region42: #{tpu_custom_call.1} parent=5 // pred_check_branch
        %358 = sbr.rel (%p356) target = $region44
      $region43: #{tpu_custom_call.1} parent=5 // pred_region
        // Predicated region
        $region45: #{tpu_custom_call.1} parent=43 // pred_check
          %p359 = pneg %p48
        $region46: #{tpu_custom_call.1} parent=43 // pred_check_branch
          %361 = sbr.rel (%p359) target = $region48
        $region47: #{tpu_custom_call.1} parent=43 // pred_region
          %s362 = sand.u32 %s38, 1
          %s363 = scalar_lea.sflag [#allocation5], %s362
          %s364 = sand.u32 %s38, 1
          %s365 = smul.addr %s364, 8
          %s366 = scalar_lea.vmem [#allocation4], %s365
          %s368 = ssub.s32 128, 128
          %369 = vsyncadd %s363, %s368
          %s370 = smul.addr %s28, 128
          %s371 = scalar_lea.hbm %s0, %s370
          %s373 = sshll.u32 %s366, 4
          %s374 = int_to_ptr.vmem [resolvable:$true] %s373
          %376 = dma.hbm_to_vmem [thread:$0]  %s371, 128, %s374, %s363
        $region48: #{tpu_custom_call.1} parent=43 // pred_fallthru
          _
      $region44: #{tpu_custom_call.1} parent=5 // pred_fallthru
        _
      %p377 = scmp.le.s32.totalorder 1, %s28
      %p378 = scmp.lt.s32.totalorder %s28, 3
      %p379 = pnand %p377, %p378
      %p380 = pneg %p379
      // Predicated region
      $region49: #{tpu_custom_call.1} parent=5 // pred_check
        _
      $region50: #{tpu_custom_call.1} parent=5 // pred_check_branch
        %382 = sbr.rel (%p379) target = $region52
      $region51: #{tpu_custom_call.1} parent=5 // pred_region
        %s383 = ssub.s32 %s28, 1
        %s384 = sand.u32 %s41, 1
        %s385 = scalar_lea.sflag [#allocation5], %s384
        %s386 = sand.u32 %s41, 1
        %s387 = smul.addr %s386, 8
        %s388 = scalar_lea.vmem [#allocation4], %s387
        // Predicated region
        $region53: #{tpu_custom_call.1} parent=51 // pred_check
          %p389 = pneg %p54
        $region54: #{tpu_custom_call.1} parent=51 // pred_check_branch
          %391 = sbr.rel (%p389) target = $region56
        $region55: #{tpu_custom_call.1} parent=51 // pred_region
          %392 = dma.done %s385, 128
        $region56: #{tpu_custom_call.1} parent=51 // pred_fallthru
          _
        // Predicated region
        $region57: #{tpu_custom_call.1} parent=51 // pred_check
          %p393 = pneg %p75
        $region58: #{tpu_custom_call.1} parent=51 // pred_check_branch
          %395 = sbr.rel (%p393) target = $region60
        $region59: #{tpu_custom_call.1} parent=51 // pred_region
          %396 = dma.done [#allocation8], 256
        $region60: #{tpu_custom_call.1} parent=51 // pred_fallthru
          _
        // Predicated region
        $region61: #{tpu_custom_call.1} parent=51 // pred_check
          %p397 = pneg %p96
        $region62: #{tpu_custom_call.1} parent=51 // pred_check_branch
          %399 = sbr.rel (%p397) target = $region64
        $region63: #{tpu_custom_call.1} parent=51 // pred_region
          %400 = dma.done [#allocation8], 512
        $region64: #{tpu_custom_call.1} parent=51 // pred_fallthru
          _
        // Predicated region
        $region65: #{tpu_custom_call.1} parent=51 // pred_check
          %p401 = pneg %p138
        $region66: #{tpu_custom_call.1} parent=51 // pred_check_branch
          %403 = sbr.rel (%p401) target = $region68
        $region67: #{tpu_custom_call.1} parent=51 // pred_region
          %404 = dma.done [#allocation11], 1024
        $region68: #{tpu_custom_call.1} parent=51 // pred_fallthru
          _
        // Predicated region
        $region69: #{tpu_custom_call.1} parent=51 // pred_check
          %p405 = pneg %p180
        $region70: #{tpu_custom_call.1} parent=51 // pred_check_branch
          %407 = sbr.rel (%p405) target = $region72
        $region71: #{tpu_custom_call.1} parent=51 // pred_region
          %408 = dma.done [#allocation11], 512
        $region72: #{tpu_custom_call.1} parent=51 // pred_fallthru
          _
        %s409 = sand.u32 %s41, 1
        %s410 = scalar_lea.sflag [#allocation5], %s409
        %s411 = sand.u32 %s41, 1
        %s412 = smul.addr %s411, 8
        %s413 = scalar_lea.vmem [#allocation4], %s412
        %p414 = pneg %p54
        %p415 = pneg %p51
        %p416 = pneg %p75
        %p417 = pneg %p72
        %p418 = pneg %p96
        %p419 = pneg %p93
        %p420 = pneg %p117
        %p421 = pneg %p114
        %p422 = pneg %p138
        %p423 = pneg %p135
        %p424 = pneg %p159
        %p425 = pneg %p156
        %p426 = pneg %p180
        %p427 = pneg %p177
        %p428 = pneg %p201
        %p429 = pneg %p198
        %p430 = pneg %p227
        %p431 = pneg %p224
        %s432 = sand.u32 %s214, 1
        %s433 = scalar_lea.sflag [#allocation6], %s432
        %s434 = sand.u32 %s214, 1
        %s435 = smul.addr %s434, 8
        %s436 = scalar_lea.vmem [#allocation13], %s435
        %p437 = pneg %p253
        %p438 = pneg %p250
        %s439 = sand.u32 %s33, 1
        %s440 = scalar_lea.sflag [#allocation15], %s439
        %s441 = sand.u32 %s240, 1
        %s442 = smul.addr %s441, 2
        %s443 = scalar_lea.vmem [#allocation14], %s442
        %p444 = pneg %p279
        %p445 = pneg %p276
        %s446 = sand.u32 %s33, 1
        %s447 = scalar_lea.sflag [#allocation15], %s446
        %s448 = sand.u32 %s266, 1
        %s449 = smul.addr %s448, 2
        %s450 = scalar_lea.vmem [#allocation16], %s449
        %v451 = vld [vmem:[%s388] sm:$0xff]
        %v452 = vld [vmem:[#allocation7] sm:$0xff]
        %v453 = vld [vmem:[#allocation7 + $0x8] sm:$0xff]
        %v454 = vld [vmem:[%s3] sm:$0x1]
        %v456 = vlaneseq
        %v457 = vshrl.u32 %v456, 7
        %v458 = vsub.s32 0, %v457
        %v459 = vrot.slane %v454, %v458
        %vm461 = vcmask 130048
        %v463 = vsel %vm461, %v451, 0
        %465 = vmatprep.subr.mxu0 0.0
        %466 = vmatpush1.msra.mxu0 %v452
        %467 = vmatprep.subr.mxu0 0.0
        %468 = vmatpush1.msra.mxu0 %v453
        %469 = vmatprep.subr.mxu0 0.0
        %470 = vmatpush1.msra.mxu0 0.0
        %471 = vmatprep.subr.mxu0 0.0
        %472 = vmatpush1.msra.mxu0 0.0
        %473 = vmatprep.subr.mxu0 0.0
        %474 = vmatpush1.msra.mxu0 0.0
        %475 = vmatprep.subr.mxu0 0.0
        %476 = vmatpush1.msra.mxu0 0.0
        %477 = vmatprep.subr.mxu0 0.0
        %478 = vmatpush1.msra.mxu0 0.0
        %479 = vmatprep.subr.mxu0 0.0
        %480 = vmatpush1.msra.mxu0 0.0
        %481 = vmatprep.subr.mxu0 0.0
        %482 = vmatpush1.msra.mxu0 0.0
        %483 = vmatprep.subr.mxu0 0.0
        %484 = vmatpush1.msra.mxu0 0.0
        %485 = vmatprep.subr.mxu0 0.0
        %486 = vmatpush1.msra.mxu0 0.0
        %487 = vmatprep.subr.mxu0 0.0
        %488 = vmatpush1.msra.mxu0 0.0
        %489 = vmatprep.subr.mxu0 0.0
        %490 = vmatpush1.msra.mxu0 0.0
        %491 = vmatprep.subr.mxu0 0.0
        %492 = vmatpush1.msra.mxu0 0.0
        %493 = vmatprep.subr.mxu0 0.0
        %494 = vmatpush1.msra.mxu0 0.0
        %495 = vmatprep.subr.mxu0 0.0
        %496 = vmatpush1.msra.mxu0 0.0
        %497 = vmatprep.subr.mxu0 0.0
        %498 = vmatpush1.msra.mxu0 0.0
        %499 = vmatprep.subr.mxu0 0.0
        %500 = vmatpush1.msra.mxu0 0.0
        %501 = vmatprep.subr.mxu0 0.0
        %502 = vmatpush1.msra.mxu0 0.0
        %503 = vmatprep.subr.mxu0 0.0
        %504 = vmatpush1.msra.mxu0 0.0
        %505 = vmatprep.subr.mxu0 0.0
        %506 = vmatpush1.msra.mxu0 0.0
        %507 = vmatprep.subr.mxu0 0.0
        %508 = vmatpush1.msra.mxu0 0.0
        %509 = vmatprep.subr.mxu0 0.0
        %510 = vmatpush1.msra.mxu0 0.0
        %511 = vmatprep.subr.mxu0 0.0
        %512 = vmatpush1.msra.mxu0 0.0
        %513 = vmatprep.subr.mxu0 0.0
        %514 = vmatpush1.msra.mxu0 0.0
        %515 = vmatprep.subr.mxu0 0.0
        %516 = vmatpush1.msra.mxu0 0.0
        %517 = vmatprep.subr.mxu0 0.0
        %518 = vmatpush1.msra.mxu0 0.0
        %519 = vmatprep.subr.mxu0 0.0
        %520 = vmatpush1.msra.mxu0 0.0
        %521 = vmatprep.subr.mxu0 0.0
        %522 = vmatpush1.msra.mxu0 0.0
        %523 = vmatprep.subr.mxu0 0.0
        %524 = vmatpush1.msra.mxu0 0.0
        %525 = vmatprep.subr.mxu0 0.0
        %526 = vmatpush1.msra.mxu0 0.0
        %527 = vmatprep.subr.mxu0 0.0
        %528 = vmatpush1.msra.mxu0 0.0
        %529 = vmatprep.mubr.f32.mxu0 0.0
        %530 = vmatmul.mubr.f32.gmra.mrb[0].mxu0 %v463
        %v531 = vpop.f32.mrb[0].mxu0
        %v532 = vadd.f32 %v459, %v531
        %v533 = vpop.f32.mrb[0].mxu0
        %534 = vdwg.mxu0
        %535 = vst [vmem:[#allocation2] sm:$0xff] %v532
        %v536 = vld [vmem:[#allocation9] sm:$0xff]
        %v537 = vld [vmem:[#allocation9 + $0x8] sm:$0xff]
        %v538 = vld [vmem:[#allocation9 + $0x10] sm:$0xff]
        %v539 = vld [vmem:[#allocation9 + $0x18] sm:$0xff]
        %v540 = vld [vmem:[#allocation10] sm:$0xff]
        %v541 = vld [vmem:[#allocation10 + $0x8] sm:$0xff]
        %v542 = vld [vmem:[#allocation10 + $0x10] sm:$0xff]
        %v543 = vld [vmem:[#allocation10 + $0x18] sm:$0xff]
        %v544 = vld [vmem:[#allocation10 + $0x20] sm:$0xff]
        %v545 = vld [vmem:[#allocation10 + $0x28] sm:$0xff]
        %v546 = vld [vmem:[#allocation10 + $0x30] sm:$0xff]
        %v547 = vld [vmem:[#allocation10 + $0x38] sm:$0xff]
        %v548 = vld [vmem:[%s5] sm:$0x1]
        %v549 = vld [vmem:[#allocation2] sm:$0x1]
        %vm550 = vcmask 261120
        %v552 = vsel %vm550, 0.0, 0
        %554 = vmatprep.subr.mxu0 0.0
        %555 = vmatpush1.msra.mxu0 %v536
        %556 = vmatprep.subr.mxu0 0.0
        %557 = vmatpush1.msra.mxu0 %v537
        %558 = vmatprep.subr.mxu0 0.0
        %559 = vmatpush1.msra.mxu0 %v538
        %560 = vmatprep.subr.mxu0 0.0
        %561 = vmatpush1.msra.mxu0 %v539
        %562 = vmatprep.subr.mxu0 0.0
        %563 = vmatpush1.msra.mxu0 0.0
        %564 = vmatprep.subr.mxu0 0.0
        %565 = vmatpush1.msra.mxu0 0.0
        %566 = vmatprep.subr.mxu0 0.0
        %567 = vmatpush1.msra.mxu0 0.0
        %568 = vmatprep.subr.mxu0 0.0
        %569 = vmatpush1.msra.mxu0 0.0
        %570 = vmatprep.subr.mxu0 0.0
        %571 = vmatpush1.msra.mxu0 0.0
        %572 = vmatprep.subr.mxu0 0.0
        %573 = vmatpush1.msra.mxu0 0.0
        %574 = vmatprep.subr.mxu0 0.0
        %575 = vmatpush1.msra.mxu0 0.0
        %576 = vmatprep.subr.mxu0 0.0
        %577 = vmatpush1.msra.mxu0 0.0
        %578 = vmatprep.subr.mxu0 0.0
        %579 = vmatpush1.msra.mxu0 0.0
        %580 = vmatprep.subr.mxu0 0.0
        %581 = vmatpush1.msra.mxu0 0.0
        %582 = vmatprep.subr.mxu0 0.0
        %583 = vmatpush1.msra.mxu0 0.0
        %584 = vmatprep.subr.mxu0 0.0
        %585 = vmatpush1.msra.mxu0 0.0
        %586 = vmatprep.subr.mxu0 0.0
        %587 = vmatpush1.msra.mxu0 0.0
        %588 = vmatprep.subr.mxu0 0.0
        %589 = vmatpush1.msra.mxu0 0.0
        %590 = vmatprep.subr.mxu0 0.0
        %591 = vmatpush1.msra.mxu0 0.0
        %592 = vmatprep.subr.mxu0 0.0
        %593 = vmatpush1.msra.mxu0 0.0
        %594 = vmatprep.subr.mxu0 0.0
        %595 = vmatpush1.msra.mxu0 0.0
        %596 = vmatprep.subr.mxu0 0.0
        %597 = vmatpush1.msra.mxu0 0.0
        %598 = vmatprep.subr.mxu0 0.0
        %599 = vmatpush1.msra.mxu0 0.0
        %600 = vmatprep.subr.mxu0 0.0
        %601 = vmatpush1.msra.mxu0 0.0
        %602 = vmatprep.subr.mxu0 0.0
        %603 = vmatpush1.msra.mxu0 0.0
        %604 = vmatprep.subr.mxu0 0.0
        %605 = vmatpush1.msra.mxu0 0.0
        %606 = vmatprep.subr.mxu0 0.0
        %607 = vmatpush1.msra.mxu0 0.0
        %608 = vmatprep.subr.mxu0 0.0
        %609 = vmatpush1.msra.mxu0 0.0
        %610 = vmatprep.subr.mxu0 0.0
        %611 = vmatpush1.msra.mxu0 0.0
        %612 = vmatprep.subr.mxu0 0.0
        %613 = vmatpush1.msra.mxu0 0.0
        %614 = vmatprep.subr.mxu0 0.0
        %615 = vmatpush1.msra.mxu0 0.0
        %616 = vmatprep.subr.mxu0 0.0
        %617 = vmatpush1.msra.mxu0 0.0
        %618 = vmatprep.mubr.f32.mxu0 0.0
        %619 = vmatmul.mubr.f32.gmra.mrb[0].mxu0 %v552
        %v620 = vpop.f32.mrb[0].mxu0
        %v621 = vadd.f32 0.0, %v620
        %v622 = vpop.f32.mrb[0].mxu0
        %623 = vdwg.mxu0
        %v624 = vadd.f32 %v549, %v621
        %v625 = vxor.u32 %v624, 2147483648
        %v626 = vmul.f32 %v625, 1.442695
        %v627 = vpow.pop %v626
        %v628 = vadd.f32 %v627, 1.0
        %v629 = vrcp.pop %v628
        %v630 = vmul.f32 1.0, %v629
        %v631 = vtanh.pop %v624
        %v632 = vmul.f32 %v630, 0.0
        %634 = vrot.lane.b32.xlu0 %v631, 64
        %v635 = vpop.permute.xlu0 %634
        %v637 = vmul.f32 %v630, %v635
        %639 = vrot.lane.b32.xlu0 %v637, 32
        %v640 = vpop.permute.xlu0 %639
        %v642 = vadd.f32 %v632, %v640
        %v643 = vtanh.pop %v642
        %645 = vrot.lane.b32.xlu0 %v643, 64
        %v646 = vpop.permute.xlu0 %645
        %v648 = vmul.f32 %v630, %v646
        %vm649 = vcmask 523264
        %v650 = vsel %vm649, 0.0, 0
        %652 = vmatprep.subr.mxu0 0.0
        %653 = vmatpush1.msra.mxu0 %v540
        %654 = vmatprep.subr.mxu0 0.0
        %655 = vmatpush1.msra.mxu0 %v541
        %656 = vmatprep.subr.mxu0 0.0
        %657 = vmatpush1.msra.mxu0 %v542
        %658 = vmatprep.subr.mxu0 0.0
        %659 = vmatpush1.msra.mxu0 %v543
        %660 = vmatprep.subr.mxu0 0.0
        %661 = vmatpush1.msra.mxu0 %v544
        %662 = vmatprep.subr.mxu0 0.0
        %663 = vmatpush1.msra.mxu0 %v545
        %664 = vmatprep.subr.mxu0 0.0
        %665 = vmatpush1.msra.mxu0 %v546
        %666 = vmatprep.subr.mxu0 0.0
        %667 = vmatpush1.msra.mxu0 %v547
        %668 = vmatprep.subr.mxu0 0.0
        %669 = vmatpush1.msra.mxu0 0.0
        %670 = vmatprep.subr.mxu0 0.0
        %671 = vmatpush1.msra.mxu0 0.0
        %672 = vmatprep.subr.mxu0 0.0
        %673 = vmatpush1.msra.mxu0 0.0
        %674 = vmatprep.subr.mxu0 0.0
        %675 = vmatpush1.msra.mxu0 0.0
        %676 = vmatprep.subr.mxu0 0.0
        %677 = vmatpush1.msra.mxu0 0.0
        %678 = vmatprep.subr.mxu0 0.0
        %679 = vmatpush1.msra.mxu0 0.0
        %680 = vmatprep.subr.mxu0 0.0
        %681 = vmatpush1.msra.mxu0 0.0
        %682 = vmatprep.subr.mxu0 0.0
        %683 = vmatpush1.msra.mxu0 0.0
        %684 = vmatprep.subr.mxu0 0.0
        %685 = vmatpush1.msra.mxu0 0.0
        %686 = vmatprep.subr.mxu0 0.0
        %687 = vmatpush1.msra.mxu0 0.0
        %688 = vmatprep.subr.mxu0 0.0
        %689 = vmatpush1.msra.mxu0 0.0
        %690 = vmatprep.subr.mxu0 0.0
        %691 = vmatpush1.msra.mxu0 0.0
        %692 = vmatprep.subr.mxu0 0.0
        %693 = vmatpush1.msra.mxu0 0.0
        %694 = vmatprep.subr.mxu0 0.0
        %695 = vmatpush1.msra.mxu0 0.0
        %696 = vmatprep.subr.mxu0 0.0
        %697 = vmatpush1.msra.mxu0 0.0
        %698 = vmatprep.subr.mxu0 0.0
        %699 = vmatpush1.msra.mxu0 0.0
        %700 = vmatprep.subr.mxu0 0.0
        %701 = vmatpush1.msra.mxu0 0.0
        %702 = vmatprep.subr.mxu0 0.0
        %703 = vmatpush1.msra.mxu0 0.0
        %704 = vmatprep.subr.mxu0 0.0
        %705 = vmatpush1.msra.mxu0 0.0
        %706 = vmatprep.subr.mxu0 0.0
        %707 = vmatpush1.msra.mxu0 0.0
        %708 = vmatprep.subr.mxu0 0.0
        %709 = vmatpush1.msra.mxu0 0.0
        %710 = vmatprep.subr.mxu0 0.0
        %711 = vmatpush1.msra.mxu0 0.0
        %712 = vmatprep.subr.mxu0 0.0
        %713 = vmatpush1.msra.mxu0 0.0
        %714 = vmatprep.subr.mxu0 0.0
        %715 = vmatpush1.msra.mxu0 0.0
        %716 = vmatprep.mubr.f32.mxu0 0.0
        %717 = vmatmul.mubr.f32.gmra.mrb[0].mxu0 %v650
        %v718 = vpop.f32.mrb[0].mxu0
        %v719 = vadd.f32 %v548, %v718
        %v720 = vpop.f32.mrb[0].mxu0
        %721 = vdwg.mxu0
        %v722 = vxor.u32 %v719, 2147483648
        %v723 = vmul.f32 %v722, 1.442695
        %v724 = vpow.pop %v723
        %v725 = vadd.f32 %v724, 1.0
        %v726 = vrcp.pop %v725
        %v727 = vmul.f32 1.0, %v726
        %v728 = vtanh.pop %v719
        %v729 = vmul.f32 %v727, 0.0
        %731 = vrot.lane.b32.xlu0 %v728, 64
        %v732 = vpop.permute.xlu0 %731
        %v734 = vmul.f32 %v727, %v732
        %736 = vrot.lane.b32.xlu0 %v734, 32
        %v737 = vpop.permute.xlu0 %736
        %v739 = vadd.f32 %v729, %v737
        %v740 = vtanh.pop %v739
        %742 = vrot.lane.b32.xlu0 %v740, 64
        %v743 = vpop.permute.xlu0 %742
        %v745 = vmul.f32 %v727, %v743
        %747 = vrot.lane.b32.xlu0 %v745, 32
        %v748 = vpop.permute.xlu0 %747
        %vm750 = vcmask 253952
        %751 = vst.msk [vmem:[#allocation3] sm:$0x1] %vm750, %v748
        %v752 = vld [vmem:[#allocation2 + $0x1] sm:$0x1]
        %754 = vrot.lane.b32.xlu0 %v648, 32
        %v755 = vpop.permute.xlu0 %754
        %v756 = vsel %vm550, %v755, 0
        %758 = vmatprep.subr.mxu0 0.0
        %759 = vmatpush1.msra.mxu0 %v536
        %760 = vmatprep.subr.mxu0 0.0
        %761 = vmatpush1.msra.mxu0 %v537
        %762 = vmatprep.subr.mxu0 0.0
        %763 = vmatpush1.msra.mxu0 %v538
        %764 = vmatprep.subr.mxu0 0.0
        %765 = vmatpush1.msra.mxu0 %v539
        %766 = vmatprep.subr.mxu0 0.0
        %767 = vmatpush1.msra.mxu0 0.0
        %768 = vmatprep.subr.mxu0 0.0
        %769 = vmatpush1.msra.mxu0 0.0
        %770 = vmatprep.subr.mxu0 0.0
        %771 = vmatpush1.msra.mxu0 0.0
        %772 = vmatprep.subr.mxu0 0.0
        %773 = vmatpush1.msra.mxu0 0.0
        %774 = vmatprep.subr.mxu0 0.0
        %775 = vmatpush1.msra.mxu0 0.0
        %776 = vmatprep.subr.mxu0 0.0
        %777 = vmatpush1.msra.mxu0 0.0
        %778 = vmatprep.subr.mxu0 0.0
        %779 = vmatpush1.msra.mxu0 0.0
        %780 = vmatprep.subr.mxu0 0.0
        %781 = vmatpush1.msra.mxu0 0.0
        %782 = vmatprep.subr.mxu0 0.0
        %783 = vmatpush1.msra.mxu0 0.0
        %784 = vmatprep.subr.mxu0 0.0
        %785 = vmatpush1.msra.mxu0 0.0
        %786 = vmatprep.subr.mxu0 0.0
        %787 = vmatpush1.msra.mxu0 0.0
        %788 = vmatprep.subr.mxu0 0.0
        %789 = vmatpush1.msra.mxu0 0.0
        %790 = vmatprep.subr.mxu0 0.0
        %791 = vmatpush1.msra.mxu0 0.0
        %792 = vmatprep.subr.mxu0 0.0
        %793 = vmatpush1.msra.mxu0 0.0
        %794 = vmatprep.subr.mxu0 0.0
        %795 = vmatpush1.msra.mxu0 0.0
        %796 = vmatprep.subr.mxu0 0.0
        %797 = vmatpush1.msra.mxu0 0.0
        %798 = vmatprep.subr.mxu0 0.0
        %799 = vmatpush1.msra.mxu0 0.0
        %800 = vmatprep.subr.mxu0 0.0
        %801 = vmatpush1.msra.mxu0 0.0
        %802 = vmatprep.subr.mxu0 0.0
        %803 = vmatpush1.msra.mxu0 0.0
        %804 = vmatprep.subr.mxu0 0.0
        %805 = vmatpush1.msra.mxu0 0.0
        %806 = vmatprep.subr.mxu0 0.0
        %807 = vmatpush1.msra.mxu0 0.0
        %808 = vmatprep.subr.mxu0 0.0
        %809 = vmatpush1.msra.mxu0 0.0
        %810 = vmatprep.subr.mxu0 0.0
        %811 = vmatpush1.msra.mxu0 0.0
        %812 = vmatprep.subr.mxu0 0.0
        %813 = vmatpush1.msra.mxu0 0.0
        %814 = vmatprep.subr.mxu0 0.0
        %815 = vmatpush1.msra.mxu0 0.0
        %816 = vmatprep.subr.mxu0 0.0
        %817 = vmatpush1.msra.mxu0 0.0
        %818 = vmatprep.subr.mxu0 0.0
        %819 = vmatpush1.msra.mxu0 0.0
        %820 = vmatprep.subr.mxu0 0.0
        %821 = vmatpush1.msra.mxu0 0.0
        %822 = vmatprep.mubr.f32.mxu0 0.0
        %823 = vmatmul.mubr.f32.gmra.mrb[0].mxu0 %v756
        %v824 = vpop.f32.mrb[0].mxu0
        %v825 = vadd.f32 0.0, %v824
        %v826 = vpop.f32.mrb[0].mxu0
        %827 = vdwg.mxu0
        %v828 = vadd.f32 %v752, %v825
        %v829 = vxor.u32 %v828, 2147483648
        %v830 = vmul.f32 %v829, 1.442695
        %v831 = vpow.pop %v830
        %v832 = vadd.f32 %v831, 1.0
        %v833 = vrcp.pop %v832
        %v834 = vmul.f32 1.0, %v833
        %v835 = vtanh.pop %v828
        %v836 = vmul.f32 %v834, %v642
        %838 = vrot.lane.b32.xlu0 %v835, 64
        %v839 = vpop.permute.xlu0 %838
        %v841 = vmul.f32 %v834, %v839
        %843 = vrot.lane.b32.xlu0 %v841, 32
        %v844 = vpop.permute.xlu0 %843
        %v846 = vadd.f32 %v836, %v844
        %v847 = vtanh.pop %v846
        %849 = vrot.lane.b32.xlu0 %v847, 64
        %v850 = vpop.permute.xlu0 %849
        %v852 = vmul.f32 %v834, %v850
        %v854 = vsel %vm550, %v755, 0.0
        %v856 = vsel %vm649, %v854, 0
        %858 = vmatprep.subr.mxu0 0.0
        %859 = vmatpush1.msra.mxu0 %v540
        %860 = vmatprep.subr.mxu0 0.0
        %861 = vmatpush1.msra.mxu0 %v541
        %862 = vmatprep.subr.mxu0 0.0
        %863 = vmatpush1.msra.mxu0 %v542
        %864 = vmatprep.subr.mxu0 0.0
        %865 = vmatpush1.msra.mxu0 %v543
        %866 = vmatprep.subr.mxu0 0.0
        %867 = vmatpush1.msra.mxu0 %v544
        %868 = vmatprep.subr.mxu0 0.0
        %869 = vmatpush1.msra.mxu0 %v545
        %870 = vmatprep.subr.mxu0 0.0
        %871 = vmatpush1.msra.mxu0 %v546
        %872 = vmatprep.subr.mxu0 0.0
        %873 = vmatpush1.msra.mxu0 %v547
        %874 = vmatprep.subr.mxu0 0.0
        %875 = vmatpush1.msra.mxu0 0.0
        %876 = vmatprep.subr.mxu0 0.0
        %877 = vmatpush1.msra.mxu0 0.0
        %878 = vmatprep.subr.mxu0 0.0
        %879 = vmatpush1.msra.mxu0 0.0
        %880 = vmatprep.subr.mxu0 0.0
        %881 = vmatpush1.msra.mxu0 0.0
        %882 = vmatprep.subr.mxu0 0.0
        %883 = vmatpush1.msra.mxu0 0.0
        %884 = vmatprep.subr.mxu0 0.0
        %885 = vmatpush1.msra.mxu0 0.0
        %886 = vmatprep.subr.mxu0 0.0
        %887 = vmatpush1.msra.mxu0 0.0
        %888 = vmatprep.subr.mxu0 0.0
        %889 = vmatpush1.msra.mxu0 0.0
        %890 = vmatprep.subr.mxu0 0.0
        %891 = vmatpush1.msra.mxu0 0.0
        %892 = vmatprep.subr.mxu0 0.0
        %893 = vmatpush1.msra.mxu0 0.0
        %894 = vmatprep.subr.mxu0 0.0
        %895 = vmatpush1.msra.mxu0 0.0
        %896 = vmatprep.subr.mxu0 0.0
        %897 = vmatpush1.msra.mxu0 0.0
        %898 = vmatprep.subr.mxu0 0.0
        %899 = vmatpush1.msra.mxu0 0.0
        %900 = vmatprep.subr.mxu0 0.0
        %901 = vmatpush1.msra.mxu0 0.0
        %902 = vmatprep.subr.mxu0 0.0
        %903 = vmatpush1.msra.mxu0 0.0
        %904 = vmatprep.subr.mxu0 0.0
        %905 = vmatpush1.msra.mxu0 0.0
        %906 = vmatprep.subr.mxu0 0.0
        %907 = vmatpush1.msra.mxu0 0.0
        %908 = vmatprep.subr.mxu0 0.0
        %909 = vmatpush1.msra.mxu0 0.0
        %910 = vmatprep.subr.mxu0 0.0
        %911 = vmatpush1.msra.mxu0 0.0
        %912 = vmatprep.subr.mxu0 0.0
        %913 = vmatpush1.msra.mxu0 0.0
        %914 = vmatprep.subr.mxu0 0.0
        %915 = vmatpush1.msra.mxu0 0.0
        %916 = vmatprep.subr.mxu0 0.0
        %917 = vmatpush1.msra.mxu0 0.0
        %918 = vmatprep.subr.mxu0 0.0
        %919 = vmatpush1.msra.mxu0 0.0
        %920 = vmatprep.subr.mxu0 0.0
        %921 = vmatpush1.msra.mxu0 0.0
        %922 = vmatprep.mubr.f32.mxu0 0.0
        %923 = vmatmul.mubr.f32.gmra.mrb[0].mxu0 %v856
        %v924 = vpop.f32.mrb[0].mxu0
        %v925 = vadd.f32 %v548, %v924
        %v926 = vpop.f32.mrb[0].mxu0
        %927 = vdwg.mxu0
        %v928 = vxor.u32 %v925, 2147483648
        %v929 = vmul.f32 %v928, 1.442695
        %v930 = vpow.pop %v929
        %v931 = vadd.f32 %v930, 1.0
        %v932 = vrcp.pop %v931
        %v933 = vmul.f32 1.0, %v932
        %v934 = vtanh.pop %v925
        %v935 = vmul.f32 %v933, 0.0
        %937 = vrot.lane.b32.xlu0 %v934, 64
        %v938 = vpop.permute.xlu0 %937
        %v940 = vmul.f32 %v933, %v938
        %942 = vrot.lane.b32.xlu0 %v940, 32
        %v943 = vpop.permute.xlu0 %942
        %v945 = vadd.f32 %v935, %v943
        %v946 = vtanh.pop %v945
        %948 = vrot.lane.b32.xlu0 %v946, 64
        %v949 = vpop.permute.xlu0 %948
        %v951 = vmul.f32 %v933, %v949
        %953 = vrot.lane.b32.xlu0 %v951, 32
        %v954 = vpop.permute.xlu0 %953
        %956 = vst.msk [vmem:[#allocation3] sm:$0x1] %vm750, %v954
        %v957 = vld [vmem:[#allocation2 + $0x2] sm:$0x1]
        %959 = vrot.lane.b32.xlu0 %v852, 32
        %v960 = vpop.permute.xlu0 %959
        %v961 = vsel %vm550, %v960, 0
        %963 = vmatprep.subr.mxu0 0.0
        %964 = vmatpush1.msra.mxu0 %v536
        %965 = vmatprep.subr.mxu0 0.0
        %966 = vmatpush1.msra.mxu0 %v537
        %967 = vmatprep.subr.mxu0 0.0
        %968 = vmatpush1.msra.mxu0 %v538
        %969 = vmatprep.subr.mxu0 0.0
        %970 = vmatpush1.msra.mxu0 %v539
        %971 = vmatprep.subr.mxu0 0.0
        %972 = vmatpush1.msra.mxu0 0.0
        %973 = vmatprep.subr.mxu0 0.0
        %974 = vmatpush1.msra.mxu0 0.0
        %975 = vmatprep.subr.mxu0 0.0
        %976 = vmatpush1.msra.mxu0 0.0
        %977 = vmatprep.subr.mxu0 0.0
        %978 = vmatpush1.msra.mxu0 0.0
        %979 = vmatprep.subr.mxu0 0.0
        %980 = vmatpush1.msra.mxu0 0.0
        %981 = vmatprep.subr.mxu0 0.0
        %982 = vmatpush1.msra.mxu0 0.0
        %983 = vmatprep.subr.mxu0 0.0
        %984 = vmatpush1.msra.mxu0 0.0
        %985 = vmatprep.subr.mxu0 0.0
        %986 = vmatpush1.msra.mxu0 0.0
        %987 = vmatprep.subr.mxu0 0.0
        %988 = vmatpush1.msra.mxu0 0.0
        %989 = vmatprep.subr.mxu0 0.0
        %990 = vmatpush1.msra.mxu0 0.0
        %991 = vmatprep.subr.mxu0 0.0
        %992 = vmatpush1.msra.mxu0 0.0
        %993 = vmatprep.subr.mxu0 0.0
        %994 = vmatpush1.msra.mxu0 0.0
        %995 = vmatprep.subr.mxu0 0.0
        %996 = vmatpush1.msra.mxu0 0.0
        %997 = vmatprep.subr.mxu0 0.0
        %998 = vmatpush1.msra.mxu0 0.0
        %999 = vmatprep.subr.mxu0 0.0
        %1000 = vmatpush1.msra.mxu0 0.0
        %1001 = vmatprep.subr.mxu0 0.0
        %1002 = vmatpush1.msra.mxu0 0.0
        %1003 = vmatprep.subr.mxu0 0.0
        %1004 = vmatpush1.msra.mxu0 0.0
        %1005 = vmatprep.subr.mxu0 0.0
        %1006 = vmatpush1.msra.mxu0 0.0
        %1007 = vmatprep.subr.mxu0 0.0
        %1008 = vmatpush1.msra.mxu0 0.0
        %1009 = vmatprep.subr.mxu0 0.0
        %1010 = vmatpush1.msra.mxu0 0.0
        %1011 = vmatprep.subr.mxu0 0.0
        %1012 = vmatpush1.msra.mxu0 0.0
        %1013 = vmatprep.subr.mxu0 0.0
        %1014 = vmatpush1.msra.mxu0 0.0
        %1015 = vmatprep.subr.mxu0 0.0
        %1016 = vmatpush1.msra.mxu0 0.0
        %1017 = vmatprep.subr.mxu0 0.0
        %1018 = vmatpush1.msra.mxu0 0.0
        %1019 = vmatprep.subr.mxu0 0.0
        %1020 = vmatpush1.msra.mxu0 0.0
        %1021 = vmatprep.subr.mxu0 0.0
        %1022 = vmatpush1.msra.mxu0 0.0
        %1023 = vmatprep.subr.mxu0 0.0
        %1024 = vmatpush1.msra.mxu0 0.0
        %1025 = vmatprep.subr.mxu0 0.0
        %1026 = vmatpush1.msra.mxu0 0.0
        %1027 = vmatprep.mubr.f32.mxu0 0.0
        %1028 = vmatmul.mubr.f32.gmra.mrb[0].mxu0 %v961
        %v1029 = vpop.f32.mrb[0].mxu0
        %v1030 = vadd.f32 0.0, %v1029
        %v1031 = vpop.f32.mrb[0].mxu0
        %1032 = vdwg.mxu0
        %v1033 = vadd.f32 %v957, %v1030
        %v1034 = vxor.u32 %v1033, 2147483648
        %v1035 = vmul.f32 %v1034, 1.442695
        %v1036 = vpow.pop %v1035
        %v1037 = vadd.f32 %v1036, 1.0
        %v1038 = vrcp.pop %v1037
        %v1039 = vmul.f32 1.0, %v1038
        %v1040 = vtanh.pop %v1033
        %v1041 = vmul.f32 %v1039, %v846
        %1043 = vrot.lane.b32.xlu0 %v1040, 64
        %v1044 = vpop.permute.xlu0 %1043
        %v1046 = vmul.f32 %v1039, %v1044
        %1048 = vrot.lane.b32.xlu0 %v1046, 32
        %v1049 = vpop.permute.xlu0 %1048
        %v1051 = vadd.f32 %v1041, %v1049
        %v1052 = vtanh.pop %v1051
        %1054 = vrot.lane.b32.xlu0 %v1052, 64
        %v1055 = vpop.permute.xlu0 %1054
        %v1057 = vmul.f32 %v1039, %v1055
        %1059 = vrot.lane.b32.xlu0 %v951, 64
        %v1060 = vpop.permute.xlu0 %1059
        %v1062 = vsel %vm550, %v960, %v1060
        %v1064 = vsel %vm649, %v1062, 0
        %1066 = vmatprep.subr.mxu0 0.0
        %1067 = vmatpush1.msra.mxu0 %v540
        %1068 = vmatprep.subr.mxu0 0.0
        %1069 = vmatpush1.msra.mxu0 %v541
        %1070 = vmatprep.subr.mxu0 0.0
        %1071 = vmatpush1.msra.mxu0 %v542
        %1072 = vmatprep.subr.mxu0 0.0
        %1073 = vmatpush1.msra.mxu0 %v543
        %1074 = vmatprep.subr.mxu0 0.0
        %1075 = vmatpush1.msra.mxu0 %v544
        %1076 = vmatprep.subr.mxu0 0.0
        %1077 = vmatpush1.msra.mxu0 %v545
        %1078 = vmatprep.subr.mxu0 0.0
        %1079 = vmatpush1.msra.mxu0 %v546
        %1080 = vmatprep.subr.mxu0 0.0
        %1081 = vmatpush1.msra.mxu0 %v547
        %1082 = vmatprep.subr.mxu0 0.0
        %1083 = vmatpush1.msra.mxu0 0.0
        %1084 = vmatprep.subr.mxu0 0.0
        %1085 = vmatpush1.msra.mxu0 0.0
        %1086 = vmatprep.subr.mxu0 0.0
        %1087 = vmatpush1.msra.mxu0 0.0
        %1088 = vmatprep.subr.mxu0 0.0
        %1089 = vmatpush1.msra.mxu0 0.0
        %1090 = vmatprep.subr.mxu0 0.0
        %1091 = vmatpush1.msra.mxu0 0.0
        %1092 = vmatprep.subr.mxu0 0.0
        %1093 = vmatpush1.msra.mxu0 0.0
        %1094 = vmatprep.subr.mxu0 0.0
        %1095 = vmatpush1.msra.mxu0 0.0
        %1096 = vmatprep.subr.mxu0 0.0
        %1097 = vmatpush1.msra.mxu0 0.0
        %1098 = vmatprep.subr.mxu0 0.0
        %1099 = vmatpush1.msra.mxu0 0.0
        %1100 = vmatprep.subr.mxu0 0.0
        %1101 = vmatpush1.msra.mxu0 0.0
        %1102 = vmatprep.subr.mxu0 0.0
        %1103 = vmatpush1.msra.mxu0 0.0
        %1104 = vmatprep.subr.mxu0 0.0
        %1105 = vmatpush1.msra.mxu0 0.0
        %1106 = vmatprep.subr.mxu0 0.0
        %1107 = vmatpush1.msra.mxu0 0.0
        %1108 = vmatprep.subr.mxu0 0.0
        %1109 = vmatpush1.msra.mxu0 0.0
        %1110 = vmatprep.subr.mxu0 0.0
        %1111 = vmatpush1.msra.mxu0 0.0
        %1112 = vmatprep.subr.mxu0 0.0
        %1113 = vmatpush1.msra.mxu0 0.0
        %1114 = vmatprep.subr.mxu0 0.0
        %1115 = vmatpush1.msra.mxu0 0.0
        %1116 = vmatprep.subr.mxu0 0.0
        %1117 = vmatpush1.msra.mxu0 0.0
        %1118 = vmatprep.subr.mxu0 0.0
        %1119 = vmatpush1.msra.mxu0 0.0
        %1120 = vmatprep.subr.mxu0 0.0
        %1121 = vmatpush1.msra.mxu0 0.0
        %1122 = vmatprep.subr.mxu0 0.0
        %1123 = vmatpush1.msra.mxu0 0.0
        %1124 = vmatprep.subr.mxu0 0.0
        %1125 = vmatpush1.msra.mxu0 0.0
        %1126 = vmatprep.subr.mxu0 0.0
        %1127 = vmatpush1.msra.mxu0 0.0
        %1128 = vmatprep.subr.mxu0 0.0
        %1129 = vmatpush1.msra.mxu0 0.0
        %1130 = vmatprep.mubr.f32.mxu0 0.0
        %1131 = vmatmul.mubr.f32.gmra.mrb[0].mxu0 %v1064
        %v1132 = vpop.f32.mrb[0].mxu0
        %v1133 = vadd.f32 %v548, %v1132
        %v1134 = vpop.f32.mrb[0].mxu0
        %1135 = vdwg.mxu0
        %v1136 = vxor.u32 %v1133, 2147483648
        %v1137 = vmul.f32 %v1136, 1.442695
        %v1138 = vpow.pop %v1137
        %v1139 = vadd.f32 %v1138, 1.0
        %v1140 = vrcp.pop %v1139
        %v1141 = vmul.f32 1.0, %v1140
        %v1142 = vtanh.pop %v1133
        %v1143 = vmul.f32 %v1141, %v945
        %1145 = vrot.lane.b32.xlu0 %v1142, 64
        %v1146 = vpop.permute.xlu0 %1145
        %v1148 = vmul.f32 %v1141, %v1146
        %1150 = vrot.lane.b32.xlu0 %v1148, 32
        %v1151 = vpop.permute.xlu0 %1150
        %v1153 = vadd.f32 %v1143, %v1151
        %v1154 = vtanh.pop %v1153
        %1156 = vrot.lane.b32.xlu0 %v1154, 64
        %v1157 = vpop.permute.xlu0 %1156
        %v1159 = vmul.f32 %v1141, %v1157
        %1161 = vrot.lane.b32.xlu0 %v1159, 32
        %v1162 = vpop.permute.xlu0 %1161
        %1164 = vst.msk [vmem:[#allocation3 + $0x1] sm:$0x1] %vm750, %v1162
        %v1165 = vld [vmem:[#allocation2 + $0x3] sm:$0x1]
        %1167 = vrot.lane.b32.xlu0 %v1057, 32
        %v1168 = vpop.permute.xlu0 %1167
        %v1169 = vsel %vm550, %v1168, 0
        %1171 = vmatprep.subr.mxu0 0.0
        %1172 = vmatpush1.msra.mxu0 %v536
        %1173 = vmatprep.subr.mxu0 0.0
        %1174 = vmatpush1.msra.mxu0 %v537
        %1175 = vmatprep.subr.mxu0 0.0
        %1176 = vmatpush1.msra.mxu0 %v538
        %1177 = vmatprep.subr.mxu0 0.0
        %1178 = vmatpush1.msra.mxu0 %v539
        %1179 = vmatprep.subr.mxu0 0.0
        %1180 = vmatpush1.msra.mxu0 0.0
        %1181 = vmatprep.subr.mxu0 0.0
        %1182 = vmatpush1.msra.mxu0 0.0
        %1183 = vmatprep.subr.mxu0 0.0
        %1184 = vmatpush1.msra.mxu0 0.0
        %1185 = vmatprep.subr.mxu0 0.0
        %1186 = vmatpush1.msra.mxu0 0.0
        %1187 = vmatprep.subr.mxu0 0.0
        %1188 = vmatpush1.msra.mxu0 0.0
        %1189 = vmatprep.subr.mxu0 0.0
        %1190 = vmatpush1.msra.mxu0 0.0
        %1191 = vmatprep.subr.mxu0 0.0
        %1192 = vmatpush1.msra.mxu0 0.0
        %1193 = vmatprep.subr.mxu0 0.0
        %1194 = vmatpush1.msra.mxu0 0.0
        %1195 = vmatprep.subr.mxu0 0.0
        %1196 = vmatpush1.msra.mxu0 0.0
        %1197 = vmatprep.subr.mxu0 0.0
        %1198 = vmatpush1.msra.mxu0 0.0
        %1199 = vmatprep.subr.mxu0 0.0
        %1200 = vmatpush1.msra.mxu0 0.0
        %1201 = vmatprep.subr.mxu0 0.0
        %1202 = vmatpush1.msra.mxu0 0.0
        %1203 = vmatprep.subr.mxu0 0.0
        %1204 = vmatpush1.msra.mxu0 0.0
        %1205 = vmatprep.subr.mxu0 0.0
        %1206 = vmatpush1.msra.mxu0 0.0
        %1207 = vmatprep.subr.mxu0 0.0
        %1208 = vmatpush1.msra.mxu0 0.0
        %1209 = vmatprep.subr.mxu0 0.0
        %1210 = vmatpush1.msra.mxu0 0.0
        %1211 = vmatprep.subr.mxu0 0.0
        %1212 = vmatpush1.msra.mxu0 0.0
        %1213 = vmatprep.subr.mxu0 0.0
        %1214 = vmatpush1.msra.mxu0 0.0
        %1215 = vmatprep.subr.mxu0 0.0
        %1216 = vmatpush1.msra.mxu0 0.0
        %1217 = vmatprep.subr.mxu0 0.0
        %1218 = vmatpush1.msra.mxu0 0.0
        %1219 = vmatprep.subr.mxu0 0.0
        %1220 = vmatpush1.msra.mxu0 0.0
        %1221 = vmatprep.subr.mxu0 0.0
        %1222 = vmatpush1.msra.mxu0 0.0
        %1223 = vmatprep.subr.mxu0 0.0
        %1224 = vmatpush1.msra.mxu0 0.0
        %1225 = vmatprep.subr.mxu0 0.0
        %1226 = vmatpush1.msra.mxu0 0.0
        %1227 = vmatprep.subr.mxu0 0.0
        %1228 = vmatpush1.msra.mxu0 0.0
        %1229 = vmatprep.subr.mxu0 0.0
        %1230 = vmatpush1.msra.mxu0 0.0
        %1231 = vmatprep.subr.mxu0 0.0
        %1232 = vmatpush1.msra.mxu0 0.0
        %1233 = vmatprep.subr.mxu0 0.0
        %1234 = vmatpush1.msra.mxu0 0.0
        %1235 = vmatprep.mubr.f32.mxu0 0.0
        %1236 = vmatmul.mubr.f32.gmra.mrb[0].mxu0 %v1169
        %v1237 = vpop.f32.mrb[0].mxu0
        %v1238 = vadd.f32 0.0, %v1237
        %v1239 = vpop.f32.mrb[0].mxu0
        %1240 = vdwg.mxu0
        %v1241 = vadd.f32 %v1165, %v1238
        %v1242 = vxor.u32 %v1241, 2147483648
        %v1243 = vmul.f32 %v1242, 1.442695
        %v1244 = vpow.pop %v1243
        %v1245 = vadd.f32 %v1244, 1.0
        %v1246 = vrcp.pop %v1245
        %v1247 = vmul.f32 1.0, %v1246
        %v1248 = vtanh.pop %v1241
        %v1249 = vmul.f32 %v1247, %v1051
        %1251 = vrot.lane.b32.xlu0 %v1248, 64
        %v1252 = vpop.permute.xlu0 %1251
        %v1254 = vmul.f32 %v1247, %v1252
        %1256 = vrot.lane.b32.xlu0 %v1254, 32
        %v1257 = vpop.permute.xlu0 %1256
        %v1259 = vadd.f32 %v1249, %v1257
        %v1260 = vtanh.pop %v1259
        %1262 = vrot.lane.b32.xlu0 %v1260, 64
        %v1263 = vpop.permute.xlu0 %1262
        %v1265 = vmul.f32 %v1247, %v1263
        %1267 = vrot.lane.b32.xlu0 %v1159, 64
        %v1268 = vpop.permute.xlu0 %1267
        %v1270 = vsel %vm550, %v1168, %v1268
        %v1272 = vsel %vm649, %v1270, 0
        %1274 = vmatprep.subr.mxu0 0.0
        %1275 = vmatpush1.msra.mxu0 %v540
        %1276 = vmatprep.subr.mxu0 0.0
        %1277 = vmatpush1.msra.mxu0 %v541
        %1278 = vmatprep.subr.mxu0 0.0
        %1279 = vmatpush1.msra.mxu0 %v542
        %1280 = vmatprep.subr.mxu0 0.0
        %1281 = vmatpush1.msra.mxu0 %v543
        %1282 = vmatprep.subr.mxu0 0.0
        %1283 = vmatpush1.msra.mxu0 %v544
        %1284 = vmatprep.subr.mxu0 0.0
        %1285 = vmatpush1.msra.mxu0 %v545
        %1286 = vmatprep.subr.mxu0 0.0
        %1287 = vmatpush1.msra.mxu0 %v546
        %1288 = vmatprep.subr.mxu0 0.0
        %1289 = vmatpush1.msra.mxu0 %v547
        %1290 = vmatprep.subr.mxu0 0.0
        %1291 = vmatpush1.msra.mxu0 0.0
        %1292 = vmatprep.subr.mxu0 0.0
        %1293 = vmatpush1.msra.mxu0 0.0
        %1294 = vmatprep.subr.mxu0 0.0
        %1295 = vmatpush1.msra.mxu0 0.0
        %1296 = vmatprep.subr.mxu0 0.0
        %1297 = vmatpush1.msra.mxu0 0.0
        %1298 = vmatprep.subr.mxu0 0.0
        %1299 = vmatpush1.msra.mxu0 0.0
        %1300 = vmatprep.subr.mxu0 0.0
        %1301 = vmatpush1.msra.mxu0 0.0
        %1302 = vmatprep.subr.mxu0 0.0
        %1303 = vmatpush1.msra.mxu0 0.0
        %1304 = vmatprep.subr.mxu0 0.0
        %1305 = vmatpush1.msra.mxu0 0.0
        %1306 = vmatprep.subr.mxu0 0.0
        %1307 = vmatpush1.msra.mxu0 0.0
        %1308 = vmatprep.subr.mxu0 0.0
        %1309 = vmatpush1.msra.mxu0 0.0
        %1310 = vmatprep.subr.mxu0 0.0
        %1311 = vmatpush1.msra.mxu0 0.0
        %1312 = vmatprep.subr.mxu0 0.0
        %1313 = vmatpush1.msra.mxu0 0.0
        %1314 = vmatprep.subr.mxu0 0.0
        %1315 = vmatpush1.msra.mxu0 0.0
        %1316 = vmatprep.subr.mxu0 0.0
        %1317 = vmatpush1.msra.mxu0 0.0
        %1318 = vmatprep.subr.mxu0 0.0
        %1319 = vmatpush1.msra.mxu0 0.0
        %1320 = vmatprep.subr.mxu0 0.0
        %1321 = vmatpush1.msra.mxu0 0.0
        %1322 = vmatprep.subr.mxu0 0.0
        %1323 = vmatpush1.msra.mxu0 0.0
        %1324 = vmatprep.subr.mxu0 0.0
        %1325 = vmatpush1.msra.mxu0 0.0
        %1326 = vmatprep.subr.mxu0 0.0
        %1327 = vmatpush1.msra.mxu0 0.0
        %1328 = vmatprep.subr.mxu0 0.0
        %1329 = vmatpush1.msra.mxu0 0.0
        %1330 = vmatprep.subr.mxu0 0.0
        %1331 = vmatpush1.msra.mxu0 0.0
        %1332 = vmatprep.subr.mxu0 0.0
        %1333 = vmatpush1.msra.mxu0 0.0
        %1334 = vmatprep.subr.mxu0 0.0
        %1335 = vmatpush1.msra.mxu0 0.0
        %1336 = vmatprep.subr.mxu0 0.0
        %1337 = vmatpush1.msra.mxu0 0.0
        %1338 = vmatprep.mubr.f32.mxu0 0.0
        %1339 = vmatmul.mubr.f32.gmra.mrb[0].mxu0 %v1272
        %v1340 = vpop.f32.mrb[0].mxu0
        %v1341 = vadd.f32 %v548, %v1340
        %v1342 = vpop.f32.mrb[0].mxu0
        %1343 = vdwg.mxu0
        %v1344 = vxor.u32 %v1341, 2147483648
        %v1345 = vmul.f32 %v1344, 1.442695
        %v1346 = vpow.pop %v1345
        %v1347 = vadd.f32 %v1346, 1.0
        %v1348 = vrcp.pop %v1347
        %v1349 = vmul.f32 1.0, %v1348
        %v1350 = vtanh.pop %v1341
        %v1351 = vmul.f32 %v1349, %v1153
        %1353 = vrot.lane.b32.xlu0 %v1350, 64
        %v1354 = vpop.permute.xlu0 %1353
        %v1356 = vmul.f32 %v1349, %v1354
        %1358 = vrot.lane.b32.xlu0 %v1356, 32
        %v1359 = vpop.permute.xlu0 %1358
        %v1361 = vadd.f32 %v1351, %v1359
        %v1362 = vtanh.pop %v1361
        %1364 = vrot.lane.b32.xlu0 %v1362, 64
        %v1365 = vpop.permute.xlu0 %1364
        %v1367 = vmul.f32 %v1349, %v1365
        %1369 = vrot.lane.b32.xlu0 %v1367, 32
        %v1370 = vpop.permute.xlu0 %1369
        %1372 = vst.msk [vmem:[#allocation3 + $0x2] sm:$0x1] %vm750, %v1370
        %v1373 = vld [vmem:[#allocation2 + $0x4] sm:$0x1]
        %1375 = vrot.lane.b32.xlu0 %v1265, 32
        %v1376 = vpop.permute.xlu0 %1375
        %v1377 = vsel %vm550, %v1376, 0
        %1379 = vmatprep.subr.mxu0 0.0
        %1380 = vmatpush1.msra.mxu0 %v536
        %1381 = vmatprep.subr.mxu0 0.0
        %1382 = vmatpush1.msra.mxu0 %v537
        %1383 = vmatprep.subr.mxu0 0.0
        %1384 = vmatpush1.msra.mxu0 %v538
        %1385 = vmatprep.subr.mxu0 0.0
        %1386 = vmatpush1.msra.mxu0 %v539
        %1387 = vmatprep.subr.mxu0 0.0
        %1388 = vmatpush1.msra.mxu0 0.0
        %1389 = vmatprep.subr.mxu0 0.0
        %1390 = vmatpush1.msra.mxu0 0.0
        %1391 = vmatprep.subr.mxu0 0.0
        %1392 = vmatpush1.msra.mxu0 0.0
        %1393 = vmatprep.subr.mxu0 0.0
        %1394 = vmatpush1.msra.mxu0 0.0
        %1395 = vmatprep.subr.mxu0 0.0
        %1396 = vmatpush1.msra.mxu0 0.0
        %1397 = vmatprep.subr.mxu0 0.0
        %1398 = vmatpush1.msra.mxu0 0.0
        %1399 = vmatprep.subr.mxu0 0.0
        %1400 = vmatpush1.msra.mxu0 0.0
        %1401 = vmatprep.subr.mxu0 0.0
        %1402 = vmatpush1.msra.mxu0 0.0
        %1403 = vmatprep.subr.mxu0 0.0
        %1404 = vmatpush1.msra.mxu0 0.0
        %1405 = vmatprep.subr.mxu0 0.0
        %1406 = vmatpush1.msra.mxu0 0.0
        %1407 = vmatprep.subr.mxu0 0.0
        %1408 = vmatpush1.msra.mxu0 0.0
        %1409 = vmatprep.subr.mxu0 0.0
        %1410 = vmatpush1.msra.mxu0 0.0
        %1411 = vmatprep.subr.mxu0 0.0
        %1412 = vmatpush1.msra.mxu0 0.0
        %1413 = vmatprep.subr.mxu0 0.0
        %1414 = vmatpush1.msra.mxu0 0.0
        %1415 = vmatprep.subr.mxu0 0.0
        %1416 = vmatpush1.msra.mxu0 0.0
        %1417 = vmatprep.subr.mxu0 0.0
        %1418 = vmatpush1.msra.mxu0 0.0
        %1419 = vmatprep.subr.mxu0 0.0
        %1420 = vmatpush1.msra.mxu0 0.0
        %1421 = vmatprep.subr.mxu0 0.0
        %1422 = vmatpush1.msra.mxu0 0.0
        %1423 = vmatprep.subr.mxu0 0.0
        %1424 = vmatpush1.msra.mxu0 0.0
        %1425 = vmatprep.subr.mxu0 0.0
        %1426 = vmatpush1.msra.mxu0 0.0
        %1427 = vmatprep.subr.mxu0 0.0
        %1428 = vmatpush1.msra.mxu0 0.0
        %1429 = vmatprep.subr.mxu0 0.0
        %1430 = vmatpush1.msra.mxu0 0.0
        %1431 = vmatprep.subr.mxu0 0.0
        %1432 = vmatpush1.msra.mxu0 0.0
        %1433 = vmatprep.subr.mxu0 0.0
        %1434 = vmatpush1.msra.mxu0 0.0
        %1435 = vmatprep.subr.mxu0 0.0
        %1436 = vmatpush1.msra.mxu0 0.0
        %1437 = vmatprep.subr.mxu0 0.0
        %1438 = vmatpush1.msra.mxu0 0.0
        %1439 = vmatprep.subr.mxu0 0.0
        %1440 = vmatpush1.msra.mxu0 0.0
        %1441 = vmatprep.subr.mxu0 0.0
        %1442 = vmatpush1.msra.mxu0 0.0
        %1443 = vmatprep.mubr.f32.mxu0 0.0
        %1444 = vmatmul.mubr.f32.gmra.mrb[0].mxu0 %v1377
        %v1445 = vpop.f32.mrb[0].mxu0
        %v1446 = vadd.f32 0.0, %v1445
        %v1447 = vpop.f32.mrb[0].mxu0
        %1448 = vdwg.mxu0
        %v1449 = vadd.f32 %v1373, %v1446
        %v1450 = vxor.u32 %v1449, 2147483648
        %v1451 = vmul.f32 %v1450, 1.442695
        %v1452 = vpow.pop %v1451
        %v1453 = vadd.f32 %v1452, 1.0
        %v1454 = vrcp.pop %v1453
        %v1455 = vmul.f32 1.0, %v1454
        %v1456 = vtanh.pop %v1449
        %v1457 = vmul.f32 %v1455, %v1259
        %1459 = vrot.lane.b32.xlu0 %v1456, 64
        %v1460 = vpop.permute.xlu0 %1459
        %v1462 = vmul.f32 %v1455, %v1460
        %1464 = vrot.lane.b32.xlu0 %v1462, 32
        %v1465 = vpop.permute.xlu0 %1464
        %v1467 = vadd.f32 %v1457, %v1465
        %v1468 = vtanh.pop %v1467
        %1470 = vrot.lane.b32.xlu0 %v1468, 64
        %v1471 = vpop.permute.xlu0 %1470
        %v1473 = vmul.f32 %v1455, %v1471
        %1475 = vrot.lane.b32.xlu0 %v1367, 64
        %v1476 = vpop.permute.xlu0 %1475
        %v1478 = vsel %vm550, %v1376, %v1476
        %v1480 = vsel %vm649, %v1478, 0
        %1482 = vmatprep.subr.mxu0 0.0
        %1483 = vmatpush1.msra.mxu0 %v540
        %1484 = vmatprep.subr.mxu0 0.0
        %1485 = vmatpush1.msra.mxu0 %v541
        %1486 = vmatprep.subr.mxu0 0.0
        %1487 = vmatpush1.msra.mxu0 %v542
        %1488 = vmatprep.subr.mxu0 0.0
        %1489 = vmatpush1.msra.mxu0 %v543
        %1490 = vmatprep.subr.mxu0 0.0
        %1491 = vmatpush1.msra.mxu0 %v544
        %1492 = vmatprep.subr.mxu0 0.0
        %1493 = vmatpush1.msra.mxu0 %v545
        %1494 = vmatprep.subr.mxu0 0.0
        %1495 = vmatpush1.msra.mxu0 %v546
        %1496 = vmatprep.subr.mxu0 0.0
        %1497 = vmatpush1.msra.mxu0 %v547
        %1498 = vmatprep.subr.mxu0 0.0
        %1499 = vmatpush1.msra.mxu0 0.0
        %1500 = vmatprep.subr.mxu0 0.0
        %1501 = vmatpush1.msra.mxu0 0.0
        %1502 = vmatprep.subr.mxu0 0.0
        %1503 = vmatpush1.msra.mxu0 0.0
        %1504 = vmatprep.subr.mxu0 0.0
        %1505 = vmatpush1.msra.mxu0 0.0
        %1506 = vmatprep.subr.mxu0 0.0
        %1507 = vmatpush1.msra.mxu0 0.0
        %1508 = vmatprep.subr.mxu0 0.0
        %1509 = vmatpush1.msra.mxu0 0.0
        %1510 = vmatprep.subr.mxu0 0.0
        %1511 = vmatpush1.msra.mxu0 0.0
        %1512 = vmatprep.subr.mxu0 0.0
        %1513 = vmatpush1.msra.mxu0 0.0
        %1514 = vmatprep.subr.mxu0 0.0
        %1515 = vmatpush1.msra.mxu0 0.0
        %1516 = vmatprep.subr.mxu0 0.0
        %1517 = vmatpush1.msra.mxu0 0.0
        %1518 = vmatprep.subr.mxu0 0.0
        %1519 = vmatpush1.msra.mxu0 0.0
        %1520 = vmatprep.subr.mxu0 0.0
        %1521 = vmatpush1.msra.mxu0 0.0
        %1522 = vmatprep.subr.mxu0 0.0
        %1523 = vmatpush1.msra.mxu0 0.0
        %1524 = vmatprep.subr.mxu0 0.0
        %1525 = vmatpush1.msra.mxu0 0.0
        %1526 = vmatprep.subr.mxu0 0.0
        %1527 = vmatpush1.msra.mxu0 0.0
        %1528 = vmatprep.subr.mxu0 0.0
        %1529 = vmatpush1.msra.mxu0 0.0
        %1530 = vmatprep.subr.mxu0 0.0
        %1531 = vmatpush1.msra.mxu0 0.0
        %1532 = vmatprep.subr.mxu0 0.0
        %1533 = vmatpush1.msra.mxu0 0.0
        %1534 = vmatprep.subr.mxu0 0.0
        %1535 = vmatpush1.msra.mxu0 0.0
        %1536 = vmatprep.subr.mxu0 0.0
        %1537 = vmatpush1.msra.mxu0 0.0
        %1538 = vmatprep.subr.mxu0 0.0
        %1539 = vmatpush1.msra.mxu0 0.0
        %1540 = vmatprep.subr.mxu0 0.0
        %1541 = vmatpush1.msra.mxu0 0.0
        %1542 = vmatprep.subr.mxu0 0.0
        %1543 = vmatpush1.msra.mxu0 0.0
        %1544 = vmatprep.subr.mxu0 0.0
        %1545 = vmatpush1.msra.mxu0 0.0
        %1546 = vmatprep.mubr.f32.mxu0 0.0
        %1547 = vmatmul.mubr.f32.gmra.mrb[0].mxu0 %v1480
        %v1548 = vpop.f32.mrb[0].mxu0
        %v1549 = vadd.f32 %v548, %v1548
        %v1550 = vpop.f32.mrb[0].mxu0
        %1551 = vdwg.mxu0
        %v1552 = vxor.u32 %v1549, 2147483648
        %v1553 = vmul.f32 %v1552, 1.442695
        %v1554 = vpow.pop %v1553
        %v1555 = vadd.f32 %v1554, 1.0
        %v1556 = vrcp.pop %v1555
        %v1557 = vmul.f32 1.0, %v1556
        %v1558 = vtanh.pop %v1549
        %v1559 = vmul.f32 %v1557, %v1361
        %1561 = vrot.lane.b32.xlu0 %v1558, 64
        %v1562 = vpop.permute.xlu0 %1561
        %v1564 = vmul.f32 %v1557, %v1562
        %1566 = vrot.lane.b32.xlu0 %v1564, 32
        %v1567 = vpop.permute.xlu0 %1566
        %v1569 = vadd.f32 %v1559, %v1567
        %v1570 = vtanh.pop %v1569
        %1572 = vrot.lane.b32.xlu0 %v1570, 64
        %v1573 = vpop.permute.xlu0 %1572
        %v1575 = vmul.f32 %v1557, %v1573
        %1577 = vrot.lane.b32.xlu0 %v1575, 32
        %v1578 = vpop.permute.xlu0 %1577
        %1580 = vst.msk [vmem:[#allocation3 + $0x3] sm:$0x1] %vm750, %v1578
        %v1581 = vld [vmem:[#allocation2 + $0x5] sm:$0x1]
        %1583 = vrot.lane.b32.xlu0 %v1473, 32
        %v1584 = vpop.permute.xlu0 %1583
        %v1585 = vsel %vm550, %v1584, 0
        %1587 = vmatprep.subr.mxu0 0.0
        %1588 = vmatpush1.msra.mxu0 %v536
        %1589 = vmatprep.subr.mxu0 0.0
        %1590 = vmatpush1.msra.mxu0 %v537
        %1591 = vmatprep.subr.mxu0 0.0
        %1592 = vmatpush1.msra.mxu0 %v538
        %1593 = vmatprep.subr.mxu0 0.0
        %1594 = vmatpush1.msra.mxu0 %v539
        %1595 = vmatprep.subr.mxu0 0.0
        %1596 = vmatpush1.msra.mxu0 0.0
        %1597 = vmatprep.subr.mxu0 0.0
        %1598 = vmatpush1.msra.mxu0 0.0
        %1599 = vmatprep.subr.mxu0 0.0
        %1600 = vmatpush1.msra.mxu0 0.0
        %1601 = vmatprep.subr.mxu0 0.0
        %1602 = vmatpush1.msra.mxu0 0.0
        %1603 = vmatprep.subr.mxu0 0.0
        %1604 = vmatpush1.msra.mxu0 0.0
        %1605 = vmatprep.subr.mxu0 0.0
        %1606 = vmatpush1.msra.mxu0 0.0
        %1607 = vmatprep.subr.mxu0 0.0
        %1608 = vmatpush1.msra.mxu0 0.0
        %1609 = vmatprep.subr.mxu0 0.0
        %1610 = vmatpush1.msra.mxu0 0.0
        %1611 = vmatprep.subr.mxu0 0.0
        %1612 = vmatpush1.msra.mxu0 0.0
        %1613 = vmatprep.subr.mxu0 0.0
        %1614 = vmatpush1.msra.mxu0 0.0
        %1615 = vmatprep.subr.mxu0 0.0
        %1616 = vmatpush1.msra.mxu0 0.0
        %1617 = vmatprep.subr.mxu0 0.0
        %1618 = vmatpush1.msra.mxu0 0.0
        %1619 = vmatprep.subr.mxu0 0.0
        %1620 = vmatpush1.msra.mxu0 0.0
        %1621 = vmatprep.subr.mxu0 0.0
        %1622 = vmatpush1.msra.mxu0 0.0
        %1623 = vmatprep.subr.mxu0 0.0
        %1624 = vmatpush1.msra.mxu0 0.0
        %1625 = vmatprep.subr.mxu0 0.0
        %1626 = vmatpush1.msra.mxu0 0.0
        %1627 = vmatprep.subr.mxu0 0.0
        %1628 = vmatpush1.msra.mxu0 0.0
        %1629 = vmatprep.subr.mxu0 0.0
        %1630 = vmatpush1.msra.mxu0 0.0
        %1631 = vmatprep.subr.mxu0 0.0
        %1632 = vmatpush1.msra.mxu0 0.0
        %1633 = vmatprep.subr.mxu0 0.0
        %1634 = vmatpush1.msra.mxu0 0.0
        %1635 = vmatprep.subr.mxu0 0.0
        %1636 = vmatpush1.msra.mxu0 0.0
        %1637 = vmatprep.subr.mxu0 0.0
        %1638 = vmatpush1.msra.mxu0 0.0
        %1639 = vmatprep.subr.mxu0 0.0
        %1640 = vmatpush1.msra.mxu0 0.0
        %1641 = vmatprep.subr.mxu0 0.0
        %1642 = vmatpush1.msra.mxu0 0.0
        %1643 = vmatprep.subr.mxu0 0.0
        %1644 = vmatpush1.msra.mxu0 0.0
        %1645 = vmatprep.subr.mxu0 0.0
        %1646 = vmatpush1.msra.mxu0 0.0
        %1647 = vmatprep.subr.mxu0 0.0
        %1648 = vmatpush1.msra.mxu0 0.0
        %1649 = vmatprep.subr.mxu0 0.0
        %1650 = vmatpush1.msra.mxu0 0.0
        %1651 = vmatprep.mubr.f32.mxu0 0.0
        %1652 = vmatmul.mubr.f32.gmra.mrb[0].mxu0 %v1585
        %v1653 = vpop.f32.mrb[0].mxu0
        %v1654 = vadd.f32 0.0, %v1653
        %v1655 = vpop.f32.mrb[0].mxu0
        %1656 = vdwg.mxu0
        %v1657 = vadd.f32 %v1581, %v1654
        %v1658 = vxor.u32 %v1657, 2147483648
        %v1659 = vmul.f32 %v1658, 1.442695
        %v1660 = vpow.pop %v1659
        %v1661 = vadd.f32 %v1660, 1.0
        %v1662 = vrcp.pop %v1661
        %v1663 = vmul.f32 1.0, %v1662
        %v1664 = vtanh.pop %v1657
        %v1665 = vmul.f32 %v1663, %v1467
        %1667 = vrot.lane.b32.xlu0 %v1664, 64
        %v1668 = vpop.permute.xlu0 %1667
        %v1670 = vmul.f32 %v1663, %v1668
        %1672 = vrot.lane.b32.xlu0 %v1670, 32
        %v1673 = vpop.permute.xlu0 %1672
        %v1675 = vadd.f32 %v1665, %v1673
        %v1676 = vtanh.pop %v1675
        %1678 = vrot.lane.b32.xlu0 %v1676, 64
        %v1679 = vpop.permute.xlu0 %1678
        %v1681 = vmul.f32 %v1663, %v1679
        %1683 = vrot.lane.b32.xlu0 %v1575, 64
        %v1684 = vpop.permute.xlu0 %1683
        %v1686 = vsel %vm550, %v1584, %v1684
        %v1688 = vsel %vm649, %v1686, 0
        %1690 = vmatprep.subr.mxu0 0.0
        %1691 = vmatpush1.msra.mxu0 %v540
        %1692 = vmatprep.subr.mxu0 0.0
        %1693 = vmatpush1.msra.mxu0 %v541
        %1694 = vmatprep.subr.mxu0 0.0
        %1695 = vmatpush1.msra.mxu0 %v542
        %1696 = vmatprep.subr.mxu0 0.0
        %1697 = vmatpush1.msra.mxu0 %v543
        %1698 = vmatprep.subr.mxu0 0.0
        %1699 = vmatpush1.msra.mxu0 %v544
        %1700 = vmatprep.subr.mxu0 0.0
        %1701 = vmatpush1.msra.mxu0 %v545
        %1702 = vmatprep.subr.mxu0 0.0
        %1703 = vmatpush1.msra.mxu0 %v546
        %1704 = vmatprep.subr.mxu0 0.0
        %1705 = vmatpush1.msra.mxu0 %v547
        %1706 = vmatprep.subr.mxu0 0.0
        %1707 = vmatpush1.msra.mxu0 0.0
        %1708 = vmatprep.subr.mxu0 0.0
        %1709 = vmatpush1.msra.mxu0 0.0
        %1710 = vmatprep.subr.mxu0 0.0
        %1711 = vmatpush1.msra.mxu0 0.0
        %1712 = vmatprep.subr.mxu0 0.0
        %1713 = vmatpush1.msra.mxu0 0.0
        %1714 = vmatprep.subr.mxu0 0.0
        %1715 = vmatpush1.msra.mxu0 0.0
        %1716 = vmatprep.subr.mxu0 0.0
        %1717 = vmatpush1.msra.mxu0 0.0
        %1718 = vmatprep.subr.mxu0 0.0
        %1719 = vmatpush1.msra.mxu0 0.0
        %1720 = vmatprep.subr.mxu0 0.0
        %1721 = vmatpush1.msra.mxu0 0.0
        %1722 = vmatprep.subr.mxu0 0.0
        %1723 = vmatpush1.msra.mxu0 0.0
        %1724 = vmatprep.subr.mxu0 0.0
        %1725 = vmatpush1.msra.mxu0 0.0
        %1726 = vmatprep.subr.mxu0 0.0
        %1727 = vmatpush1.msra.mxu0 0.0
        %1728 = vmatprep.subr.mxu0 0.0
        %1729 = vmatpush1.msra.mxu0 0.0
        %1730 = vmatprep.subr.mxu0 0.0
        %1731 = vmatpush1.msra.mxu0 0.0
        %1732 = vmatprep.subr.mxu0 0.0
        %1733 = vmatpush1.msra.mxu0 0.0
        %1734 = vmatprep.subr.mxu0 0.0
        %1735 = vmatpush1.msra.mxu0 0.0
        %1736 = vmatprep.subr.mxu0 0.0
        %1737 = vmatpush1.msra.mxu0 0.0
        %1738 = vmatprep.subr.mxu0 0.0
        %1739 = vmatpush1.msra.mxu0 0.0
        %1740 = vmatprep.subr.mxu0 0.0
        %1741 = vmatpush1.msra.mxu0 0.0
        %1742 = vmatprep.subr.mxu0 0.0
        %1743 = vmatpush1.msra.mxu0 0.0
        %1744 = vmatprep.subr.mxu0 0.0
        %1745 = vmatpush1.msra.mxu0 0.0
        %1746 = vmatprep.subr.mxu0 0.0
        %1747 = vmatpush1.msra.mxu0 0.0
        %1748 = vmatprep.subr.mxu0 0.0
        %1749 = vmatpush1.msra.mxu0 0.0
        %1750 = vmatprep.subr.mxu0 0.0
        %1751 = vmatpush1.msra.mxu0 0.0
        %1752 = vmatprep.subr.mxu0 0.0
        %1753 = vmatpush1.msra.mxu0 0.0
        %1754 = vmatprep.mubr.f32.mxu0 0.0
        %1755 = vmatmul.mubr.f32.gmra.mrb[0].mxu0 %v1688
        %v1756 = vpop.f32.mrb[0].mxu0
        %v1757 = vadd.f32 %v548, %v1756
        %v1758 = vpop.f32.mrb[0].mxu0
        %1759 = vdwg.mxu0
        %v1760 = vxor.u32 %v1757, 2147483648
        %v1761 = vmul.f32 %v1760, 1.442695
        %v1762 = vpow.pop %v1761
        %v1763 = vadd.f32 %v1762, 1.0
        %v1764 = vrcp.pop %v1763
        %v1765 = vmul.f32 1.0, %v1764
        %v1766 = vtanh.pop %v1757
        %v1767 = vmul.f32 %v1765, %v1569
        %1769 = vrot.lane.b32.xlu0 %v1766, 64
        %v1770 = vpop.permute.xlu0 %1769
        %v1772 = vmul.f32 %v1765, %v1770
        %1774 = vrot.lane.b32.xlu0 %v1772, 32
        %v1775 = vpop.permute.xlu0 %1774
        %v1777 = vadd.f32 %v1767, %v1775
        %v1778 = vtanh.pop %v1777
        %1780 = vrot.lane.b32.xlu0 %v1778, 64
        %v1781 = vpop.permute.xlu0 %1780
        %v1783 = vmul.f32 %v1765, %v1781
        %1785 = vrot.lane.b32.xlu0 %v1783, 32
        %v1786 = vpop.permute.xlu0 %1785
        %1788 = vst.msk [vmem:[#allocation3 + $0x4] sm:$0x1] %vm750, %v1786
        %v1789 = vld [vmem:[#allocation2 + $0x6] sm:$0x1]
        %1791 = vrot.lane.b32.xlu0 %v1681, 32
        %v1792 = vpop.permute.xlu0 %1791
        %v1793 = vsel %vm550, %v1792, 0
        %1795 = vmatprep.subr.mxu0 0.0
        %1796 = vmatpush1.msra.mxu0 %v536
        %1797 = vmatprep.subr.mxu0 0.0
        %1798 = vmatpush1.msra.mxu0 %v537
        %1799 = vmatprep.subr.mxu0 0.0
        %1800 = vmatpush1.msra.mxu0 %v538
        %1801 = vmatprep.subr.mxu0 0.0
        %1802 = vmatpush1.msra.mxu0 %v539
        %1803 = vmatprep.subr.mxu0 0.0
        %1804 = vmatpush1.msra.mxu0 0.0
        %1805 = vmatprep.subr.mxu0 0.0
        %1806 = vmatpush1.msra.mxu0 0.0
        %1807 = vmatprep.subr.mxu0 0.0
        %1808 = vmatpush1.msra.mxu0 0.0
        %1809 = vmatprep.subr.mxu0 0.0
        %1810 = vmatpush1.msra.mxu0 0.0
        %1811 = vmatprep.subr.mxu0 0.0
        %1812 = vmatpush1.msra.mxu0 0.0
        %1813 = vmatprep.subr.mxu0 0.0
        %1814 = vmatpush1.msra.mxu0 0.0
        %1815 = vmatprep.subr.mxu0 0.0
        %1816 = vmatpush1.msra.mxu0 0.0
        %1817 = vmatprep.subr.mxu0 0.0
        %1818 = vmatpush1.msra.mxu0 0.0
        %1819 = vmatprep.subr.mxu0 0.0
        %1820 = vmatpush1.msra.mxu0 0.0
        %1821 = vmatprep.subr.mxu0 0.0
        %1822 = vmatpush1.msra.mxu0 0.0
        %1823 = vmatprep.subr.mxu0 0.0
        %1824 = vmatpush1.msra.mxu0 0.0
        %1825 = vmatprep.subr.mxu0 0.0
        %1826 = vmatpush1.msra.mxu0 0.0
        %1827 = vmatprep.subr.mxu0 0.0
        %1828 = vmatpush1.msra.mxu0 0.0
        %1829 = vmatprep.subr.mxu0 0.0
        %1830 = vmatpush1.msra.mxu0 0.0
        %1831 = vmatprep.subr.mxu0 0.0
        %1832 = vmatpush1.msra.mxu0 0.0
        %1833 = vmatprep.subr.mxu0 0.0
        %1834 = vmatpush1.msra.mxu0 0.0
        %1835 = vmatprep.subr.mxu0 0.0
        %1836 = vmatpush1.msra.mxu0 0.0
        %1837 = vmatprep.subr.mxu0 0.0
        %1838 = vmatpush1.msra.mxu0 0.0
        %1839 = vmatprep.subr.mxu0 0.0
        %1840 = vmatpush1.msra.mxu0 0.0
        %1841 = vmatprep.subr.mxu0 0.0
        %1842 = vmatpush1.msra.mxu0 0.0
        %1843 = vmatprep.subr.mxu0 0.0
        %1844 = vmatpush1.msra.mxu0 0.0
        %1845 = vmatprep.subr.mxu0 0.0
        %1846 = vmatpush1.msra.mxu0 0.0
        %1847 = vmatprep.subr.mxu0 0.0
        %1848 = vmatpush1.msra.mxu0 0.0
        %1849 = vmatprep.subr.mxu0 0.0
        %1850 = vmatpush1.msra.mxu0 0.0
        %1851 = vmatprep.subr.mxu0 0.0
        %1852 = vmatpush1.msra.mxu0 0.0
        %1853 = vmatprep.subr.mxu0 0.0
        %1854 = vmatpush1.msra.mxu0 0.0
        %1855 = vmatprep.subr.mxu0 0.0
        %1856 = vmatpush1.msra.mxu0 0.0
        %1857 = vmatprep.subr.mxu0 0.0
        %1858 = vmatpush1.msra.mxu0 0.0
        %1859 = vmatprep.mubr.f32.mxu0 0.0
        %1860 = vmatmul.mubr.f32.gmra.mrb[0].mxu0 %v1793
        %v1861 = vpop.f32.mrb[0].mxu0
        %v1862 = vadd.f32 0.0, %v1861
        %v1863 = vpop.f32.mrb[0].mxu0
        %1864 = vdwg.mxu0
        %v1865 = vadd.f32 %v1789, %v1862
        %v1866 = vxor.u32 %v1865, 2147483648
        %v1867 = vmul.f32 %v1866, 1.442695
        %v1868 = vpow.pop %v1867
        %v1869 = vadd.f32 %v1868, 1.0
        %v1870 = vrcp.pop %v1869
        %v1871 = vmul.f32 1.0, %v1870
        %v1872 = vtanh.pop %v1865
        %v1873 = vmul.f32 %v1871, %v1675
        %1875 = vrot.lane.b32.xlu0 %v1872, 64
        %v1876 = vpop.permute.xlu0 %1875
        %v1878 = vmul.f32 %v1871, %v1876
        %1880 = vrot.lane.b32.xlu0 %v1878, 32
        %v1881 = vpop.permute.xlu0 %1880
        %v1883 = vadd.f32 %v1873, %v1881
        %v1884 = vtanh.pop %v1883
        %1886 = vrot.lane.b32.xlu0 %v1884, 64
        %v1887 = vpop.permute.xlu0 %1886
        %v1889 = vmul.f32 %v1871, %v1887
        %1891 = vrot.lane.b32.xlu0 %v1783, 64
        %v1892 = vpop.permute.xlu0 %1891
        %v1894 = vsel %vm550, %v1792, %v1892
        %v1896 = vsel %vm649, %v1894, 0
        %1898 = vmatprep.subr.mxu0 0.0
        %1899 = vmatpush1.msra.mxu0 %v540
        %1900 = vmatprep.subr.mxu0 0.0
        %1901 = vmatpush1.msra.mxu0 %v541
        %1902 = vmatprep.subr.mxu0 0.0
        %1903 = vmatpush1.msra.mxu0 %v542
        %1904 = vmatprep.subr.mxu0 0.0
        %1905 = vmatpush1.msra.mxu0 %v543
        %1906 = vmatprep.subr.mxu0 0.0
        %1907 = vmatpush1.msra.mxu0 %v544
        %1908 = vmatprep.subr.mxu0 0.0
        %1909 = vmatpush1.msra.mxu0 %v545
        %1910 = vmatprep.subr.mxu0 0.0
        %1911 = vmatpush1.msra.mxu0 %v546
        %1912 = vmatprep.subr.mxu0 0.0
        %1913 = vmatpush1.msra.mxu0 %v547
        %1914 = vmatprep.subr.mxu0 0.0
        %1915 = vmatpush1.msra.mxu0 0.0
        %1916 = vmatprep.subr.mxu0 0.0
        %1917 = vmatpush1.msra.mxu0 0.0
        %1918 = vmatprep.subr.mxu0 0.0
        %1919 = vmatpush1.msra.mxu0 0.0
        %1920 = vmatprep.subr.mxu0 0.0
        %1921 = vmatpush1.msra.mxu0 0.0
        %1922 = vmatprep.subr.mxu0 0.0
        %1923 = vmatpush1.msra.mxu0 0.0
        %1924 = vmatprep.subr.mxu0 0.0
        %1925 = vmatpush1.msra.mxu0 0.0
        %1926 = vmatprep.subr.mxu0 0.0
        %1927 = vmatpush1.msra.mxu0 0.0
        %1928 = vmatprep.subr.mxu0 0.0
        %1929 = vmatpush1.msra.mxu0 0.0
        %1930 = vmatprep.subr.mxu0 0.0
        %1931 = vmatpush1.msra.mxu0 0.0
        %1932 = vmatprep.subr.mxu0 0.0
        %1933 = vmatpush1.msra.mxu0 0.0
        %1934 = vmatprep.subr.mxu0 0.0
        %1935 = vmatpush1.msra.mxu0 0.0
        %1936 = vmatprep.subr.mxu0 0.0
        %1937 = vmatpush1.msra.mxu0 0.0
        %1938 = vmatprep.subr.mxu0 0.0
        %1939 = vmatpush1.msra.mxu0 0.0
        %1940 = vmatprep.subr.mxu0 0.0
        %1941 = vmatpush1.msra.mxu0 0.0
        %1942 = vmatprep.subr.mxu0 0.0
        %1943 = vmatpush1.msra.mxu0 0.0
        %1944 = vmatprep.subr.mxu0 0.0
        %1945 = vmatpush1.msra.mxu0 0.0
        %1946 = vmatprep.subr.mxu0 0.0
        %1947 = vmatpush1.msra.mxu0 0.0
        %1948 = vmatprep.subr.mxu0 0.0
        %1949 = vmatpush1.msra.mxu0 0.0
        %1950 = vmatprep.subr.mxu0 0.0
        %1951 = vmatpush1.msra.mxu0 0.0
        %1952 = vmatprep.subr.mxu0 0.0
        %1953 = vmatpush1.msra.mxu0 0.0
        %1954 = vmatprep.subr.mxu0 0.0
        %1955 = vmatpush1.msra.mxu0 0.0
        %1956 = vmatprep.subr.mxu0 0.0
        %1957 = vmatpush1.msra.mxu0 0.0
        %1958 = vmatprep.subr.mxu0 0.0
        %1959 = vmatpush1.msra.mxu0 0.0
        %1960 = vmatprep.subr.mxu0 0.0
        %1961 = vmatpush1.msra.mxu0 0.0
        %1962 = vmatprep.mubr.f32.mxu0 0.0
        %1963 = vmatmul.mubr.f32.gmra.mrb[0].mxu0 %v1896
        %v1964 = vpop.f32.mrb[0].mxu0
        %v1965 = vadd.f32 %v548, %v1964
        %v1966 = vpop.f32.mrb[0].mxu0
        %1967 = vdwg.mxu0
        %v1968 = vxor.u32 %v1965, 2147483648
        %v1969 = vmul.f32 %v1968, 1.442695
        %v1970 = vpow.pop %v1969
        %v1971 = vadd.f32 %v1970, 1.0
        %v1972 = vrcp.pop %v1971
        %v1973 = vmul.f32 1.0, %v1972
        %v1974 = vtanh.pop %v1965
        %v1975 = vmul.f32 %v1973, %v1777
        %1977 = vrot.lane.b32.xlu0 %v1974, 64
        %v1978 = vpop.permute.xlu0 %1977
        %v1980 = vmul.f32 %v1973, %v1978
        %1982 = vrot.lane.b32.xlu0 %v1980, 32
        %v1983 = vpop.permute.xlu0 %1982
        %v1985 = vadd.f32 %v1975, %v1983
        %v1986 = vtanh.pop %v1985
        %1988 = vrot.lane.b32.xlu0 %v1986, 64
        %v1989 = vpop.permute.xlu0 %1988
        %v1991 = vmul.f32 %v1973, %v1989
        %1993 = vrot.lane.b32.xlu0 %v1991, 32
        %v1994 = vpop.permute.xlu0 %1993
        %1996 = vst.msk [vmem:[#allocation3 + $0x5] sm:$0x1] %vm750, %v1994
        %v1997 = vld [vmem:[#allocation2 + $0x7] sm:$0x1]
        %1999 = vrot.lane.b32.xlu0 %v1889, 32
        %v2000 = vpop.permute.xlu0 %1999
        %v2001 = vsel %vm550, %v2000, 0
        %2003 = vmatprep.subr.mxu0 0.0
        %2004 = vmatpush1.msra.mxu0 %v536
        %2005 = vmatprep.subr.mxu0 0.0
        %2006 = vmatpush1.msra.mxu0 %v537
        %2007 = vmatprep.subr.mxu0 0.0
        %2008 = vmatpush1.msra.mxu0 %v538
        %2009 = vmatprep.subr.mxu0 0.0
        %2010 = vmatpush1.msra.mxu0 %v539
        %2011 = vmatprep.subr.mxu0 0.0
        %2012 = vmatpush1.msra.mxu0 0.0
        %2013 = vmatprep.subr.mxu0 0.0
        %2014 = vmatpush1.msra.mxu0 0.0
        %2015 = vmatprep.subr.mxu0 0.0
        %2016 = vmatpush1.msra.mxu0 0.0
        %2017 = vmatprep.subr.mxu0 0.0
        %2018 = vmatpush1.msra.mxu0 0.0
        %2019 = vmatprep.subr.mxu0 0.0
        %2020 = vmatpush1.msra.mxu0 0.0
        %2021 = vmatprep.subr.mxu0 0.0
        %2022 = vmatpush1.msra.mxu0 0.0
        %2023 = vmatprep.subr.mxu0 0.0
        %2024 = vmatpush1.msra.mxu0 0.0
        %2025 = vmatprep.subr.mxu0 0.0
        %2026 = vmatpush1.msra.mxu0 0.0
        %2027 = vmatprep.subr.mxu0 0.0
        %2028 = vmatpush1.msra.mxu0 0.0
        %2029 = vmatprep.subr.mxu0 0.0
        %2030 = vmatpush1.msra.mxu0 0.0
        %2031 = vmatprep.subr.mxu0 0.0
        %2032 = vmatpush1.msra.mxu0 0.0
        %2033 = vmatprep.subr.mxu0 0.0
        %2034 = vmatpush1.msra.mxu0 0.0
        %2035 = vmatprep.subr.mxu0 0.0
        %2036 = vmatpush1.msra.mxu0 0.0
        %2037 = vmatprep.subr.mxu0 0.0
        %2038 = vmatpush1.msra.mxu0 0.0
        %2039 = vmatprep.subr.mxu0 0.0
        %2040 = vmatpush1.msra.mxu0 0.0
        %2041 = vmatprep.subr.mxu0 0.0
        %2042 = vmatpush1.msra.mxu0 0.0
        %2043 = vmatprep.subr.mxu0 0.0
        %2044 = vmatpush1.msra.mxu0 0.0
        %2045 = vmatprep.subr.mxu0 0.0
        %2046 = vmatpush1.msra.mxu0 0.0
        %2047 = vmatprep.subr.mxu0 0.0
        %2048 = vmatpush1.msra.mxu0 0.0
        %2049 = vmatprep.subr.mxu0 0.0
        %2050 = vmatpush1.msra.mxu0 0.0
        %2051 = vmatprep.subr.mxu0 0.0
        %2052 = vmatpush1.msra.mxu0 0.0
        %2053 = vmatprep.subr.mxu0 0.0
        %2054 = vmatpush1.msra.mxu0 0.0
        %2055 = vmatprep.subr.mxu0 0.0
        %2056 = vmatpush1.msra.mxu0 0.0
        %2057 = vmatprep.subr.mxu0 0.0
        %2058 = vmatpush1.msra.mxu0 0.0
        %2059 = vmatprep.subr.mxu0 0.0
        %2060 = vmatpush1.msra.mxu0 0.0
        %2061 = vmatprep.subr.mxu0 0.0
        %2062 = vmatpush1.msra.mxu0 0.0
        %2063 = vmatprep.subr.mxu0 0.0
        %2064 = vmatpush1.msra.mxu0 0.0
        %2065 = vmatprep.subr.mxu0 0.0
        %2066 = vmatpush1.msra.mxu0 0.0
        %2067 = vmatprep.mubr.f32.mxu0 0.0
        %2068 = vmatmul.mubr.f32.gmra.mrb[0].mxu0 %v2001
        %v2069 = vpop.f32.mrb[0].mxu0
        %v2070 = vadd.f32 0.0, %v2069
        %v2071 = vpop.f32.mrb[0].mxu0
        %2072 = vdwg.mxu0
        %v2073 = vadd.f32 %v1997, %v2070
        %v2074 = vxor.u32 %v2073, 2147483648
        %v2075 = vmul.f32 %v2074, 1.442695
        %v2076 = vpow.pop %v2075
        %v2077 = vadd.f32 %v2076, 1.0
        %v2078 = vrcp.pop %v2077
        %v2079 = vmul.f32 1.0, %v2078
        %v2080 = vtanh.pop %v2073
        %v2081 = vmul.f32 %v2079, %v1883
        %2083 = vrot.lane.b32.xlu0 %v2080, 64
        %v2084 = vpop.permute.xlu0 %2083
        %v2086 = vmul.f32 %v2079, %v2084
        %2088 = vrot.lane.b32.xlu0 %v2086, 32
        %v2089 = vpop.permute.xlu0 %2088
        %v2091 = vadd.f32 %v2081, %v2089
        %v2092 = vtanh.pop %v2091
        %2094 = vrot.lane.b32.xlu0 %v2092, 64
        %v2095 = vpop.permute.xlu0 %2094
        %v2097 = vmul.f32 %v2079, %v2095
        %2099 = vrot.lane.b32.xlu0 %v1991, 64
        %v2100 = vpop.permute.xlu0 %2099
        %v2102 = vsel %vm550, %v2000, %v2100
        %v2104 = vsel %vm649, %v2102, 0
        %2106 = vmatprep.subr.mxu0 0.0
        %2107 = vmatpush1.msra.mxu0 %v540
        %2108 = vmatprep.subr.mxu0 0.0
        %2109 = vmatpush1.msra.mxu0 %v541
        %2110 = vmatprep.subr.mxu0 0.0
        %2111 = vmatpush1.msra.mxu0 %v542
        %2112 = vmatprep.subr.mxu0 0.0
        %2113 = vmatpush1.msra.mxu0 %v543
        %2114 = vmatprep.subr.mxu0 0.0
        %2115 = vmatpush1.msra.mxu0 %v544
        %2116 = vmatprep.subr.mxu0 0.0
        %2117 = vmatpush1.msra.mxu0 %v545
        %2118 = vmatprep.subr.mxu0 0.0
        %2119 = vmatpush1.msra.mxu0 %v546
        %2120 = vmatprep.subr.mxu0 0.0
        %2121 = vmatpush1.msra.mxu0 %v547
        %2122 = vmatprep.subr.mxu0 0.0
        %2123 = vmatpush1.msra.mxu0 0.0
        %2124 = vmatprep.subr.mxu0 0.0
        %2125 = vmatpush1.msra.mxu0 0.0
        %2126 = vmatprep.subr.mxu0 0.0
        %2127 = vmatpush1.msra.mxu0 0.0
        %2128 = vmatprep.subr.mxu0 0.0
        %2129 = vmatpush1.msra.mxu0 0.0
        %2130 = vmatprep.subr.mxu0 0.0
        %2131 = vmatpush1.msra.mxu0 0.0
        %2132 = vmatprep.subr.mxu0 0.0
        %2133 = vmatpush1.msra.mxu0 0.0
        %2134 = vmatprep.subr.mxu0 0.0
        %2135 = vmatpush1.msra.mxu0 0.0
        %2136 = vmatprep.subr.mxu0 0.0
        %2137 = vmatpush1.msra.mxu0 0.0
        %2138 = vmatprep.subr.mxu0 0.0
        %2139 = vmatpush1.msra.mxu0 0.0
        %2140 = vmatprep.subr.mxu0 0.0
        %2141 = vmatpush1.msra.mxu0 0.0
        %2142 = vmatprep.subr.mxu0 0.0
        %2143 = vmatpush1.msra.mxu0 0.0
        %2144 = vmatprep.subr.mxu0 0.0
        %2145 = vmatpush1.msra.mxu0 0.0
        %2146 = vmatprep.subr.mxu0 0.0
        %2147 = vmatpush1.msra.mxu0 0.0
        %2148 = vmatprep.subr.mxu0 0.0
        %2149 = vmatpush1.msra.mxu0 0.0
        %2150 = vmatprep.subr.mxu0 0.0
        %2151 = vmatpush1.msra.mxu0 0.0
        %2152 = vmatprep.subr.mxu0 0.0
        %2153 = vmatpush1.msra.mxu0 0.0
        %2154 = vmatprep.subr.mxu0 0.0
        %2155 = vmatpush1.msra.mxu0 0.0
        %2156 = vmatprep.subr.mxu0 0.0
        %2157 = vmatpush1.msra.mxu0 0.0
        %2158 = vmatprep.subr.mxu0 0.0
        %2159 = vmatpush1.msra.mxu0 0.0
        %2160 = vmatprep.subr.mxu0 0.0
        %2161 = vmatpush1.msra.mxu0 0.0
        %2162 = vmatprep.subr.mxu0 0.0
        %2163 = vmatpush1.msra.mxu0 0.0
        %2164 = vmatprep.subr.mxu0 0.0
        %2165 = vmatpush1.msra.mxu0 0.0
        %2166 = vmatprep.subr.mxu0 0.0
        %2167 = vmatpush1.msra.mxu0 0.0
        %2168 = vmatprep.subr.mxu0 0.0
        %2169 = vmatpush1.msra.mxu0 0.0
        %2170 = vmatprep.mubr.f32.mxu0 0.0
        %2171 = vmatmul.mubr.f32.gmra.mrb[0].mxu0 %v2104
        %v2172 = vpop.f32.mrb[0].mxu0
        %v2173 = vadd.f32 %v548, %v2172
        %v2174 = vpop.f32.mrb[0].mxu0
        %2175 = vdwg.mxu0
        %v2176 = vxor.u32 %v2173, 2147483648
        %v2177 = vmul.f32 %v2176, 1.442695
        %v2178 = vpow.pop %v2177
        %v2179 = vadd.f32 %v2178, 1.0
        %v2180 = vrcp.pop %v2179
        %v2181 = vmul.f32 1.0, %v2180
        %v2182 = vtanh.pop %v2173
        %v2183 = vmul.f32 %v2181, %v1985
        %2185 = vrot.lane.b32.xlu0 %v2182, 64
        %v2186 = vpop.permute.xlu0 %2185
        %v2188 = vmul.f32 %v2181, %v2186
        %2190 = vrot.lane.b32.xlu0 %v2188, 32
        %v2191 = vpop.permute.xlu0 %2190
        %v2193 = vadd.f32 %v2183, %v2191
        %v2194 = vtanh.pop %v2193
        %2196 = vrot.lane.b32.xlu0 %v2194, 64
        %v2197 = vpop.permute.xlu0 %2196
        %v2199 = vmul.f32 %v2181, %v2197
        %2201 = vrot.lane.b32.xlu0 %v2199, 32
        %v2202 = vpop.permute.xlu0 %2201
        %2204 = vst.msk [vmem:[#allocation3 + $0x6] sm:$0x1] %vm750, %v2202
        %2206 = vrot.lane.b32.xlu0 %v2097, 32
        %v2207 = vpop.permute.xlu0 %2206
        %2209 = vrot.lane.b32.xlu0 %v2199, 64
        %v2210 = vpop.permute.xlu0 %2209
        %v2212 = vsel %vm550, %v2207, %v2210
        %v2214 = vsel %vm649, %v2212, 0
        %2216 = vmatprep.subr.mxu0 0.0
        %2217 = vmatpush1.msra.mxu0 %v540
        %2218 = vmatprep.subr.mxu0 0.0
        %2219 = vmatpush1.msra.mxu0 %v541
        %2220 = vmatprep.subr.mxu0 0.0
        %2221 = vmatpush1.msra.mxu0 %v542
        %2222 = vmatprep.subr.mxu0 0.0
        %2223 = vmatpush1.msra.mxu0 %v543
        %2224 = vmatprep.subr.mxu0 0.0
        %2225 = vmatpush1.msra.mxu0 %v544
        %2226 = vmatprep.subr.mxu0 0.0
        %2227 = vmatpush1.msra.mxu0 %v545
        %2228 = vmatprep.subr.mxu0 0.0
        %2229 = vmatpush1.msra.mxu0 %v546
        %2230 = vmatprep.subr.mxu0 0.0
        %2231 = vmatpush1.msra.mxu0 %v547
        %2232 = vmatprep.subr.mxu0 0.0
        %2233 = vmatpush1.msra.mxu0 0.0
        %2234 = vmatprep.subr.mxu0 0.0
        %2235 = vmatpush1.msra.mxu0 0.0
        %2236 = vmatprep.subr.mxu0 0.0
        %2237 = vmatpush1.msra.mxu0 0.0
        %2238 = vmatprep.subr.mxu0 0.0
        %2239 = vmatpush1.msra.mxu0 0.0
        %2240 = vmatprep.subr.mxu0 0.0
        %2241 = vmatpush1.msra.mxu0 0.0
        %2242 = vmatprep.subr.mxu0 0.0
        %2243 = vmatpush1.msra.mxu0 0.0
        %2244 = vmatprep.subr.mxu0 0.0
        %2245 = vmatpush1.msra.mxu0 0.0
        %2246 = vmatprep.subr.mxu0 0.0
        %2247 = vmatpush1.msra.mxu0 0.0
        %2248 = vmatprep.subr.mxu0 0.0
        %2249 = vmatpush1.msra.mxu0 0.0
        %2250 = vmatprep.subr.mxu0 0.0
        %2251 = vmatpush1.msra.mxu0 0.0
        %2252 = vmatprep.subr.mxu0 0.0
        %2253 = vmatpush1.msra.mxu0 0.0
        %2254 = vmatprep.subr.mxu0 0.0
        %2255 = vmatpush1.msra.mxu0 0.0
        %2256 = vmatprep.subr.mxu0 0.0
        %2257 = vmatpush1.msra.mxu0 0.0
        %2258 = vmatprep.subr.mxu0 0.0
        %2259 = vmatpush1.msra.mxu0 0.0
        %2260 = vmatprep.subr.mxu0 0.0
        %2261 = vmatpush1.msra.mxu0 0.0
        %2262 = vmatprep.subr.mxu0 0.0
        %2263 = vmatpush1.msra.mxu0 0.0
        %2264 = vmatprep.subr.mxu0 0.0
        %2265 = vmatpush1.msra.mxu0 0.0
        %2266 = vmatprep.subr.mxu0 0.0
        %2267 = vmatpush1.msra.mxu0 0.0
        %2268 = vmatprep.subr.mxu0 0.0
        %2269 = vmatpush1.msra.mxu0 0.0
        %2270 = vmatprep.subr.mxu0 0.0
        %2271 = vmatpush1.msra.mxu0 0.0
        %2272 = vmatprep.subr.mxu0 0.0
        %2273 = vmatpush1.msra.mxu0 0.0
        %2274 = vmatprep.subr.mxu0 0.0
        %2275 = vmatpush1.msra.mxu0 0.0
        %2276 = vmatprep.subr.mxu0 0.0
        %2277 = vmatpush1.msra.mxu0 0.0
        %2278 = vmatprep.subr.mxu0 0.0
        %2279 = vmatpush1.msra.mxu0 0.0
        %2280 = vmatprep.mubr.f32.mxu0 0.0
        %2281 = vmatmul.mubr.f32.gmra.mrb[0].mxu0 %v2214
        %v2282 = vpop.f32.mrb[0].mxu0
        %v2283 = vadd.f32 %v548, %v2282
        %v2284 = vpop.f32.mrb[0].mxu0
        %2285 = vdwg.mxu0
        %v2286 = vxor.u32 %v2283, 2147483648
        %v2287 = vmul.f32 %v2286, 1.442695
        %v2288 = vpow.pop %v2287
        %v2289 = vadd.f32 %v2288, 1.0
        %v2290 = vrcp.pop %v2289
        %v2291 = vmul.f32 1.0, %v2290
        %v2292 = vtanh.pop %v2283
        %v2293 = vmul.f32 %v2291, %v2193
        %2295 = vrot.lane.b32.xlu0 %v2292, 64
        %v2296 = vpop.permute.xlu0 %2295
        %v2298 = vmul.f32 %v2291, %v2296
        %2300 = vrot.lane.b32.xlu0 %v2298, 32
        %v2301 = vpop.permute.xlu0 %2300
        %v2303 = vadd.f32 %v2293, %v2301
        %v2304 = vtanh.pop %v2303
        %2306 = vrot.lane.b32.xlu0 %v2304, 64
        %v2307 = vpop.permute.xlu0 %2306
        %v2309 = vmul.f32 %v2291, %v2307
        %2311 = vrot.lane.b32.xlu0 %v2309, 32
        %v2312 = vpop.permute.xlu0 %2311
        %2314 = vst.msk [vmem:[#allocation3 + $0x7] sm:$0x1] %vm750, %v2312
        %v2315 = vld [vmem:[#allocation3] sm:$0xff]
        %v2316 = vld [vmem:[#allocation12] sm:$0xff]
        %v2317 = vld [vmem:[#allocation12 + $0x8] sm:$0xff]
        %v2318 = vld [vmem:[#allocation12 + $0x10] sm:$0xff]
        %v2319 = vld [vmem:[#allocation12 + $0x18] sm:$0xff]
        %v2320 = vld [vmem:[%s7] sm:$0x1]
        %v2322 = vlaneseq
        %v2323 = vshrl.u32 %v2322, 7
        %v2324 = vsub.s32 0, %v2323
        %v2325 = vrot.slane %v2320, %v2324
        %v2328 = vsel %vm550, %v2315, 0
        %2330 = vmatprep.subr.mxu0 0.0
        %2331 = vmatpush1.msra.mxu0 %v2316
        %2332 = vmatprep.subr.mxu0 0.0
        %2333 = vmatpush1.msra.mxu0 %v2317
        %2334 = vmatprep.subr.mxu0 0.0
        %2335 = vmatpush1.msra.mxu0 %v2318
        %2336 = vmatprep.subr.mxu0 0.0
        %2337 = vmatpush1.msra.mxu0 %v2319
        %2338 = vmatprep.subr.mxu0 0.0
        %2339 = vmatpush1.msra.mxu0 0.0
        %2340 = vmatprep.subr.mxu0 0.0
        %2341 = vmatpush1.msra.mxu0 0.0
        %2342 = vmatprep.subr.mxu0 0.0
        %2343 = vmatpush1.msra.mxu0 0.0
        %2344 = vmatprep.subr.mxu0 0.0
        %2345 = vmatpush1.msra.mxu0 0.0
        %2346 = vmatprep.subr.mxu0 0.0
        %2347 = vmatpush1.msra.mxu0 0.0
        %2348 = vmatprep.subr.mxu0 0.0
        %2349 = vmatpush1.msra.mxu0 0.0
        %2350 = vmatprep.subr.mxu0 0.0
        %2351 = vmatpush1.msra.mxu0 0.0
        %2352 = vmatprep.subr.mxu0 0.0
        %2353 = vmatpush1.msra.mxu0 0.0
        %2354 = vmatprep.subr.mxu0 0.0
        %2355 = vmatpush1.msra.mxu0 0.0
        %2356 = vmatprep.subr.mxu0 0.0
        %2357 = vmatpush1.msra.mxu0 0.0
        %2358 = vmatprep.subr.mxu0 0.0
        %2359 = vmatpush1.msra.mxu0 0.0
        %2360 = vmatprep.subr.mxu0 0.0
        %2361 = vmatpush1.msra.mxu0 0.0
        %2362 = vmatprep.subr.mxu0 0.0
        %2363 = vmatpush1.msra.mxu0 0.0
        %2364 = vmatprep.subr.mxu0 0.0
        %2365 = vmatpush1.msra.mxu0 0.0
        %2366 = vmatprep.subr.mxu0 0.0
        %2367 = vmatpush1.msra.mxu0 0.0
        %2368 = vmatprep.subr.mxu0 0.0
        %2369 = vmatpush1.msra.mxu0 0.0
        %2370 = vmatprep.subr.mxu0 0.0
        %2371 = vmatpush1.msra.mxu0 0.0
        %2372 = vmatprep.subr.mxu0 0.0
        %2373 = vmatpush1.msra.mxu0 0.0
        %2374 = vmatprep.subr.mxu0 0.0
        %2375 = vmatpush1.msra.mxu0 0.0
        %2376 = vmatprep.subr.mxu0 0.0
        %2377 = vmatpush1.msra.mxu0 0.0
        %2378 = vmatprep.subr.mxu0 0.0
        %2379 = vmatpush1.msra.mxu0 0.0
        %2380 = vmatprep.subr.mxu0 0.0
        %2381 = vmatpush1.msra.mxu0 0.0
        %2382 = vmatprep.subr.mxu0 0.0
        %2383 = vmatpush1.msra.mxu0 0.0
        %2384 = vmatprep.subr.mxu0 0.0
        %2385 = vmatpush1.msra.mxu0 0.0
        %2386 = vmatprep.subr.mxu0 0.0
        %2387 = vmatpush1.msra.mxu0 0.0
        %2388 = vmatprep.subr.mxu0 0.0
        %2389 = vmatpush1.msra.mxu0 0.0
        %2390 = vmatprep.subr.mxu0 0.0
        %2391 = vmatpush1.msra.mxu0 0.0
        %2392 = vmatprep.subr.mxu0 0.0
        %2393 = vmatpush1.msra.mxu0 0.0
        %2394 = vmatprep.mubr.f32.mxu0 0.0
        %2395 = vmatmul.mubr.f32.gmra.mrb[0].mxu0 %v2328
        %v2396 = vpop.f32.mrb[0].mxu0
        %v2397 = vadd.f32 %v2325, %v2396
        %v2398 = vpop.f32.mrb[0].mxu0
        %2399 = vdwg.mxu0
        %2400 = vst [vmem:[%s436] sm:$0xff] %v2397
        %v2401 = vrot.slane %v2309, 7
        %vm2403 = vcmask 1040384
        %v2404 = vsel %vm2403, %v2097, %v2401
        %2406 = vrot.lane.b32.xlu0 %v2404, 32
        %v2407 = vpop.permute.xlu0 %2406
        %vm2409 = vcmask 254976
        %2410 = vst.msk [vmem:[%s443] sm:$0x3] %vm2409, %v2407
        %v2412 = vrot.slane %v2303, 7
        %v2414 = vsel %vm2403, %v2091, %v2412
        %2416 = vrot.lane.b32.xlu0 %v2414, 96
        %v2417 = vpop.permute.xlu0 %2416
        %2419 = vst.msk [vmem:[%s450] sm:$0x3] %vm2409, %v2417
        %s2420 = sand.u32 %s214, 1
        %s2421 = scalar_lea.sflag [#allocation6], %s2420
        %s2422 = sand.u32 %s214, 1
        %s2423 = smul.addr %s2422, 8
        %s2424 = scalar_lea.vmem [#allocation13], %s2423
        %s2425 = sand.u32 %s33, 1
        %s2426 = scalar_lea.sflag [#allocation15], %s2425
        %s2427 = sand.u32 %s240, 1
        %s2428 = smul.addr %s2427, 2
        %s2429 = scalar_lea.vmem [#allocation14], %s2428
        %s2430 = sand.u32 %s33, 1
        %s2431 = scalar_lea.sflag [#allocation15], %s2430
        %s2432 = sand.u32 %s266, 1
        %s2433 = smul.addr %s2432, 2
        %s2434 = scalar_lea.vmem [#allocation16], %s2433
        // Predicated region
        $region73: #{tpu_custom_call.1} parent=51 // pred_check
          %p2435 = pneg %p224
        $region74: #{tpu_custom_call.1} parent=51 // pred_check_branch
          %2437 = sbr.rel (%p2435) target = $region76
        $region75: #{tpu_custom_call.1} parent=51 // pred_region
          %s2439 = ssub.s32 128, 128
          %2440 = vsyncadd %s2421, %s2439
          %s2441 = smul.addr %s33, 128
          %s2442 = scalar_lea.hbm %s8, %s2441
          %s2444 = sshll.u32 %s2424, 4
          %s2445 = int_to_ptr.vmem [resolvable:$true] %s2444
          %2447 = dma.vmem_to_hbm [thread:$0]  %s2445, 128, %s2442, %s2421
        $region76: #{tpu_custom_call.1} parent=51 // pred_fallthru
          _
        // Predicated region
        $region77: #{tpu_custom_call.1} parent=51 // pred_check
          %p2448 = pneg %p250
        $region78: #{tpu_custom_call.1} parent=51 // pred_check_branch
          %2450 = sbr.rel (%p2448) target = $region80
        $region79: #{tpu_custom_call.1} parent=51 // pred_region
          %s2452 = ssub.s32 32, 32
          %2453 = vsyncadd %s2426, %s2452
          %s2454 = smul.addr %s33, 32
          %s2455 = scalar_lea.hbm %s9, %s2454
          %s2457 = sshll.u32 %s2429, 4
          %s2458 = int_to_ptr.vmem [resolvable:$true] %s2457
          %2460 = dma.vmem_to_hbm [thread:$0]  %s2458, 32, %s2455, %s2426
        $region80: #{tpu_custom_call.1} parent=51 // pred_fallthru
          _
        // Predicated region
        $region81: #{tpu_custom_call.1} parent=51 // pred_check
          %p2461 = pneg %p276
        $region82: #{tpu_custom_call.1} parent=51 // pred_check_branch
          %2463 = sbr.rel (%p2461) target = $region84
        $region83: #{tpu_custom_call.1} parent=51 // pred_region
          %s2465 = ssub.s32 32, 32
          %2466 = vsyncadd %s2431, %s2465
          %s2467 = smul.addr %s33, 32
          %s2468 = scalar_lea.hbm %s10, %s2467
          %s2470 = sshll.u32 %s2434, 4
          %s2471 = int_to_ptr.vmem [resolvable:$true] %s2470
          %2473 = dma.vmem_to_hbm [thread:$0]  %s2471, 32, %s2468, %s2431
        $region84: #{tpu_custom_call.1} parent=51 // pred_fallthru
          _
      $region52: #{tpu_custom_call.1} parent=5 // pred_fallthru
        _
      %p2474 = scmp.le.s32.totalorder 2, %s28
      // Predicated region
      $region85: #{tpu_custom_call.1} parent=5 // pred_check
        %p2475 = pneg %p2474
      $region86: #{tpu_custom_call.1} parent=5 // pred_check_branch
        %2477 = sbr.rel (%p2475) target = $region88
      $region87: #{tpu_custom_call.1} parent=5 // pred_region
        %s2478 = ssub.s32 %s28, 2
        // Predicated region
        $region89: #{tpu_custom_call.1} parent=87 // pred_check
          %p2479 = pneg %p230
        $region90: #{tpu_custom_call.1} parent=87 // pred_check_branch
          %2481 = sbr.rel (%p2479) target = $region92
        $region91: #{tpu_custom_call.1} parent=87 // pred_region
          %s2482 = sand.u32 %s215, 1
          %s2483 = scalar_lea.sflag [#allocation6], %s2482
          %s2484 = sand.u32 %s215, 1
          %s2485 = smul.addr %s2484, 8
          %s2486 = scalar_lea.vmem [#allocation13], %s2485
          %2487 = dma.done %s2483, 128
        $region92: #{tpu_custom_call.1} parent=87 // pred_fallthru
          _
        // Predicated region
        $region93: #{tpu_custom_call.1} parent=87 // pred_check
          %p2488 = pneg %p256
        $region94: #{tpu_custom_call.1} parent=87 // pred_check_branch
          %2490 = sbr.rel (%p2488) target = $region96
        $region95: #{tpu_custom_call.1} parent=87 // pred_region
          %s2491 = sand.u32 %s34, 1
          %s2492 = scalar_lea.sflag [#allocation15], %s2491
          %s2493 = sand.u32 %s241, 1
          %s2494 = smul.addr %s2493, 2
          %s2495 = scalar_lea.vmem [#allocation14], %s2494
          %2496 = dma.done %s2492, 32
        $region96: #{tpu_custom_call.1} parent=87 // pred_fallthru
          _
        // Predicated region
        $region97: #{tpu_custom_call.1} parent=87 // pred_check
          %p2497 = pneg %p282
        $region98: #{tpu_custom_call.1} parent=87 // pred_check_branch
          %2499 = sbr.rel (%p2497) target = $region100
        $region99: #{tpu_custom_call.1} parent=87 // pred_region
          %s2500 = sand.u32 %s34, 1
          %s2501 = scalar_lea.sflag [#allocation15], %s2500
          %s2502 = sand.u32 %s267, 1
          %s2503 = smul.addr %s2502, 2
          %s2504 = scalar_lea.vmem [#allocation16], %s2503
          %2505 = dma.done %s2501, 32
        $region100: #{tpu_custom_call.1} parent=87 // pred_fallthru
          _
      $region88: #{tpu_custom_call.1} parent=5 // pred_fallthru
        _
    $region6: #{tpu_custom_call.1} parent=1 // loop_footer
      %s32 = sadd.s32 1, %s28
    $region7: #{tpu_custom_call.1} parent=1 // loop_footer_branch
      %27 = sbr.rel target = $region3
    $region8: #{tpu_custom_call.1} parent=1 // loop_exit
      _
    %2506 = vsyncpa [#allocation5], 1
    %s2507 = scalar_lea.sflag [#allocation5], 1
    %2508 = vsyncpa %s2507, 1
    %2509 = vsyncpa [#allocation8], 1
    %2510 = vsyncpa [#allocation11], 1
    %2511 = vsyncpa [#allocation6], 1
    %s2512 = scalar_lea.sflag [#allocation6], 1
    %2513 = vsyncpa %s2512, 1
    %2514 = vsyncpa [#allocation15], 1
    %s2515 = scalar_lea.sflag [#allocation15], 1
    %2516 = vsyncpa %s2515, 1

</llo_original>
